<compile_context>
chip_gen: v7x
topology: tpu7x:2x2x1
jax: 0.10.0
libtpu: 0.0.40
codegen_flags: <defaults>
</compile_context>

<pallas_src>
import jax
import jax.numpy as jnp
from jax import lax
from jax.experimental import pallas as pl
from jax.experimental.pallas import tpu as pltpu

LANE = 128
SUBLANE = 8
_VMEM_CAP = 40 << 20   # leave headroom on v7x (64 MiB/TC); v5e/v6e have 128 MiB


def _round_up(x, m):
    return (x + m - 1) // m * m


def _candle_lstm_kernel(p_ref, whh_ref, wfc_ref, bfc_ref, out_ref, h_scr, c_scr):
    """One (batch-tile, time-chunk) grid step of the LSTM recurrence.

    p_ref   : (TC, BT, 4*Hg)  mdt  precomputed x@W_ih^T + (b_ih+b_hh), gate-padded, time-major
    whh_ref : (4, Hg, Hg)     mdt  per-gate hidden->gate weights (transposed, padded)
    wfc_ref : (Hg, Op)        mdt  final linear weight (transposed, padded)
    bfc_ref : (1, Op)         f32  final linear bias (padded)
    out_ref : (BT, Op)        f32  sigmoid(fc(h_T)); written only on the last time chunk
    h_scr/c_scr : (BT, Hg)    f32  hidden / cell state, persist across time chunks

    Grid-order contract: the time axis MUST be the innermost grid axis and be marked
    "arbitrary"; h/c scratch is (re)initialized at t_idx == 0 for each batch tile and
    carried across the remaining time chunks of that tile.
    """
    t_idx = pl.program_id(1)
    Hg = h_scr.shape[1]
    t_chunk = p_ref.shape[0]

    @pl.when(t_idx == 0)
    def _():
        h_scr[...] = jnp.zeros_like(h_scr)
        c_scr[...] = jnp.zeros_like(c_scr)

    # Hoisted weight loads: once per grid step, not once per unrolled time step.
    mdt = whh_ref.dtype
    w_i = whh_ref[0]
    w_f = whh_ref[1]
    w_g = whh_ref[2]
    w_o = whh_ref[3]

    h = h_scr[...]
    c = c_scr[...]

    # Fully-unrolled time chunk. Only the recurrent per-gate matmul sits on the serial
    # path; the input projection and bias were hoisted out of the kernel entirely.
    # Gate-split matmuls: each nonlinearity is applied right after its own (BT, Hg) dot,
    # so live f32 gate state is capped at one Hg-wide slab even for large batch tiles.
    for t in range(t_chunk):
        hm = h.astype(mdt)
        i_g = jax.nn.sigmoid(
            p_ref[t, :, 0 * Hg:1 * Hg].astype(jnp.float32)
            + jnp.dot(hm, w_i, preferred_element_type=jnp.float32))
        f_g = jax.nn.sigmoid(
            p_ref[t, :, 1 * Hg:2 * Hg].astype(jnp.float32)
            + jnp.dot(hm, w_f, preferred_element_type=jnp.float32))
        g_g = jnp.tanh(
            p_ref[t, :, 2 * Hg:3 * Hg].astype(jnp.float32)
            + jnp.dot(hm, w_g, preferred_element_type=jnp.float32))
        o_g = jax.nn.sigmoid(
            p_ref[t, :, 3 * Hg:4 * Hg].astype(jnp.float32)
            + jnp.dot(hm, w_o, preferred_element_type=jnp.float32))
        c = f_g * c + i_g * g_g
        h = o_g * jnp.tanh(c)

    h_scr[...] = h
    c_scr[...] = c

    @pl.when(t_idx == pl.num_programs(1) - 1)
    def _():
        logits = jnp.dot(h.astype(mdt), wfc_ref[...],
                         preferred_element_type=jnp.float32) + bfc_ref[...]
        out_ref[...] = jax.nn.sigmoid(logits)


def _candle_lstm_forward_impl(tokens, params, *, t_chunk=16, b_tile_max=128):
    emb = params["embedding"]          # (V, E)
    w_ih_t = params["w_ih_t"]          # (E, 4H)
    w_hh_t = params["w_hh_t"]          # (H, 4H)
    b = params["b"]                    # (1, 4H)
    w_fc_t = params["w_fc_t"]          # (H, O)
    b_fc = params["b_fc"]              # (1, O)

    B, T = tokens.shape
    E = emb.shape[1]
    H = w_hh_t.shape[0]
    O = w_fc_t.shape[1]

    # MXU operands are bf16 on real TPUs (f32 accumulation); fall back to pure f32
    # elsewhere (e.g. CPU / interpret execution, where bf16 x bf16 -> f32 dots are
    # unsupported by the executor).
    mdt = jnp.bfloat16 if jax.default_backend() == "tpu" else jnp.float32
    esize = jnp.dtype(mdt).itemsize

    # Per-gate padded width: 4*Hg is always a multiple of 128 (lane-dense P stream);
    # when H % 128 == 0 the gate slabs are additionally lane-aligned and the padding is
    # a no-op. For small H (e.g. H=32) this avoids the 4x P inflation / 16x FLOP
    # inflation of padding every gate to 128 lanes.
    Hg = _round_up(H, 32)
    Gp = 4 * Hg
    Op = _round_up(O, LANE)            # lane-dense (unmasked) output store

    # Batch tiling: fill the MXU row dimension, but keep >=2 batch tiles (the only
    # "parallel" grid axis) when the batch is big enough so the second TensorCore on
    # v7x is not idle (e.g. B=128 -> b_tile=64, num_b=2).
    B8 = _round_up(B, SUBLANE)
    b_tile = min(b_tile_max, B8)
    if B8 // b_tile < 2 and b_tile >= 2 * SUBLANE:
        b_tile = _round_up(b_tile // 2, SUBLANE)
    Bp = _round_up(B8, b_tile)

    # Time chunking: large enough to amortize per-grid-step overhead and the h/c scratch
    # reload, shrunk if the double-buffered P stream + resident weights would exceed the
    # v7x-safe VMEM budget.
    t_chunk = max(1, min(t_chunk, T))
    fixed_bytes = (2 * (4 * Hg * Hg + Hg * Op) * esize + 2 * Op * 4
                   + 2 * b_tile * Hg * 4 + 2 * b_tile * Op * 4)
    while t_chunk > 1 and fixed_bytes + 2 * t_chunk * b_tile * Gp * esize > _VMEM_CAP:
        t_chunk //= 2
    Tp = _round_up(T, t_chunk)
    vmem_limit = int(min(max(fixed_bytes + 2 * t_chunk * b_tile * Gp * esize
                             + (2 << 20), 8 << 20), _VMEM_CAP))
    # TODO(synk): for very large H (W_hh no longer comfortably resident on v7x's 64 MiB/TC),
    # stream W_hh per-gate via an extra grid axis instead of keeping all 4 gate blocks resident.

    # ---- pad / repack parameters into gate-padded, MXU-friendly layouts ----
    wih_p = jnp.zeros((E, Gp), jnp.float32)
    b_p = jnp.zeros((1, Gp), jnp.float32)
    whh_p = jnp.zeros((4, Hg, Hg), jnp.float32)
    for k in range(4):
        wih_p = wih_p.at[:, k * Hg:k * Hg + H].set(w_ih_t[:, k * H:(k + 1) * H])
        b_p = b_p.at[:, k * Hg:k * Hg + H].set(b[:, k * H:(k + 1) * H])
        whh_p = whh_p.at[k, :H, :H].set(w_hh_t[:, k * H:(k + 1) * H])
    wfc_p = jnp.zeros((Hg, Op), jnp.float32).at[:H, :O].set(w_fc_t)
    bfc_p = jnp.zeros((1, Op), jnp.float32).at[:, :O].set(b_fc)

    # ---- XLA glue: time-major embedding gather + hoisted input projection ----
    # Gathering with tokens.T produces x_emb directly as (T, B, E): the projection einsum
    # needs no activation transpose. P is stored in the MXU dtype (bf16 on TPU) to halve
    # its HBM traffic and double-buffered VMEM footprint.
    tok_p = jnp.pad(tokens, ((0, Bp - B), (0, 0)))                      # (Bp, T)
    x_emb = jnp.take(emb, tok_p.T, axis=0).astype(mdt)                  # (T, Bp, E)
    p = (jnp.einsum("tbe,eg->tbg", x_emb, wih_p.astype(mdt),
                    preferred_element_type=jnp.float32) + b_p).astype(mdt)   # (T, Bp, Gp)
    if Tp > T:
        # Prepend all-zero gate pre-activations: with i=f=o=sigmoid(0), g=tanh(0)=0 and
        # h0=c0=0, the state stays exactly zero, so the real-sequence result is unchanged.
        p = jnp.concatenate([jnp.zeros((Tp - T, Bp, Gp), mdt), p], axis=0)

    num_b = Bp // b_tile
    num_t = Tp // t_chunk

    out = pl.pallas_call(
        _candle_lstm_kernel,
        out_shape=jax.ShapeDtypeStruct((Bp, Op), jnp.float32),
        # Time must stay the inner ("arbitrary") grid axis: h/c scratch carries the
        # recurrence across time chunks for each batch tile.
        grid=(num_b, num_t),
        in_specs=[
            pl.BlockSpec((t_chunk, b_tile, Gp), lambda bi, ti: (ti, bi, 0)),  # P stream
            pl.BlockSpec((4, Hg, Hg), lambda bi, ti: (0, 0, 0)),              # W_hh^T (per gate)
            pl.BlockSpec((Hg, Op), lambda bi, ti: (0, 0)),                    # W_fc^T
            pl.BlockSpec((1, Op), lambda bi, ti: (0, 0)),                     # b_fc
        ],
        out_specs=pl.BlockSpec((b_tile, Op), lambda bi, ti: (bi, 0)),
        scratch_shapes=[
            pltpu.VMEM((b_tile, Hg), jnp.float32),  # h
            pltpu.VMEM((b_tile, Hg), jnp.float32),  # c
        ],
        compiler_params=pltpu.CompilerParams(
            dimension_semantics=("parallel", "arbitrary"),
            vmem_limit_bytes=vmem_limit),
    )(p, whh_p.astype(mdt), wfc_p.astype(mdt), bfc_p)

    return out[:B, :O]


@jax.jit
def candle_lstm_forward(tokens, params):
    """tokens: int32 (B, T) token ids. Returns float32 (B, O)."""
    return _candle_lstm_forward_impl(tokens, params)


def init_params(key, vocab_size, embedding_dim, hidden_dim, output_dim):
    """Deterministic synthetic parameters (PyTorch-like uniform init ranges)."""
    ks = jax.random.split(key, 7)
    k_lstm = 1.0 / jnp.sqrt(hidden_dim)
    k_fc = 1.0 / jnp.sqrt(hidden_dim)
    emb = jax.random.normal(ks[0], (vocab_size, embedding_dim), jnp.float32)
    w_ih = jax.random.uniform(ks[1], (4 * hidden_dim, embedding_dim),
                              jnp.float32, -k_lstm, k_lstm)
    w_hh = jax.random.uniform(ks[2], (4 * hidden_dim, hidden_dim),
                              jnp.float32, -k_lstm, k_lstm)
    b_ih = jax.random.uniform(ks[3], (4 * hidden_dim,), jnp.float32, -k_lstm, k_lstm)
    b_hh = jax.random.uniform(ks[4], (4 * hidden_dim,), jnp.float32, -k_lstm, k_lstm)
    w_fc = jax.random.uniform(ks[5], (output_dim, hidden_dim), jnp.float32, -k_fc, k_fc)
    b_fc = jax.random.uniform(ks[6], (output_dim,), jnp.float32, -k_fc, k_fc)
    return {
        "embedding": emb,
        "w_ih_t": w_ih.T,                       # (E, 4H)
        "w_hh_t": w_hh.T,                       # (H, 4H)
        "b": (b_ih + b_hh)[None, :],            # (1, 4H)
        "w_fc_t": w_fc.T,                       # (H, O)
        "b_fc": b_fc[None, :],                  # (1, O)
    }


def reference_forward(tokens, params):
    """Pure-JAX f32 reference implementing the PyTorch semantics."""
    emb = params["embedding"]
    x = jnp.take(emb, tokens, axis=0)  # (B, T, E)
    B, T, E = x.shape
    H = params["w_hh_t"].shape[0]

    def step(carry, x_t):
        h, c = carry
        gates = x_t @ params["w_ih_t"] + h @ params["w_hh_t"] + params["b"]
        i = jax.nn.sigmoid(gates[:, 0 * H:1 * H])
        f = jax.nn.sigmoid(gates[:, 1 * H:2 * H])
        g = jnp.tanh(gates[:, 2 * H:3 * H])
        o = jax.nn.sigmoid(gates[:, 3 * H:4 * H])
        c = f * c + i * g
        h = o * jnp.tanh(c)
        return (h, c), None

    h0 = jnp.zeros((B, H), jnp.float32)
    c0 = jnp.zeros((B, H), jnp.float32)
    (h_last, _), _ = lax.scan(step, (h0, c0), jnp.transpose(x, (1, 0, 2)))
    return jax.nn.sigmoid(h_last @ params["w_fc_t"] + params["b_fc"])


if __name__ == "__main__":
    vocab_size, embedding_dim, hidden_dim, output_dim = 32, 16, 32, 4
    batch, seq = 2, 8

    key = jax.random.PRNGKey(0)
    k_tok, k_par = jax.random.split(key)
    tokens = jax.random.randint(k_tok, (batch, seq), 0, vocab_size, dtype=jnp.int32)
    params = init_params(k_par, vocab_size, embedding_dim, hidden_dim, output_dim)

    out = candle_lstm_forward(tokens, params)
    out = jax.block_until_ready(out)

    ref = reference_forward(tokens, params)
    assert out.shape == (batch, output_dim)
    # On TPU the MXU operands are bf16 (f32 accumulation / f32 gate math) -> relaxed
    # tolerance; on non-TPU backends the kernel runs in pure f32 and matches tightly.
    assert jnp.allclose(out, ref, atol=2e-2, rtol=2e-2), (
        f"mismatch: max diff {jnp.max(jnp.abs(out - ref))}")
    print("KERNEL_OK")
</pallas_src>

<mosaic_0001>
module attributes {stable_mosaic.version = 11 : i64} {
  func.func @_candle_lstm_kernel(%arg0: i32, %arg1: i32, %arg2: memref<8x8x128xf32, #tpu.memory_space<vmem>>, %arg3: memref<4x32x32xf32, #tpu.memory_space<vmem>>, %arg4: memref<32x128xf32, #tpu.memory_space<vmem>>, %arg5: memref<1x128xf32, #tpu.memory_space<vmem>>, %arg6: memref<8x128xf32, #tpu.memory_space<vmem>>, %arg7: memref<8x32xf32, #tpu.memory_space<vmem>>, %arg8: memref<8x32xf32, #tpu.memory_space<vmem>>) attributes {dimension_semantics = [#tpu.dimension_semantics<parallel>, #tpu.dimension_semantics<arbitrary>], iteration_bounds = array<i64: 1, 1>, scalar_prefetch = 0 : i64, scratch_operands = 2 : i64, tpu.core_type = #tpu.core_type<tc>, window_params = [{transform_indices = @transform_0, window_bounds = array<i64: 8, 8, 128>}, {pipeline_mode = #tpu.pipeline_mode<synchronous>, transform_indices = @transform_1, window_bounds = array<i64: 4, 32, 32>}, {pipeline_mode = #tpu.pipeline_mode<synchronous>, transform_indices = @transform_2, window_bounds = array<i64: 32, 128>}, {pipeline_mode = #tpu.pipeline_mode<synchronous>, transform_indices = @transform_3, window_bounds = array<i64: 1, 128>}, {transform_indices = @transform_4, window_bounds = array<i64: 8, 128>}]} {
    %c0_i32 = arith.constant 0 : i32
    %0 = arith.cmpi eq, %arg1, %c0_i32 : i32
    %1 = arith.extui %0 : i1 to i32
    %c0_i32_0 = arith.constant 0 : i32
    %2 = arith.cmpi ne, %1, %c0_i32_0 : i32
    scf.if %2 {
      %cst_163 = arith.constant 0.000000e+00 : f32
      %314 = vector.broadcast %cst_163 : f32 to vector<8x32xf32>
      %c0_164 = arith.constant 0 : index
      %c0_165 = arith.constant 0 : index
      %315 = vector.load %arg7[%c0_164, %c0_165] : memref<8x32xf32, #tpu.memory_space<vmem>>, vector<8x32xf32>
      tpu.vector_store %arg7[%c0_164, %c0_165], %314 {strides = array<i32>} : memref<8x32xf32, #tpu.memory_space<vmem>>, vector<8x32xf32>,
      %cst_166 = arith.constant 0.000000e+00 : f32
      %316 = vector.broadcast %cst_166 : f32 to vector<8x32xf32>
      %c0_167 = arith.constant 0 : index
      %c0_168 = arith.constant 0 : index
      %317 = vector.load %arg8[%c0_167, %c0_168] : memref<8x32xf32, #tpu.memory_space<vmem>>, vector<8x32xf32>
      tpu.vector_store %arg8[%c0_167, %c0_168], %316 {strides = array<i32>} : memref<8x32xf32, #tpu.memory_space<vmem>>, vector<8x32xf32>,
    } else {
    }
    %c0 = arith.constant 0 : index
    %c0_1 = arith.constant 0 : index
    %c0_2 = arith.constant 0 : index
    %3 = vector.load %arg3[%c0, %c0_1, %c0_2] : memref<4x32x32xf32, #tpu.memory_space<vmem>>, vector<1x32x32xf32>
    %4 = vector.shape_cast %3 : vector<1x32x32xf32> to vector<32x32xf32>
    %c1 = arith.constant 1 : index
    %c0_3 = arith.constant 0 : index
    %c0_4 = arith.constant 0 : index
    %5 = vector.load %arg3[%c1, %c0_3, %c0_4] : memref<4x32x32xf32, #tpu.memory_space<vmem>>, vector<1x32x32xf32>
    %6 = vector.shape_cast %5 : vector<1x32x32xf32> to vector<32x32xf32>
    %c2 = arith.constant 2 : index
    %c0_5 = arith.constant 0 : index
    %c0_6 = arith.constant 0 : index
    %7 = vector.load %arg3[%c2, %c0_5, %c0_6] : memref<4x32x32xf32, #tpu.memory_space<vmem>>, vector<1x32x32xf32>
    %8 = vector.shape_cast %7 : vector<1x32x32xf32> to vector<32x32xf32>
    %c3 = arith.constant 3 : index
    %c0_7 = arith.constant 0 : index
    %c0_8 = arith.constant 0 : index
    %9 = vector.load %arg3[%c3, %c0_7, %c0_8] : memref<4x32x32xf32, #tpu.memory_space<vmem>>, vector<1x32x32xf32>
    %10 = vector.shape_cast %9 : vector<1x32x32xf32> to vector<32x32xf32>
    %c0_9 = arith.constant 0 : index
    %c0_10 = arith.constant 0 : index
    %11 = vector.load %arg7[%c0_9, %c0_10] : memref<8x32xf32, #tpu.memory_space<vmem>>, vector<8x32xf32>
    %c0_11 = arith.constant 0 : index
    %c0_12 = arith.constant 0 : index
    %12 = vector.load %arg8[%c0_11, %c0_12] : memref<8x32xf32, #tpu.memory_space<vmem>>, vector<8x32xf32>
    %c0_13 = arith.constant 0 : index
    %c0_14 = arith.constant 0 : index
    %c0_15 = arith.constant 0 : index
    %13 = vector.load %arg2[%c0_13, %c0_14, %c0_15] : memref<8x8x128xf32, #tpu.memory_space<vmem>>, vector<1x8x32xf32>
    %14 = vector.shape_cast %13 : vector<1x8x32xf32> to vector<8x32xf32>
    %cst = arith.constant dense<0.000000e+00> : vector<8x32xf32>
    %15 = tpu.matmul %11, %4, %cst {dimension_numbers = #tpu.dot_dimension_numbers<[1], [0], [0], [1], [0, 0, 1, 1], [], []>} : vector<8x32xf32>, vector<32x32xf32>, vector<8x32xf32> -> vector<8x32xf32>
    %16 = arith.addf %14, %15 : vector<8x32xf32>
    %17 = arith.negf %16 : vector<8x32xf32>
    %18 = math.exp %17 : vector<8x32xf32>
    %cst_16 = arith.constant 1.000000e+00 : f32
    %19 = vector.broadcast %cst_16 : f32 to vector<8x32xf32>
    %20 = arith.addf %19, %18 : vector<8x32xf32>
    %21 = arith.divf %19, %20 : vector<8x32xf32>
    %c0_17 = arith.constant 0 : index
    %c0_18 = arith.constant 0 : index
    %c32 = arith.constant 32 : index
    %22 = vector.load %arg2[%c0_17, %c0_18, %c32] : memref<8x8x128xf32, #tpu.memory_space<vmem>>, vector<1x8x32xf32>
    %23 = vector.shape_cast %22 : vector<1x8x32xf32> to vector<8x32xf32>
    %cst_19 = arith.constant dense<0.000000e+00> : vector<8x32xf32>
    %24 = tpu.matmul %11, %6, %cst_19 {dimension_numbers = #tpu.dot_dimension_numbers<[1], [0], [0], [1], [0, 0, 1, 1], [], []>} : vector<8x32xf32>, vector<32x32xf32>, vector<8x32xf32> -> vector<8x32xf32>
    %25 = arith.addf %23, %24 : vector<8x32xf32>
    %26 = arith.negf %25 : vector<8x32xf32>
    %27 = math.exp %26 : vector<8x32xf32>
    %cst_20 = arith.constant 1.000000e+00 : f32
    %28 = vector.broadcast %cst_20 : f32 to vector<8x32xf32>
    %29 = arith.addf %28, %27 : vector<8x32xf32>
    %30 = arith.divf %28, %29 : vector<8x32xf32>
    %c0_21 = arith.constant 0 : index
    %c0_22 = arith.constant 0 : index
    %c64 = arith.constant 64 : index
    %31 = vector.load %arg2[%c0_21, %c0_22, %c64] : memref<8x8x128xf32, #tpu.memory_space<vmem>>, vector<1x8x32xf32>
    %32 = vector.shape_cast %31 : vector<1x8x32xf32> to vector<8x32xf32>
    %cst_23 = arith.constant dense<0.000000e+00> : vector<8x32xf32>
    %33 = tpu.matmul %11, %8, %cst_23 {dimension_numbers = #tpu.dot_dimension_numbers<[1], [0], [0], [1], [0, 0, 1, 1], [], []>} : vector<8x32xf32>, vector<32x32xf32>, vector<8x32xf32> -> vector<8x32xf32>
    %34 = arith.addf %32, %33 : vector<8x32xf32>
    %35 = math.tanh %34 : vector<8x32xf32>
    %c0_24 = arith.constant 0 : index
    %c0_25 = arith.constant 0 : index
    %c96 = arith.constant 96 : index
    %36 = vector.load %arg2[%c0_24, %c0_25, %c96] : memref<8x8x128xf32, #tpu.memory_space<vmem>>, vector<1x8x32xf32>
    %37 = vector.shape_cast %36 : vector<1x8x32xf32> to vector<8x32xf32>
    %cst_26 = arith.constant dense<0.000000e+00> : vector<8x32xf32>
    %38 = tpu.matmul %11, %10, %cst_26 {dimension_numbers = #tpu.dot_dimension_numbers<[1], [0], [0], [1], [0, 0, 1, 1], [], []>} : vector<8x32xf32>, vector<32x32xf32>, vector<8x32xf32> -> vector<8x32xf32>
    %39 = arith.addf %37, %38 : vector<8x32xf32>
    %40 = arith.negf %39 : vector<8x32xf32>
    %41 = math.exp %40 : vector<8x32xf32>
    %cst_27 = arith.constant 1.000000e+00 : f32
    %42 = vector.broadcast %cst_27 : f32 to vector<8x32xf32>
    %43 = arith.addf %42, %41 : vector<8x32xf32>
    %44 = arith.divf %42, %43 : vector<8x32xf32>
    %45 = arith.mulf %30, %12 : vector<8x32xf32>
    %46 = arith.mulf %21, %35 : vector<8x32xf32>
    %47 = arith.addf %45, %46 : vector<8x32xf32>
    %48 = math.tanh %47 : vector<8x32xf32>
    %49 = arith.mulf %44, %48 : vector<8x32xf32>
    %c1_28 = arith.constant 1 : index
    %c0_29 = arith.constant 0 : index
    %c0_30 = arith.constant 0 : index
    %50 = vector.load %arg2[%c1_28, %c0_29, %c0_30] : memref<8x8x128xf32, #tpu.memory_space<vmem>>, vector<1x8x32xf32>
    %51 = vector.shape_cast %50 : vector<1x8x32xf32> to vector<8x32xf32>
    %cst_31 = arith.constant dense<0.000000e+00> : vector<8x32xf32>
    %52 = tpu.matmul %49, %4, %cst_31 {dimension_numbers = #tpu.dot_dimension_numbers<[1], [0], [0], [1], [0, 0, 1, 1], [], []>} : vector<8x32xf32>, vector<32x32xf32>, vector<8x32xf32> -> vector<8x32xf32>
    %53 = arith.addf %51, %52 : vector<8x32xf32>
    %54 = arith.negf %53 : vector<8x32xf32>
    %55 = math.exp %54 : vector<8x32xf32>
    %cst_32 = arith.constant 1.000000e+00 : f32
    %56 = vector.broadcast %cst_32 : f32 to vector<8x32xf32>
    %57 = arith.addf %56, %55 : vector<8x32xf32>
    %58 = arith.divf %56, %57 : vector<8x32xf32>
    %c1_33 = arith.constant 1 : index
    %c0_34 = arith.constant 0 : index
    %c32_35 = arith.constant 32 : index
    %59 = vector.load %arg2[%c1_33, %c0_34, %c32_35] : memref<8x8x128xf32, #tpu.memory_space<vmem>>, vector<1x8x32xf32>
    %60 = vector.shape_cast %59 : vector<1x8x32xf32> to vector<8x32xf32>
    %cst_36 = arith.constant dense<0.000000e+00> : vector<8x32xf32>
    %61 = tpu.matmul %49, %6, %cst_36 {dimension_numbers = #tpu.dot_dimension_numbers<[1], [0], [0], [1], [0, 0, 1, 1], [], []>} : vector<8x32xf32>, vector<32x32xf32>, vector<8x32xf32> -> vector<8x32xf32>
    %62 = arith.addf %60, %61 : vector<8x32xf32>
    %63 = arith.negf %62 : vector<8x32xf32>
    %64 = math.exp %63 : vector<8x32xf32>
    %cst_37 = arith.constant 1.000000e+00 : f32
    %65 = vector.broadcast %cst_37 : f32 to vector<8x32xf32>
    %66 = arith.addf %65, %64 : vector<8x32xf32>
    %67 = arith.divf %65, %66 : vector<8x32xf32>
    %c1_38 = arith.constant 1 : index
    %c0_39 = arith.constant 0 : index
    %c64_40 = arith.constant 64 : index
    %68 = vector.load %arg2[%c1_38, %c0_39, %c64_40] : memref<8x8x128xf32, #tpu.memory_space<vmem>>, vector<1x8x32xf32>
    %69 = vector.shape_cast %68 : vector<1x8x32xf32> to vector<8x32xf32>
    %cst_41 = arith.constant dense<0.000000e+00> : vector<8x32xf32>
    %70 = tpu.matmul %49, %8, %cst_41 {dimension_numbers = #tpu.dot_dimension_numbers<[1], [0], [0], [1], [0, 0, 1, 1], [], []>} : vector<8x32xf32>, vector<32x32xf32>, vector<8x32xf32> -> vector<8x32xf32>
    %71 = arith.addf %69, %70 : vector<8x32xf32>
    %72 = math.tanh %71 : vector<8x32xf32>
    %c1_42 = arith.constant 1 : index
    %c0_43 = arith.constant 0 : index
    %c96_44 = arith.constant 96 : index
    %73 = vector.load %arg2[%c1_42, %c0_43, %c96_44] : memref<8x8x128xf32, #tpu.memory_space<vmem>>, vector<1x8x32xf32>
    %74 = vector.shape_cast %73 : vector<1x8x32xf32> to vector<8x32xf32>
    %cst_45 = arith.constant dense<0.000000e+00> : vector<8x32xf32>
    %75 = tpu.matmul %49, %10, %cst_45 {dimension_numbers = #tpu.dot_dimension_numbers<[1], [0], [0], [1], [0, 0, 1, 1], [], []>} : vector<8x32xf32>, vector<32x32xf32>, vector<8x32xf32> -> vector<8x32xf32>
    %76 = arith.addf %74, %75 : vector<8x32xf32>
    %77 = arith.negf %76 : vector<8x32xf32>
    %78 = math.exp %77 : vector<8x32xf32>
    %cst_46 = arith.constant 1.000000e+00 : f32
    %79 = vector.broadcast %cst_46 : f32 to vector<8x32xf32>
    %80 = arith.addf %79, %78 : vector<8x32xf32>
    %81 = arith.divf %79, %80 : vector<8x32xf32>
    %82 = arith.mulf %67, %47 : vector<8x32xf32>
    %83 = arith.mulf %58, %72 : vector<8x32xf32>
    %84 = arith.addf %82, %83 : vector<8x32xf32>
    %85 = math.tanh %84 : vector<8x32xf32>
    %86 = arith.mulf %81, %85 : vector<8x32xf32>
    %c2_47 = arith.constant 2 : index
    %c0_48 = arith.constant 0 : index
    %c0_49 = arith.constant 0 : index
    %87 = vector.load %arg2[%c2_47, %c0_48, %c0_49] : memref<8x8x128xf32, #tpu.memory_space<vmem>>, vector<1x8x32xf32>
    %88 = vector.shape_cast %87 : vector<1x8x32xf32> to vector<8x32xf32>
    %cst_50 = arith.constant dense<0.000000e+00> : vector<8x32xf32>
    %89 = tpu.matmul %86, %4, %cst_50 {dimension_numbers = #tpu.dot_dimension_numbers<[1], [0], [0], [1], [0, 0, 1, 1], [], []>} : vector<8x32xf32>, vector<32x32xf32>, vector<8x32xf32> -> vector<8x32xf32>
    %90 = arith.addf %88, %89 : vector<8x32xf32>
    %91 = arith.negf %90 : vector<8x32xf32>
    %92 = math.exp %91 : vector<8x32xf32>
    %cst_51 = arith.constant 1.000000e+00 : f32
    %93 = vector.broadcast %cst_51 : f32 to vector<8x32xf32>
    %94 = arith.addf %93, %92 : vector<8x32xf32>
    %95 = arith.divf %93, %94 : vector<8x32xf32>
    %c2_52 = arith.constant 2 : index
    %c0_53 = arith.constant 0 : index
    %c32_54 = arith.constant 32 : index
    %96 = vector.load %arg2[%c2_52, %c0_53, %c32_54] : memref<8x8x128xf32, #tpu.memory_space<vmem>>, vector<1x8x32xf32>
    %97 = vector.shape_cast %96 : vector<1x8x32xf32> to vector<8x32xf32>
    %cst_55 = arith.constant dense<0.000000e+00> : vector<8x32xf32>
    %98 = tpu.matmul %86, %6, %cst_55 {dimension_numbers = #tpu.dot_dimension_numbers<[1], [0], [0], [1], [0, 0, 1, 1], [], []>} : vector<8x32xf32>, vector<32x32xf32>, vector<8x32xf32> -> vector<8x32xf32>
    %99 = arith.addf %97, %98 : vector<8x32xf32>
    %100 = arith.negf %99 : vector<8x32xf32>
    %101 = math.exp %100 : vector<8x32xf32>
    %cst_56 = arith.constant 1.000000e+00 : f32
    %102 = vector.broadcast %cst_56 : f32 to vector<8x32xf32>
    %103 = arith.addf %102, %101 : vector<8x32xf32>
    %104 = arith.divf %102, %103 : vector<8x32xf32>
    %c2_57 = arith.constant 2 : index
    %c0_58 = arith.constant 0 : index
    %c64_59 = arith.constant 64 : index
    %105 = vector.load %arg2[%c2_57, %c0_58, %c64_59] : memref<8x8x128xf32, #tpu.memory_space<vmem>>, vector<1x8x32xf32>
    %106 = vector.shape_cast %105 : vector<1x8x32xf32> to vector<8x32xf32>
    %cst_60 = arith.constant dense<0.000000e+00> : vector<8x32xf32>
    %107 = tpu.matmul %86, %8, %cst_60 {dimension_numbers = #tpu.dot_dimension_numbers<[1], [0], [0], [1], [0, 0, 1, 1], [], []>} : vector<8x32xf32>, vector<32x32xf32>, vector<8x32xf32> -> vector<8x32xf32>
    %108 = arith.addf %106, %107 : vector<8x32xf32>
    %109 = math.tanh %108 : vector<8x32xf32>
    %c2_61 = arith.constant 2 : index
    %c0_62 = arith.constant 0 : index
    %c96_63 = arith.constant 96 : index
    %110 = vector.load %arg2[%c2_61, %c0_62, %c96_63] : memref<8x8x128xf32, #tpu.memory_space<vmem>>, vector<1x8x32xf32>
    %111 = vector.shape_cast %110 : vector<1x8x32xf32> to vector<8x32xf32>
    %cst_64 = arith.constant dense<0.000000e+00> : vector<8x32xf32>
    %112 = tpu.matmul %86, %10, %cst_64 {dimension_numbers = #tpu.dot_dimension_numbers<[1], [0], [0], [1], [0, 0, 1, 1], [], []>} : vector<8x32xf32>, vector<32x32xf32>, vector<8x32xf32> -> vector<8x32xf32>
    %113 = arith.addf %111, %112 : vector<8x32xf32>
    %114 = arith.negf %113 : vector<8x32xf32>
    %115 = math.exp %114 : vector<8x32xf32>
    %cst_65 = arith.constant 1.000000e+00 : f32
    %116 = vector.broadcast %cst_65 : f32 to vector<8x32xf32>
    %117 = arith.addf %116, %115 : vector<8x32xf32>
    %118 = arith.divf %116, %117 : vector<8x32xf32>
    %119 = arith.mulf %104, %84 : vector<8x32xf32>
    %120 = arith.mulf %95, %109 : vector<8x32xf32>
    %121 = arith.addf %119, %120 : vector<8x32xf32>
    %122 = math.tanh %121 : vector<8x32xf32>
    %123 = arith.mulf %118, %122 : vector<8x32xf32>
    %c3_66 = arith.constant 3 : index
    %c0_67 = arith.constant 0 : index
    %c0_68 = arith.constant 0 : index
    %124 = vector.load %arg2[%c3_66, %c0_67, %c0_68] : memref<8x8x128xf32, #tpu.memory_space<vmem>>, vector<1x8x32xf32>
    %125 = vector.shape_cast %124 : vector<1x8x32xf32> to vector<8x32xf32>
    %cst_69 = arith.constant dense<0.000000e+00> : vector<8x32xf32>
    %126 = tpu.matmul %123, %4, %cst_69 {dimension_numbers = #tpu.dot_dimension_numbers<[1], [0], [0], [1], [0, 0, 1, 1], [], []>} : vector<8x32xf32>, vector<32x32xf32>, vector<8x32xf32> -> vector<8x32xf32>
    %127 = arith.addf %125, %126 : vector<8x32xf32>
    %128 = arith.negf %127 : vector<8x32xf32>
    %129 = math.exp %128 : vector<8x32xf32>
    %cst_70 = arith.constant 1.000000e+00 : f32
    %130 = vector.broadcast %cst_70 : f32 to vector<8x32xf32>
    %131 = arith.addf %130, %129 : vector<8x32xf32>
    %132 = arith.divf %130, %131 : vector<8x32xf32>
    %c3_71 = arith.constant 3 : index
    %c0_72 = arith.constant 0 : index
    %c32_73 = arith.constant 32 : index
    %133 = vector.load %arg2[%c3_71, %c0_72, %c32_73] : memref<8x8x128xf32, #tpu.memory_space<vmem>>, vector<1x8x32xf32>
    %134 = vector.shape_cast %133 : vector<1x8x32xf32> to vector<8x32xf32>
    %cst_74 = arith.constant dense<0.000000e+00> : vector<8x32xf32>
    %135 = tpu.matmul %123, %6, %cst_74 {dimension_numbers = #tpu.dot_dimension_numbers<[1], [0], [0], [1], [0, 0, 1, 1], [], []>} : vector<8x32xf32>, vector<32x32xf32>, vector<8x32xf32> -> vector<8x32xf32>
    %136 = arith.addf %134, %135 : vector<8x32xf32>
    %137 = arith.negf %136 : vector<8x32xf32>
    %138 = math.exp %137 : vector<8x32xf32>
    %cst_75 = arith.constant 1.000000e+00 : f32
    %139 = vector.broadcast %cst_75 : f32 to vector<8x32xf32>
    %140 = arith.addf %139, %138 : vector<8x32xf32>
    %141 = arith.divf %139, %140 : vector<8x32xf32>
    %c3_76 = arith.constant 3 : index
    %c0_77 = arith.constant 0 : index
    %c64_78 = arith.constant 64 : index
    %142 = vector.load %arg2[%c3_76, %c0_77, %c64_78] : memref<8x8x128xf32, #tpu.memory_space<vmem>>, vector<1x8x32xf32>
    %143 = vector.shape_cast %142 : vector<1x8x32xf32> to vector<8x32xf32>
    %cst_79 = arith.constant dense<0.000000e+00> : vector<8x32xf32>
    %144 = tpu.matmul %123, %8, %cst_79 {dimension_numbers = #tpu.dot_dimension_numbers<[1], [0], [0], [1], [0, 0, 1, 1], [], []>} : vector<8x32xf32>, vector<32x32xf32>, vector<8x32xf32> -> vector<8x32xf32>
    %145 = arith.addf %143, %144 : vector<8x32xf32>
    %146 = math.tanh %145 : vector<8x32xf32>
    %c3_80 = arith.constant 3 : index
    %c0_81 = arith.constant 0 : index
    %c96_82 = arith.constant 96 : index
    %147 = vector.load %arg2[%c3_80, %c0_81, %c96_82] : memref<8x8x128xf32, #tpu.memory_space<vmem>>, vector<1x8x32xf32>
    %148 = vector.shape_cast %147 : vector<1x8x32xf32> to vector<8x32xf32>
    %cst_83 = arith.constant dense<0.000000e+00> : vector<8x32xf32>
    %149 = tpu.matmul %123, %10, %cst_83 {dimension_numbers = #tpu.dot_dimension_numbers<[1], [0], [0], [1], [0, 0, 1, 1], [], []>} : vector<8x32xf32>, vector<32x32xf32>, vector<8x32xf32> -> vector<8x32xf32>
    %150 = arith.addf %148, %149 : vector<8x32xf32>
    %151 = arith.negf %150 : vector<8x32xf32>
    %152 = math.exp %151 : vector<8x32xf32>
    %cst_84 = arith.constant 1.000000e+00 : f32
    %153 = vector.broadcast %cst_84 : f32 to vector<8x32xf32>
    %154 = arith.addf %153, %152 : vector<8x32xf32>
    %155 = arith.divf %153, %154 : vector<8x32xf32>
    %156 = arith.mulf %141, %121 : vector<8x32xf32>
    %157 = arith.mulf %132, %146 : vector<8x32xf32>
    %158 = arith.addf %156, %157 : vector<8x32xf32>
    %159 = math.tanh %158 : vector<8x32xf32>
    %160 = arith.mulf %155, %159 : vector<8x32xf32>
    %c4 = arith.constant 4 : index
    %c0_85 = arith.constant 0 : index
    %c0_86 = arith.constant 0 : index
    %161 = vector.load %arg2[%c4, %c0_85, %c0_86] : memref<8x8x128xf32, #tpu.memory_space<vmem>>, vector<1x8x32xf32>
    %162 = vector.shape_cast %161 : vector<1x8x32xf32> to vector<8x32xf32>
    %cst_87 = arith.constant dense<0.000000e+00> : vector<8x32xf32>
    %163 = tpu.matmul %160, %4, %cst_87 {dimension_numbers = #tpu.dot_dimension_numbers<[1], [0], [0], [1], [0, 0, 1, 1], [], []>} : vector<8x32xf32>, vector<32x32xf32>, vector<8x32xf32> -> vector<8x32xf32>
    %164 = arith.addf %162, %163 : vector<8x32xf32>
    %165 = arith.negf %164 : vector<8x32xf32>
    %166 = math.exp %165 : vector<8x32xf32>
    %cst_88 = arith.constant 1.000000e+00 : f32
    %167 = vector.broadcast %cst_88 : f32 to vector<8x32xf32>
    %168 = arith.addf %167, %166 : vector<8x32xf32>
    %169 = arith.divf %167, %168 : vector<8x32xf32>
    %c4_89 = arith.constant 4 : index
    %c0_90 = arith.constant 0 : index
    %c32_91 = arith.constant 32 : index
    %170 = vector.load %arg2[%c4_89, %c0_90, %c32_91] : memref<8x8x128xf32, #tpu.memory_space<vmem>>, vector<1x8x32xf32>
    %171 = vector.shape_cast %170 : vector<1x8x32xf32> to vector<8x32xf32>
    %cst_92 = arith.constant dense<0.000000e+00> : vector<8x32xf32>
    %172 = tpu.matmul %160, %6, %cst_92 {dimension_numbers = #tpu.dot_dimension_numbers<[1], [0], [0], [1], [0, 0, 1, 1], [], []>} : vector<8x32xf32>, vector<32x32xf32>, vector<8x32xf32> -> vector<8x32xf32>
    %173 = arith.addf %171, %172 : vector<8x32xf32>
    %174 = arith.negf %173 : vector<8x32xf32>
    %175 = math.exp %174 : vector<8x32xf32>
    %cst_93 = arith.constant 1.000000e+00 : f32
    %176 = vector.broadcast %cst_93 : f32 to vector<8x32xf32>
    %177 = arith.addf %176, %175 : vector<8x32xf32>
    %178 = arith.divf %176, %177 : vector<8x32xf32>
    %c4_94 = arith.constant 4 : index
    %c0_95 = arith.constant 0 : index
    %c64_96 = arith.constant 64 : index
    %179 = vector.load %arg2[%c4_94, %c0_95, %c64_96] : memref<8x8x128xf32, #tpu.memory_space<vmem>>, vector<1x8x32xf32>
    %180 = vector.shape_cast %179 : vector<1x8x32xf32> to vector<8x32xf32>
    %cst_97 = arith.constant dense<0.000000e+00> : vector<8x32xf32>
    %181 = tpu.matmul %160, %8, %cst_97 {dimension_numbers = #tpu.dot_dimension_numbers<[1], [0], [0], [1], [0, 0, 1, 1], [], []>} : vector<8x32xf32>, vector<32x32xf32>, vector<8x32xf32> -> vector<8x32xf32>
    %182 = arith.addf %180, %181 : vector<8x32xf32>
    %183 = math.tanh %182 : vector<8x32xf32>
    %c4_98 = arith.constant 4 : index
    %c0_99 = arith.constant 0 : index
    %c96_100 = arith.constant 96 : index
    %184 = vector.load %arg2[%c4_98, %c0_99, %c96_100] : memref<8x8x128xf32, #tpu.memory_space<vmem>>, vector<1x8x32xf32>
    %185 = vector.shape_cast %184 : vector<1x8x32xf32> to vector<8x32xf32>
    %cst_101 = arith.constant dense<0.000000e+00> : vector<8x32xf32>
    %186 = tpu.matmul %160, %10, %cst_101 {dimension_numbers = #tpu.dot_dimension_numbers<[1], [0], [0], [1], [0, 0, 1, 1], [], []>} : vector<8x32xf32>, vector<32x32xf32>, vector<8x32xf32> -> vector<8x32xf32>
    %187 = arith.addf %185, %186 : vector<8x32xf32>
    %188 = arith.negf %187 : vector<8x32xf32>
    %189 = math.exp %188 : vector<8x32xf32>
    %cst_102 = arith.constant 1.000000e+00 : f32
    %190 = vector.broadcast %cst_102 : f32 to vector<8x32xf32>
    %191 = arith.addf %190, %189 : vector<8x32xf32>
    %192 = arith.divf %190, %191 : vector<8x32xf32>
    %193 = arith.mulf %178, %158 : vector<8x32xf32>
    %194 = arith.mulf %169, %183 : vector<8x32xf32>
    %195 = arith.addf %193, %194 : vector<8x32xf32>
    %196 = math.tanh %195 : vector<8x32xf32>
    %197 = arith.mulf %192, %196 : vector<8x32xf32>
    %c5 = arith.constant 5 : index
    %c0_103 = arith.constant 0 : index
    %c0_104 = arith.constant 0 : index
    %198 = vector.load %arg2[%c5, %c0_103, %c0_104] : memref<8x8x128xf32, #tpu.memory_space<vmem>>, vector<1x8x32xf32>
    %199 = vector.shape_cast %198 : vector<1x8x32xf32> to vector<8x32xf32>
    %cst_105 = arith.constant dense<0.000000e+00> : vector<8x32xf32>
    %200 = tpu.matmul %197, %4, %cst_105 {dimension_numbers = #tpu.dot_dimension_numbers<[1], [0], [0], [1], [0, 0, 1, 1], [], []>} : vector<8x32xf32>, vector<32x32xf32>, vector<8x32xf32> -> vector<8x32xf32>
    %201 = arith.addf %199, %200 : vector<8x32xf32>
    %202 = arith.negf %201 : vector<8x32xf32>
    %203 = math.exp %202 : vector<8x32xf32>
    %cst_106 = arith.constant 1.000000e+00 : f32
    %204 = vector.broadcast %cst_106 : f32 to vector<8x32xf32>
    %205 = arith.addf %204, %203 : vector<8x32xf32>
    %206 = arith.divf %204, %205 : vector<8x32xf32>
    %c5_107 = arith.constant 5 : index
    %c0_108 = arith.constant 0 : index
    %c32_109 = arith.constant 32 : index
    %207 = vector.load %arg2[%c5_107, %c0_108, %c32_109] : memref<8x8x128xf32, #tpu.memory_space<vmem>>, vector<1x8x32xf32>
    %208 = vector.shape_cast %207 : vector<1x8x32xf32> to vector<8x32xf32>
    %cst_110 = arith.constant dense<0.000000e+00> : vector<8x32xf32>
    %209 = tpu.matmul %197, %6, %cst_110 {dimension_numbers = #tpu.dot_dimension_numbers<[1], [0], [0], [1], [0, 0, 1, 1], [], []>} : vector<8x32xf32>, vector<32x32xf32>, vector<8x32xf32> -> vector<8x32xf32>
    %210 = arith.addf %208, %209 : vector<8x32xf32>
    %211 = arith.negf %210 : vector<8x32xf32>
    %212 = math.exp %211 : vector<8x32xf32>
    %cst_111 = arith.constant 1.000000e+00 : f32
    %213 = vector.broadcast %cst_111 : f32 to vector<8x32xf32>
    %214 = arith.addf %213, %212 : vector<8x32xf32>
    %215 = arith.divf %213, %214 : vector<8x32xf32>
    %c5_112 = arith.constant 5 : index
    %c0_113 = arith.constant 0 : index
    %c64_114 = arith.constant 64 : index
    %216 = vector.load %arg2[%c5_112, %c0_113, %c64_114] : memref<8x8x128xf32, #tpu.memory_space<vmem>>, vector<1x8x32xf32>
    %217 = vector.shape_cast %216 : vector<1x8x32xf32> to vector<8x32xf32>
    %cst_115 = arith.constant dense<0.000000e+00> : vector<8x32xf32>
    %218 = tpu.matmul %197, %8, %cst_115 {dimension_numbers = #tpu.dot_dimension_numbers<[1], [0], [0], [1], [0, 0, 1, 1], [], []>} : vector<8x32xf32>, vector<32x32xf32>, vector<8x32xf32> -> vector<8x32xf32>
    %219 = arith.addf %217, %218 : vector<8x32xf32>
    %220 = math.tanh %219 : vector<8x32xf32>
    %c5_116 = arith.constant 5 : index
    %c0_117 = arith.constant 0 : index
    %c96_118 = arith.constant 96 : index
    %221 = vector.load %arg2[%c5_116, %c0_117, %c96_118] : memref<8x8x128xf32, #tpu.memory_space<vmem>>, vector<1x8x32xf32>
    %222 = vector.shape_cast %221 : vector<1x8x32xf32> to vector<8x32xf32>
    %cst_119 = arith.constant dense<0.000000e+00> : vector<8x32xf32>
    %223 = tpu.matmul %197, %10, %cst_119 {dimension_numbers = #tpu.dot_dimension_numbers<[1], [0], [0], [1], [0, 0, 1, 1], [], []>} : vector<8x32xf32>, vector<32x32xf32>, vector<8x32xf32> -> vector<8x32xf32>
    %224 = arith.addf %222, %223 : vector<8x32xf32>
    %225 = arith.negf %224 : vector<8x32xf32>
    %226 = math.exp %225 : vector<8x32xf32>
    %cst_120 = arith.constant 1.000000e+00 : f32
    %227 = vector.broadcast %cst_120 : f32 to vector<8x32xf32>
    %228 = arith.addf %227, %226 : vector<8x32xf32>
    %229 = arith.divf %227, %228 : vector<8x32xf32>
    %230 = arith.mulf %215, %195 : vector<8x32xf32>
    %231 = arith.mulf %206, %220 : vector<8x32xf32>
    %232 = arith.addf %230, %231 : vector<8x32xf32>
    %233 = math.tanh %232 : vector<8x32xf32>
    %234 = arith.mulf %229, %233 : vector<8x32xf32>
    %c6 = arith.constant 6 : index
    %c0_121 = arith.constant 0 : index
    %c0_122 = arith.constant 0 : index
    %235 = vector.load %arg2[%c6, %c0_121, %c0_122] : memref<8x8x128xf32, #tpu.memory_space<vmem>>, vector<1x8x32xf32>
    %236 = vector.shape_cast %235 : vector<1x8x32xf32> to vector<8x32xf32>
    %cst_123 = arith.constant dense<0.000000e+00> : vector<8x32xf32>
    %237 = tpu.matmul %234, %4, %cst_123 {dimension_numbers = #tpu.dot_dimension_numbers<[1], [0], [0], [1], [0, 0, 1, 1], [], []>} : vector<8x32xf32>, vector<32x32xf32>, vector<8x32xf32> -> vector<8x32xf32>
    %238 = arith.addf %236, %237 : vector<8x32xf32>
    %239 = arith.negf %238 : vector<8x32xf32>
    %240 = math.exp %239 : vector<8x32xf32>
    %cst_124 = arith.constant 1.000000e+00 : f32
    %241 = vector.broadcast %cst_124 : f32 to vector<8x32xf32>
    %242 = arith.addf %241, %240 : vector<8x32xf32>
    %243 = arith.divf %241, %242 : vector<8x32xf32>
    %c6_125 = arith.constant 6 : index
    %c0_126 = arith.constant 0 : index
    %c32_127 = arith.constant 32 : index
    %244 = vector.load %arg2[%c6_125, %c0_126, %c32_127] : memref<8x8x128xf32, #tpu.memory_space<vmem>>, vector<1x8x32xf32>
    %245 = vector.shape_cast %244 : vector<1x8x32xf32> to vector<8x32xf32>
    %cst_128 = arith.constant dense<0.000000e+00> : vector<8x32xf32>
    %246 = tpu.matmul %234, %6, %cst_128 {dimension_numbers = #tpu.dot_dimension_numbers<[1], [0], [0], [1], [0, 0, 1, 1], [], []>} : vector<8x32xf32>, vector<32x32xf32>, vector<8x32xf32> -> vector<8x32xf32>
    %247 = arith.addf %245, %246 : vector<8x32xf32>
    %248 = arith.negf %247 : vector<8x32xf32>
    %249 = math.exp %248 : vector<8x32xf32>
    %cst_129 = arith.constant 1.000000e+00 : f32
    %250 = vector.broadcast %cst_129 : f32 to vector<8x32xf32>
    %251 = arith.addf %250, %249 : vector<8x32xf32>
    %252 = arith.divf %250, %251 : vector<8x32xf32>
    %c6_130 = arith.constant 6 : index
    %c0_131 = arith.constant 0 : index
    %c64_132 = arith.constant 64 : index
    %253 = vector.load %arg2[%c6_130, %c0_131, %c64_132] : memref<8x8x128xf32, #tpu.memory_space<vmem>>, vector<1x8x32xf32>
    %254 = vector.shape_cast %253 : vector<1x8x32xf32> to vector<8x32xf32>
    %cst_133 = arith.constant dense<0.000000e+00> : vector<8x32xf32>
    %255 = tpu.matmul %234, %8, %cst_133 {dimension_numbers = #tpu.dot_dimension_numbers<[1], [0], [0], [1], [0, 0, 1, 1], [], []>} : vector<8x32xf32>, vector<32x32xf32>, vector<8x32xf32> -> vector<8x32xf32>
    %256 = arith.addf %254, %255 : vector<8x32xf32>
    %257 = math.tanh %256 : vector<8x32xf32>
    %c6_134 = arith.constant 6 : index
    %c0_135 = arith.constant 0 : index
    %c96_136 = arith.constant 96 : index
    %258 = vector.load %arg2[%c6_134, %c0_135, %c96_136] : memref<8x8x128xf32, #tpu.memory_space<vmem>>, vector<1x8x32xf32>
    %259 = vector.shape_cast %258 : vector<1x8x32xf32> to vector<8x32xf32>
    %cst_137 = arith.constant dense<0.000000e+00> : vector<8x32xf32>
    %260 = tpu.matmul %234, %10, %cst_137 {dimension_numbers = #tpu.dot_dimension_numbers<[1], [0], [0], [1], [0, 0, 1, 1], [], []>} : vector<8x32xf32>, vector<32x32xf32>, vector<8x32xf32> -> vector<8x32xf32>
    %261 = arith.addf %259, %260 : vector<8x32xf32>
    %262 = arith.negf %261 : vector<8x32xf32>
    %263 = math.exp %262 : vector<8x32xf32>
    %cst_138 = arith.constant 1.000000e+00 : f32
    %264 = vector.broadcast %cst_138 : f32 to vector<8x32xf32>
    %265 = arith.addf %264, %263 : vector<8x32xf32>
    %266 = arith.divf %264, %265 : vector<8x32xf32>
    %267 = arith.mulf %252, %232 : vector<8x32xf32>
    %268 = arith.mulf %243, %257 : vector<8x32xf32>
    %269 = arith.addf %267, %268 : vector<8x32xf32>
    %270 = math.tanh %269 : vector<8x32xf32>
    %271 = arith.mulf %266, %270 : vector<8x32xf32>
    %c7 = arith.constant 7 : index
    %c0_139 = arith.constant 0 : index
    %c0_140 = arith.constant 0 : index
    %272 = vector.load %arg2[%c7, %c0_139, %c0_140] : memref<8x8x128xf32, #tpu.memory_space<vmem>>, vector<1x8x32xf32>
    %273 = vector.shape_cast %272 : vector<1x8x32xf32> to vector<8x32xf32>
    %cst_141 = arith.constant dense<0.000000e+00> : vector<8x32xf32>
    %274 = tpu.matmul %271, %4, %cst_141 {dimension_numbers = #tpu.dot_dimension_numbers<[1], [0], [0], [1], [0, 0, 1, 1], [], []>} : vector<8x32xf32>, vector<32x32xf32>, vector<8x32xf32> -> vector<8x32xf32>
    %275 = arith.addf %273, %274 : vector<8x32xf32>
    %276 = arith.negf %275 : vector<8x32xf32>
    %277 = math.exp %276 : vector<8x32xf32>
    %cst_142 = arith.constant 1.000000e+00 : f32
    %278 = vector.broadcast %cst_142 : f32 to vector<8x32xf32>
    %279 = arith.addf %278, %277 : vector<8x32xf32>
    %280 = arith.divf %278, %279 : vector<8x32xf32>
    %c7_143 = arith.constant 7 : index
    %c0_144 = arith.constant 0 : index
    %c32_145 = arith.constant 32 : index
    %281 = vector.load %arg2[%c7_143, %c0_144, %c32_145] : memref<8x8x128xf32, #tpu.memory_space<vmem>>, vector<1x8x32xf32>
    %282 = vector.shape_cast %281 : vector<1x8x32xf32> to vector<8x32xf32>
    %cst_146 = arith.constant dense<0.000000e+00> : vector<8x32xf32>
    %283 = tpu.matmul %271, %6, %cst_146 {dimension_numbers = #tpu.dot_dimension_numbers<[1], [0], [0], [1], [0, 0, 1, 1], [], []>} : vector<8x32xf32>, vector<32x32xf32>, vector<8x32xf32> -> vector<8x32xf32>
    %284 = arith.addf %282, %283 : vector<8x32xf32>
    %285 = arith.negf %284 : vector<8x32xf32>
    %286 = math.exp %285 : vector<8x32xf32>
    %cst_147 = arith.constant 1.000000e+00 : f32
    %287 = vector.broadcast %cst_147 : f32 to vector<8x32xf32>
    %288 = arith.addf %287, %286 : vector<8x32xf32>
    %289 = arith.divf %287, %288 : vector<8x32xf32>
    %c7_148 = arith.constant 7 : index
    %c0_149 = arith.constant 0 : index
    %c64_150 = arith.constant 64 : index
    %290 = vector.load %arg2[%c7_148, %c0_149, %c64_150] : memref<8x8x128xf32, #tpu.memory_space<vmem>>, vector<1x8x32xf32>
    %291 = vector.shape_cast %290 : vector<1x8x32xf32> to vector<8x32xf32>
    %cst_151 = arith.constant dense<0.000000e+00> : vector<8x32xf32>
    %292 = tpu.matmul %271, %8, %cst_151 {dimension_numbers = #tpu.dot_dimension_numbers<[1], [0], [0], [1], [0, 0, 1, 1], [], []>} : vector<8x32xf32>, vector<32x32xf32>, vector<8x32xf32> -> vector<8x32xf32>
    %293 = arith.addf %291, %292 : vector<8x32xf32>
    %294 = math.tanh %293 : vector<8x32xf32>
    %c7_152 = arith.constant 7 : index
    %c0_153 = arith.constant 0 : index
    %c96_154 = arith.constant 96 : index
    %295 = vector.load %arg2[%c7_152, %c0_153, %c96_154] : memref<8x8x128xf32, #tpu.memory_space<vmem>>, vector<1x8x32xf32>
    %296 = vector.shape_cast %295 : vector<1x8x32xf32> to vector<8x32xf32>
    %cst_155 = arith.constant dense<0.000000e+00> : vector<8x32xf32>
    %297 = tpu.matmul %271, %10, %cst_155 {dimension_numbers = #tpu.dot_dimension_numbers<[1], [0], [0], [1], [0, 0, 1, 1], [], []>} : vector<8x32xf32>, vector<32x32xf32>, vector<8x32xf32> -> vector<8x32xf32>
    %298 = arith.addf %296, %297 : vector<8x32xf32>
    %299 = arith.negf %298 : vector<8x32xf32>
    %300 = math.exp %299 : vector<8x32xf32>
    %cst_156 = arith.constant 1.000000e+00 : f32
    %301 = vector.broadcast %cst_156 : f32 to vector<8x32xf32>
    %302 = arith.addf %301, %300 : vector<8x32xf32>
    %303 = arith.divf %301, %302 : vector<8x32xf32>
    %304 = arith.mulf %289, %269 : vector<8x32xf32>
    %305 = arith.mulf %280, %294 : vector<8x32xf32>
    %306 = arith.addf %304, %305 : vector<8x32xf32>
    %307 = math.tanh %306 : vector<8x32xf32>
    %308 = arith.mulf %303, %307 : vector<8x32xf32>
    %c0_157 = arith.constant 0 : index
    %c0_158 = arith.constant 0 : index
    %309 = vector.load %arg7[%c0_157, %c0_158] : memref<8x32xf32, #tpu.memory_space<vmem>>, vector<8x32xf32>
    tpu.vector_store %arg7[%c0_157, %c0_158], %308 {strides = array<i32>} : memref<8x32xf32, #tpu.memory_space<vmem>>, vector<8x32xf32>,
    %c0_159 = arith.constant 0 : index
    %c0_160 = arith.constant 0 : index
    %310 = vector.load %arg8[%c0_159, %c0_160] : memref<8x32xf32, #tpu.memory_space<vmem>>, vector<8x32xf32>
    tpu.vector_store %arg8[%c0_159, %c0_160], %306 {strides = array<i32>} : memref<8x32xf32, #tpu.memory_space<vmem>>, vector<8x32xf32>,
    %c0_i32_161 = arith.constant 0 : i32
    %311 = arith.cmpi eq, %arg1, %c0_i32_161 : i32
    %312 = arith.extui %311 : i1 to i32
    %c0_i32_162 = arith.constant 0 : i32
    %313 = arith.cmpi ne, %312, %c0_i32_162 : i32
    scf.if %313 {
      %c0_163 = arith.constant 0 : index
      %c0_164 = arith.constant 0 : index
      %314 = vector.load %arg4[%c0_163, %c0_164] : memref<32x128xf32, #tpu.memory_space<vmem>>, vector<32x128xf32>
      %cst_165 = arith.constant dense<0.000000e+00> : vector<8x128xf32>
      %315 = tpu.matmul %308, %314, %cst_165 {dimension_numbers = #tpu.dot_dimension_numbers<[1], [0], [0], [1], [0, 0, 1, 1], [], []>} : vector<8x32xf32>, vector<32x128xf32>, vector<8x128xf32> -> vector<8x128xf32>
      %c0_166 = arith.constant 0 : index
      %c0_167 = arith.constant 0 : index
      %316 = vector.load %arg5[%c0_166, %c0_167] : memref<1x128xf32, #tpu.memory_space<vmem>>, vector<1x128xf32>
      %317 = vector.broadcast %316 : vector<1x128xf32> to vector<8x128xf32>
      %318 = arith.addf %315, %317 : vector<8x128xf32>
      %319 = arith.negf %318 : vector<8x128xf32>
      %320 = math.exp %319 : vector<8x128xf32>
      %cst_168 = arith.constant 1.000000e+00 : f32
      %321 = vector.broadcast %cst_168 : f32 to vector<8x128xf32>
      %322 = arith.addf %321, %320 : vector<8x128xf32>
      %323 = arith.divf %321, %322 : vector<8x128xf32>
      %c0_169 = arith.constant 0 : index
      %c0_170 = arith.constant 0 : index
      %324 = vector.load %arg6[%c0_169, %c0_170] : memref<8x128xf32, #tpu.memory_space<vmem>>, vector<8x128xf32>
      tpu.vector_store %arg6[%c0_169, %c0_170], %323 {strides = array<i32>} : memref<8x128xf32, #tpu.memory_space<vmem>>, vector<8x128xf32>,
    } else {
    }
    return
  }
  func.func @transform_0(%arg0: i32, %arg1: i32) -> (i32, i32, i32) {
    %c0_i32 = arith.constant 0 : i32
    %c0_i32_0 = arith.constant 0 : i32
    return %arg1, %arg0, %c0_i32 : i32, i32, i32
  }
  func.func @transform_1(%arg0: i32, %arg1: i32) -> (i32, i32, i32) {
    %c0_i32 = arith.constant 0 : i32
    %c0_i32_0 = arith.constant 0 : i32
    %c0_i32_1 = arith.constant 0 : i32
    %c0_i32_2 = arith.constant 0 : i32
    return %c0_i32, %c0_i32_0, %c0_i32_1 : i32, i32, i32
  }
  func.func @transform_2(%arg0: i32, %arg1: i32) -> (i32, i32) {
    %c0_i32 = arith.constant 0 : i32
    %c0_i32_0 = arith.constant 0 : i32
    %c0_i32_1 = arith.constant 0 : i32
    return %c0_i32, %c0_i32_0 : i32, i32
  }
  func.func @transform_3(%arg0: i32, %arg1: i32) -> (i32, i32) {
    %c0_i32 = arith.constant 0 : i32
    %c0_i32_0 = arith.constant 0 : i32
    %c0_i32_1 = arith.constant 0 : i32
    return %c0_i32, %c0_i32_0 : i32, i32
  }
  func.func @transform_4(%arg0: i32, %arg1: i32) -> (i32, i32) {
    %c0_i32 = arith.constant 0 : i32
    %c0_i32_0 = arith.constant 0 : i32
    return %arg0, %c0_i32 : i32, i32
  }
}

</mosaic_0001>

<llo_original>
// kernel: candle_lstm_forward.1
$region0: #{candle_lstm_forward.1}
  #allocation0 [shape = 'u32[]', space=smem, size = 0x4, offset = 0x4, fixed_abs, tag = 'smem constant byte address 0x4 - core index']
  #allocation1 [shape = 'u32[144,128]{1,0:T(1,128)}', space=vmem, size = 0x12000, scoped, tag = 'internal scratch']
  #allocation2 [shape = 'f32[8,32]{1,0:T(8,128)}', space=vmem, size = 0x1000, scoped, tag = 'scratch operand']
  #allocation3 [shape = 'f32[8,32]{1,0:T(8,128)}', space=vmem, size = 0x1000, scoped, tag = 'scratch operand']
  %s0 = inlined_call_operand.vmem [shape: f32[8,8,128], index: 0, kind: input, shape index: {}]
  %s1 = inlined_call_operand.vmem [shape: f32[4,32,32], index: 1, kind: input, shape index: {}]
  %s2 = inlined_call_operand.vmem [shape: f32[32,128], index: 2, kind: input, shape index: {}]
  %s3 = inlined_call_operand.vmem [shape: f32[1,128], index: 3, kind: input, shape index: {}]
  %s4 = inlined_call_operand.vmem [shape: f32[8,128], index: 4, kind: output, shape index: {}]
  %s5 = sld [smem:[#allocation0]]
  $region34: #{candle_lstm_forward.1} parent=0
    _
  %s7 = ssub.s32 1, %s5
  %s8 = scalar_select 0, %s7, %s5
  // Predicated region
  $region2: #{candle_lstm_forward.1} parent=0 // pred_check
    _
  $region3: #{candle_lstm_forward.1} parent=0 // pred_check_branch
    %10 = sbr.rel (0) target = $region5
  $region4: #{candle_lstm_forward.1} parent=0 // pred_region
    _
  $region5: #{candle_lstm_forward.1} parent=0 // pred_fallthru
    _
  // Predicated region
  $region6: #{candle_lstm_forward.1} parent=0 // pred_check
    _
  $region7: #{candle_lstm_forward.1} parent=0 // pred_check_branch
    %12 = sbr.rel (0) target = $region9
  $region8: #{candle_lstm_forward.1} parent=0 // pred_region
    _
  $region9: #{candle_lstm_forward.1} parent=0 // pred_fallthru
    _
  // Predicated region
  $region10: #{candle_lstm_forward.1} parent=0 // pred_check
    _
  $region11: #{candle_lstm_forward.1} parent=0 // pred_check_branch
    %14 = sbr.rel (0) target = $region13
  $region12: #{candle_lstm_forward.1} parent=0 // pred_region
    _
  $region13: #{candle_lstm_forward.1} parent=0 // pred_fallthru
    _
  // Predicated region
  $region14: #{candle_lstm_forward.1} parent=0 // pred_check
    _
  $region15: #{candle_lstm_forward.1} parent=0 // pred_check_branch
    %16 = sbr.rel (0) target = $region17
  $region16: #{candle_lstm_forward.1} parent=0 // pred_region
    _
  $region17: #{candle_lstm_forward.1} parent=0 // pred_fallthru
    _
  %p17 = scmp.eq.s32.totalorder 0, 0
  // Predicated region
  $region18: #{candle_lstm_forward.1} parent=0 // pred_check
    %p18 = pneg %p17
  $region19: #{candle_lstm_forward.1} parent=0 // pred_check_branch
    %20 = sbr.rel (%p18) target = $region21
  $region20: #{candle_lstm_forward.1} parent=0 // pred_region
    %vm21 = vcmask 261120
    %22 = vst.msk [vmem:[#allocation2] sm:$0xff] %vm21, 0.0
    %23 = vst.msk [vmem:[#allocation3] sm:$0xff] %vm21, 0.0
  $region21: #{candle_lstm_forward.1} parent=0 // pred_fallthru
    _
  %v24 = vld [vmem:[%s1] sm:$0xff]
  %v25 = vld [vmem:[%s1 + $0x8] sm:$0xff]
  %v26 = vld [vmem:[%s1 + $0x10] sm:$0xff]
  %v27 = vld [vmem:[%s1 + $0x18] sm:$0xff]
  %s28 = scalar_lea.vmem %s1, 32
  %v29 = vld [vmem:[%s28] sm:$0xff]
  %v30 = vld [vmem:[%s28 + $0x8] sm:$0xff]
  %v31 = vld [vmem:[%s28 + $0x10] sm:$0xff]
  %v32 = vld [vmem:[%s28 + $0x18] sm:$0xff]
  %s33 = scalar_lea.vmem %s1, 64
  %v34 = vld [vmem:[%s33] sm:$0xff]
  %v35 = vld [vmem:[%s33 + $0x8] sm:$0xff]
  %v36 = vld [vmem:[%s33 + $0x10] sm:$0xff]
  %v37 = vld [vmem:[%s33 + $0x18] sm:$0xff]
  %s38 = scalar_lea.vmem %s1, 96
  %v39 = vld [vmem:[%s38] sm:$0xff]
  %v40 = vld [vmem:[%s38 + $0x8] sm:$0xff]
  %v41 = vld [vmem:[%s38 + $0x10] sm:$0xff]
  %v42 = vld [vmem:[%s38 + $0x18] sm:$0xff]
  %v43 = vld [vmem:[#allocation2] sm:$0xff]
  %v44 = vld [vmem:[#allocation3] sm:$0xff]
  %v45 = vld [vmem:[%s0] sm:$0xff]
  %vm46 = vcmask 261120
  %v48 = vsel %vm46, %v43, 0
  %50 = vmatprep.subr.mxu0 0.0
  %51 = vmatpush1.msra.mxu0 %v24
  %52 = vmatprep.subr.mxu0 0.0
  %53 = vmatpush1.msra.mxu0 %v25
  %54 = vmatprep.subr.mxu0 0.0
  %55 = vmatpush1.msra.mxu0 %v26
  %56 = vmatprep.subr.mxu0 0.0
  %57 = vmatpush1.msra.mxu0 %v27
  %58 = vmatprep.subr.mxu0 0.0
  %59 = vmatpush1.msra.mxu0 0.0
  %60 = vmatprep.subr.mxu0 0.0
  %61 = vmatpush1.msra.mxu0 0.0
  %62 = vmatprep.subr.mxu0 0.0
  %63 = vmatpush1.msra.mxu0 0.0
  %64 = vmatprep.subr.mxu0 0.0
  %65 = vmatpush1.msra.mxu0 0.0
  %66 = vmatprep.subr.mxu0 0.0
  %67 = vmatpush1.msra.mxu0 0.0
  %68 = vmatprep.subr.mxu0 0.0
  %69 = vmatpush1.msra.mxu0 0.0
  %70 = vmatprep.subr.mxu0 0.0
  %71 = vmatpush1.msra.mxu0 0.0
  %72 = vmatprep.subr.mxu0 0.0
  %73 = vmatpush1.msra.mxu0 0.0
  %74 = vmatprep.subr.mxu0 0.0
  %75 = vmatpush1.msra.mxu0 0.0
  %76 = vmatprep.subr.mxu0 0.0
  %77 = vmatpush1.msra.mxu0 0.0
  %78 = vmatprep.subr.mxu0 0.0
  %79 = vmatpush1.msra.mxu0 0.0
  %80 = vmatprep.subr.mxu0 0.0
  %81 = vmatpush1.msra.mxu0 0.0
  %82 = vmatprep.subr.mxu0 0.0
  %83 = vmatpush1.msra.mxu0 0.0
  %84 = vmatprep.subr.mxu0 0.0
  %85 = vmatpush1.msra.mxu0 0.0
  %86 = vmatprep.subr.mxu0 0.0
  %87 = vmatpush1.msra.mxu0 0.0
  %88 = vmatprep.subr.mxu0 0.0
  %89 = vmatpush1.msra.mxu0 0.0
  %90 = vmatprep.subr.mxu0 0.0
  %91 = vmatpush1.msra.mxu0 0.0
  %92 = vmatprep.subr.mxu0 0.0
  %93 = vmatpush1.msra.mxu0 0.0
  %94 = vmatprep.subr.mxu0 0.0
  %95 = vmatpush1.msra.mxu0 0.0
  %96 = vmatprep.subr.mxu0 0.0
  %97 = vmatpush1.msra.mxu0 0.0
  %98 = vmatprep.subr.mxu0 0.0
  %99 = vmatpush1.msra.mxu0 0.0
  %100 = vmatprep.subr.mxu0 0.0
  %101 = vmatpush1.msra.mxu0 0.0
  %102 = vmatprep.subr.mxu0 0.0
  %103 = vmatpush1.msra.mxu0 0.0
  %104 = vmatprep.subr.mxu0 0.0
  %105 = vmatpush1.msra.mxu0 0.0
  %106 = vmatprep.subr.mxu0 0.0
  %107 = vmatpush1.msra.mxu0 0.0
  %108 = vmatprep.subr.mxu0 0.0
  %109 = vmatpush1.msra.mxu0 0.0
  %110 = vmatprep.subr.mxu0 0.0
  %111 = vmatpush1.msra.mxu0 0.0
  %112 = vmatprep.subr.mxu0 0.0
  %113 = vmatpush1.msra.mxu0 0.0
  %114 = vmatprep.mubr.f32.mxu0 0.0
  %115 = vmatmul.mubr.f32.gmra.mrb[0].mxu0 %v48
  %v116 = vpop.f32.mrb[0].mxu0
  %v117 = vadd.f32 0.0, %v116
  %v118 = vpop.f32.mrb[0].mxu0
  %119 = vdwg.mxu0
  %v120 = vadd.f32 %v45, %v117
  %v121 = vxor.u32 %v120, 2147483648
  %v122 = vmul.f32 %v121, 1.442695
  %v123 = vpow.pop %v122
  %v124 = vadd.f32 %v123, 1.0
  %v125 = vrcp.pop %v124
  %v126 = vmul.f32 1.0, %v125
  %127 = vmatprep.subr.mxu0 0.0
  %128 = vmatpush1.msra.mxu0 %v29
  %129 = vmatprep.subr.mxu0 0.0
  %130 = vmatpush1.msra.mxu0 %v30
  %131 = vmatprep.subr.mxu0 0.0
  %132 = vmatpush1.msra.mxu0 %v31
  %133 = vmatprep.subr.mxu0 0.0
  %134 = vmatpush1.msra.mxu0 %v32
  %135 = vmatprep.subr.mxu0 0.0
  %136 = vmatpush1.msra.mxu0 0.0
  %137 = vmatprep.subr.mxu0 0.0
  %138 = vmatpush1.msra.mxu0 0.0
  %139 = vmatprep.subr.mxu0 0.0
  %140 = vmatpush1.msra.mxu0 0.0
  %141 = vmatprep.subr.mxu0 0.0
  %142 = vmatpush1.msra.mxu0 0.0
  %143 = vmatprep.subr.mxu0 0.0
  %144 = vmatpush1.msra.mxu0 0.0
  %145 = vmatprep.subr.mxu0 0.0
  %146 = vmatpush1.msra.mxu0 0.0
  %147 = vmatprep.subr.mxu0 0.0
  %148 = vmatpush1.msra.mxu0 0.0
  %149 = vmatprep.subr.mxu0 0.0
  %150 = vmatpush1.msra.mxu0 0.0
  %151 = vmatprep.subr.mxu0 0.0
  %152 = vmatpush1.msra.mxu0 0.0
  %153 = vmatprep.subr.mxu0 0.0
  %154 = vmatpush1.msra.mxu0 0.0
  %155 = vmatprep.subr.mxu0 0.0
  %156 = vmatpush1.msra.mxu0 0.0
  %157 = vmatprep.subr.mxu0 0.0
  %158 = vmatpush1.msra.mxu0 0.0
  %159 = vmatprep.subr.mxu0 0.0
  %160 = vmatpush1.msra.mxu0 0.0
  %161 = vmatprep.subr.mxu0 0.0
  %162 = vmatpush1.msra.mxu0 0.0
  %163 = vmatprep.subr.mxu0 0.0
  %164 = vmatpush1.msra.mxu0 0.0
  %165 = vmatprep.subr.mxu0 0.0
  %166 = vmatpush1.msra.mxu0 0.0
  %167 = vmatprep.subr.mxu0 0.0
  %168 = vmatpush1.msra.mxu0 0.0
  %169 = vmatprep.subr.mxu0 0.0
  %170 = vmatpush1.msra.mxu0 0.0
  %171 = vmatprep.subr.mxu0 0.0
  %172 = vmatpush1.msra.mxu0 0.0
  %173 = vmatprep.subr.mxu0 0.0
  %174 = vmatpush1.msra.mxu0 0.0
  %175 = vmatprep.subr.mxu0 0.0
  %176 = vmatpush1.msra.mxu0 0.0
  %177 = vmatprep.subr.mxu0 0.0
  %178 = vmatpush1.msra.mxu0 0.0
  %179 = vmatprep.subr.mxu0 0.0
  %180 = vmatpush1.msra.mxu0 0.0
  %181 = vmatprep.subr.mxu0 0.0
  %182 = vmatpush1.msra.mxu0 0.0
  %183 = vmatprep.subr.mxu0 0.0
  %184 = vmatpush1.msra.mxu0 0.0
  %185 = vmatprep.subr.mxu0 0.0
  %186 = vmatpush1.msra.mxu0 0.0
  %187 = vmatprep.subr.mxu0 0.0
  %188 = vmatpush1.msra.mxu0 0.0
  %189 = vmatprep.subr.mxu0 0.0
  %190 = vmatpush1.msra.mxu0 0.0
  %191 = vmatprep.mubr.f32.mxu0 0.0
  %192 = vmatmul.mubr.f32.gmra.mrb[0].mxu0 %v48
  %v193 = vpop.f32.mrb[0].mxu0
  %v194 = vadd.f32 0.0, %v193
  %v195 = vpop.f32.mrb[0].mxu0
  %196 = vdwg.mxu0
  %198 = vrot.lane.b32.xlu0 %v194, 32
  %v199 = vpop.permute.xlu0 %198
  %v201 = vadd.f32 %v45, %v199
  %v202 = vxor.u32 %v201, 2147483648
  %v203 = vmul.f32 %v202, 1.442695
  %v204 = vpow.pop %v203
  %v205 = vadd.f32 %v204, 1.0
  %v206 = vrcp.pop %v205
  %v207 = vmul.f32 1.0, %v206
  %208 = vmatprep.subr.mxu0 0.0
  %209 = vmatpush1.msra.mxu0 %v34
  %210 = vmatprep.subr.mxu0 0.0
  %211 = vmatpush1.msra.mxu0 %v35
  %212 = vmatprep.subr.mxu0 0.0
  %213 = vmatpush1.msra.mxu0 %v36
  %214 = vmatprep.subr.mxu0 0.0
  %215 = vmatpush1.msra.mxu0 %v37
  %216 = vmatprep.subr.mxu0 0.0
  %217 = vmatpush1.msra.mxu0 0.0
  %218 = vmatprep.subr.mxu0 0.0
  %219 = vmatpush1.msra.mxu0 0.0
  %220 = vmatprep.subr.mxu0 0.0
  %221 = vmatpush1.msra.mxu0 0.0
  %222 = vmatprep.subr.mxu0 0.0
  %223 = vmatpush1.msra.mxu0 0.0
  %224 = vmatprep.subr.mxu0 0.0
  %225 = vmatpush1.msra.mxu0 0.0
  %226 = vmatprep.subr.mxu0 0.0
  %227 = vmatpush1.msra.mxu0 0.0
  %228 = vmatprep.subr.mxu0 0.0
  %229 = vmatpush1.msra.mxu0 0.0
  %230 = vmatprep.subr.mxu0 0.0
  %231 = vmatpush1.msra.mxu0 0.0
  %232 = vmatprep.subr.mxu0 0.0
  %233 = vmatpush1.msra.mxu0 0.0
  %234 = vmatprep.subr.mxu0 0.0
  %235 = vmatpush1.msra.mxu0 0.0
  %236 = vmatprep.subr.mxu0 0.0
  %237 = vmatpush1.msra.mxu0 0.0
  %238 = vmatprep.subr.mxu0 0.0
  %239 = vmatpush1.msra.mxu0 0.0
  %240 = vmatprep.subr.mxu0 0.0
  %241 = vmatpush1.msra.mxu0 0.0
  %242 = vmatprep.subr.mxu0 0.0
  %243 = vmatpush1.msra.mxu0 0.0
  %244 = vmatprep.subr.mxu0 0.0
  %245 = vmatpush1.msra.mxu0 0.0
  %246 = vmatprep.subr.mxu0 0.0
  %247 = vmatpush1.msra.mxu0 0.0
  %248 = vmatprep.subr.mxu0 0.0
  %249 = vmatpush1.msra.mxu0 0.0
  %250 = vmatprep.subr.mxu0 0.0
  %251 = vmatpush1.msra.mxu0 0.0
  %252 = vmatprep.subr.mxu0 0.0
  %253 = vmatpush1.msra.mxu0 0.0
  %254 = vmatprep.subr.mxu0 0.0
  %255 = vmatpush1.msra.mxu0 0.0
  %256 = vmatprep.subr.mxu0 0.0
  %257 = vmatpush1.msra.mxu0 0.0
  %258 = vmatprep.subr.mxu0 0.0
  %259 = vmatpush1.msra.mxu0 0.0
  %260 = vmatprep.subr.mxu0 0.0
  %261 = vmatpush1.msra.mxu0 0.0
  %262 = vmatprep.subr.mxu0 0.0
  %263 = vmatpush1.msra.mxu0 0.0
  %264 = vmatprep.subr.mxu0 0.0
  %265 = vmatpush1.msra.mxu0 0.0
  %266 = vmatprep.subr.mxu0 0.0
  %267 = vmatpush1.msra.mxu0 0.0
  %268 = vmatprep.subr.mxu0 0.0
  %269 = vmatpush1.msra.mxu0 0.0
  %270 = vmatprep.subr.mxu0 0.0
  %271 = vmatpush1.msra.mxu0 0.0
  %272 = vmatprep.mubr.f32.mxu0 0.0
  %273 = vmatmul.mubr.f32.gmra.mrb[0].mxu0 %v48
  %v274 = vpop.f32.mrb[0].mxu0
  %v275 = vadd.f32 0.0, %v274
  %v276 = vpop.f32.mrb[0].mxu0
  %277 = vdwg.mxu0
  %279 = vrot.lane.b32.xlu0 %v275, 64
  %v280 = vpop.permute.xlu0 %279
  %v282 = vadd.f32 %v45, %v280
  %v283 = vtanh.pop %v282
  %284 = vmatprep.subr.mxu0 0.0
  %285 = vmatpush1.msra.mxu0 %v39
  %286 = vmatprep.subr.mxu0 0.0
  %287 = vmatpush1.msra.mxu0 %v40
  %288 = vmatprep.subr.mxu0 0.0
  %289 = vmatpush1.msra.mxu0 %v41
  %290 = vmatprep.subr.mxu0 0.0
  %291 = vmatpush1.msra.mxu0 %v42
  %292 = vmatprep.subr.mxu0 0.0
  %293 = vmatpush1.msra.mxu0 0.0
  %294 = vmatprep.subr.mxu0 0.0
  %295 = vmatpush1.msra.mxu0 0.0
  %296 = vmatprep.subr.mxu0 0.0
  %297 = vmatpush1.msra.mxu0 0.0
  %298 = vmatprep.subr.mxu0 0.0
  %299 = vmatpush1.msra.mxu0 0.0
  %300 = vmatprep.subr.mxu0 0.0
  %301 = vmatpush1.msra.mxu0 0.0
  %302 = vmatprep.subr.mxu0 0.0
  %303 = vmatpush1.msra.mxu0 0.0
  %304 = vmatprep.subr.mxu0 0.0
  %305 = vmatpush1.msra.mxu0 0.0
  %306 = vmatprep.subr.mxu0 0.0
  %307 = vmatpush1.msra.mxu0 0.0
  %308 = vmatprep.subr.mxu0 0.0
  %309 = vmatpush1.msra.mxu0 0.0
  %310 = vmatprep.subr.mxu0 0.0
  %311 = vmatpush1.msra.mxu0 0.0
  %312 = vmatprep.subr.mxu0 0.0
  %313 = vmatpush1.msra.mxu0 0.0
  %314 = vmatprep.subr.mxu0 0.0
  %315 = vmatpush1.msra.mxu0 0.0
  %316 = vmatprep.subr.mxu0 0.0
  %317 = vmatpush1.msra.mxu0 0.0
  %318 = vmatprep.subr.mxu0 0.0
  %319 = vmatpush1.msra.mxu0 0.0
  %320 = vmatprep.subr.mxu0 0.0
  %321 = vmatpush1.msra.mxu0 0.0
  %322 = vmatprep.subr.mxu0 0.0
  %323 = vmatpush1.msra.mxu0 0.0
  %324 = vmatprep.subr.mxu0 0.0
  %325 = vmatpush1.msra.mxu0 0.0
  %326 = vmatprep.subr.mxu0 0.0
  %327 = vmatpush1.msra.mxu0 0.0
  %328 = vmatprep.subr.mxu0 0.0
  %329 = vmatpush1.msra.mxu0 0.0
  %330 = vmatprep.subr.mxu0 0.0
  %331 = vmatpush1.msra.mxu0 0.0
  %332 = vmatprep.subr.mxu0 0.0
  %333 = vmatpush1.msra.mxu0 0.0
  %334 = vmatprep.subr.mxu0 0.0
  %335 = vmatpush1.msra.mxu0 0.0
  %336 = vmatprep.subr.mxu0 0.0
  %337 = vmatpush1.msra.mxu0 0.0
  %338 = vmatprep.subr.mxu0 0.0
  %339 = vmatpush1.msra.mxu0 0.0
  %340 = vmatprep.subr.mxu0 0.0
  %341 = vmatpush1.msra.mxu0 0.0
  %342 = vmatprep.subr.mxu0 0.0
  %343 = vmatpush1.msra.mxu0 0.0
  %344 = vmatprep.subr.mxu0 0.0
  %345 = vmatpush1.msra.mxu0 0.0
  %346 = vmatprep.subr.mxu0 0.0
  %347 = vmatpush1.msra.mxu0 0.0
  %348 = vmatprep.mubr.f32.mxu0 0.0
  %349 = vmatmul.mubr.f32.gmra.mrb[0].mxu0 %v48
  %v350 = vpop.f32.mrb[0].mxu0
  %v351 = vadd.f32 0.0, %v350
  %v352 = vpop.f32.mrb[0].mxu0
  %353 = vdwg.mxu0
  %355 = vrot.lane.b32.xlu0 %v351, 96
  %v356 = vpop.permute.xlu0 %355
  %v358 = vadd.f32 %v45, %v356
  %v359 = vxor.u32 %v358, 2147483648
  %v360 = vmul.f32 %v359, 1.442695
  %v361 = vpow.pop %v360
  %v362 = vadd.f32 %v361, 1.0
  %v363 = vrcp.pop %v362
  %v364 = vmul.f32 1.0, %v363
  %366 = vrot.lane.b32.xlu0 %v44, 32
  %v367 = vpop.permute.xlu0 %366
  %v369 = vmul.f32 %v207, %v367
  %371 = vrot.lane.b32.xlu0 %v283, 64
  %v372 = vpop.permute.xlu0 %371
  %v374 = vmul.f32 %v126, %v372
  %376 = vrot.lane.b32.xlu0 %v374, 32
  %v377 = vpop.permute.xlu0 %376
  %v379 = vadd.f32 %v369, %v377
  %v380 = vtanh.pop %v379
  %382 = vrot.lane.b32.xlu0 %v380, 64
  %v383 = vpop.permute.xlu0 %382
  %v385 = vmul.f32 %v364, %v383
  %s386 = scalar_lea.vmem %s0, 8
  %v387 = vld [vmem:[%s386] sm:$0xff]
  %389 = vrot.lane.b32.xlu0 %v385, 32
  %v390 = vpop.permute.xlu0 %389
  %v391 = vsel %vm46, %v390, 0
  %393 = vmatprep.subr.mxu0 0.0
  %394 = vmatpush1.msra.mxu0 %v24
  %395 = vmatprep.subr.mxu0 0.0
  %396 = vmatpush1.msra.mxu0 %v25
  %397 = vmatprep.subr.mxu0 0.0
  %398 = vmatpush1.msra.mxu0 %v26
  %399 = vmatprep.subr.mxu0 0.0
  %400 = vmatpush1.msra.mxu0 %v27
  %401 = vmatprep.subr.mxu0 0.0
  %402 = vmatpush1.msra.mxu0 0.0
  %403 = vmatprep.subr.mxu0 0.0
  %404 = vmatpush1.msra.mxu0 0.0
  %405 = vmatprep.subr.mxu0 0.0
  %406 = vmatpush1.msra.mxu0 0.0
  %407 = vmatprep.subr.mxu0 0.0
  %408 = vmatpush1.msra.mxu0 0.0
  %409 = vmatprep.subr.mxu0 0.0
  %410 = vmatpush1.msra.mxu0 0.0
  %411 = vmatprep.subr.mxu0 0.0
  %412 = vmatpush1.msra.mxu0 0.0
  %413 = vmatprep.subr.mxu0 0.0
  %414 = vmatpush1.msra.mxu0 0.0
  %415 = vmatprep.subr.mxu0 0.0
  %416 = vmatpush1.msra.mxu0 0.0
  %417 = vmatprep.subr.mxu0 0.0
  %418 = vmatpush1.msra.mxu0 0.0
  %419 = vmatprep.subr.mxu0 0.0
  %420 = vmatpush1.msra.mxu0 0.0
  %421 = vmatprep.subr.mxu0 0.0
  %422 = vmatpush1.msra.mxu0 0.0
  %423 = vmatprep.subr.mxu0 0.0
  %424 = vmatpush1.msra.mxu0 0.0
  %425 = vmatprep.subr.mxu0 0.0
  %426 = vmatpush1.msra.mxu0 0.0
  %427 = vmatprep.subr.mxu0 0.0
  %428 = vmatpush1.msra.mxu0 0.0
  %429 = vmatprep.subr.mxu0 0.0
  %430 = vmatpush1.msra.mxu0 0.0
  %431 = vmatprep.subr.mxu0 0.0
  %432 = vmatpush1.msra.mxu0 0.0
  %433 = vmatprep.subr.mxu0 0.0
  %434 = vmatpush1.msra.mxu0 0.0
  %435 = vmatprep.subr.mxu0 0.0
  %436 = vmatpush1.msra.mxu0 0.0
  %437 = vmatprep.subr.mxu0 0.0
  %438 = vmatpush1.msra.mxu0 0.0
  %439 = vmatprep.subr.mxu0 0.0
  %440 = vmatpush1.msra.mxu0 0.0
  %441 = vmatprep.subr.mxu0 0.0
  %442 = vmatpush1.msra.mxu0 0.0
  %443 = vmatprep.subr.mxu0 0.0
  %444 = vmatpush1.msra.mxu0 0.0
  %445 = vmatprep.subr.mxu0 0.0
  %446 = vmatpush1.msra.mxu0 0.0
  %447 = vmatprep.subr.mxu0 0.0
  %448 = vmatpush1.msra.mxu0 0.0
  %449 = vmatprep.subr.mxu0 0.0
  %450 = vmatpush1.msra.mxu0 0.0
  %451 = vmatprep.subr.mxu0 0.0
  %452 = vmatpush1.msra.mxu0 0.0
  %453 = vmatprep.subr.mxu0 0.0
  %454 = vmatpush1.msra.mxu0 0.0
  %455 = vmatprep.subr.mxu0 0.0
  %456 = vmatpush1.msra.mxu0 0.0
  %457 = vmatprep.mubr.f32.mxu0 0.0
  %458 = vmatmul.mubr.f32.gmra.mrb[0].mxu0 %v391
  %v459 = vpop.f32.mrb[0].mxu0
  %v460 = vadd.f32 0.0, %v459
  %v461 = vpop.f32.mrb[0].mxu0
  %462 = vdwg.mxu0
  %v463 = vadd.f32 %v387, %v460
  %v464 = vxor.u32 %v463, 2147483648
  %v465 = vmul.f32 %v464, 1.442695
  %v466 = vpow.pop %v465
  %v467 = vadd.f32 %v466, 1.0
  %v468 = vrcp.pop %v467
  %v469 = vmul.f32 1.0, %v468
  %470 = vmatprep.subr.mxu0 0.0
  %471 = vmatpush1.msra.mxu0 %v29
  %472 = vmatprep.subr.mxu0 0.0
  %473 = vmatpush1.msra.mxu0 %v30
  %474 = vmatprep.subr.mxu0 0.0
  %475 = vmatpush1.msra.mxu0 %v31
  %476 = vmatprep.subr.mxu0 0.0
  %477 = vmatpush1.msra.mxu0 %v32
  %478 = vmatprep.subr.mxu0 0.0
  %479 = vmatpush1.msra.mxu0 0.0
  %480 = vmatprep.subr.mxu0 0.0
  %481 = vmatpush1.msra.mxu0 0.0
  %482 = vmatprep.subr.mxu0 0.0
  %483 = vmatpush1.msra.mxu0 0.0
  %484 = vmatprep.subr.mxu0 0.0
  %485 = vmatpush1.msra.mxu0 0.0
  %486 = vmatprep.subr.mxu0 0.0
  %487 = vmatpush1.msra.mxu0 0.0
  %488 = vmatprep.subr.mxu0 0.0
  %489 = vmatpush1.msra.mxu0 0.0
  %490 = vmatprep.subr.mxu0 0.0
  %491 = vmatpush1.msra.mxu0 0.0
  %492 = vmatprep.subr.mxu0 0.0
  %493 = vmatpush1.msra.mxu0 0.0
  %494 = vmatprep.subr.mxu0 0.0
  %495 = vmatpush1.msra.mxu0 0.0
  %496 = vmatprep.subr.mxu0 0.0
  %497 = vmatpush1.msra.mxu0 0.0
  %498 = vmatprep.subr.mxu0 0.0
  %499 = vmatpush1.msra.mxu0 0.0
  %500 = vmatprep.subr.mxu0 0.0
  %501 = vmatpush1.msra.mxu0 0.0
  %502 = vmatprep.subr.mxu0 0.0
  %503 = vmatpush1.msra.mxu0 0.0
  %504 = vmatprep.subr.mxu0 0.0
  %505 = vmatpush1.msra.mxu0 0.0
  %506 = vmatprep.subr.mxu0 0.0
  %507 = vmatpush1.msra.mxu0 0.0
  %508 = vmatprep.subr.mxu0 0.0
  %509 = vmatpush1.msra.mxu0 0.0
  %510 = vmatprep.subr.mxu0 0.0
  %511 = vmatpush1.msra.mxu0 0.0
  %512 = vmatprep.subr.mxu0 0.0
  %513 = vmatpush1.msra.mxu0 0.0
  %514 = vmatprep.subr.mxu0 0.0
  %515 = vmatpush1.msra.mxu0 0.0
  %516 = vmatprep.subr.mxu0 0.0
  %517 = vmatpush1.msra.mxu0 0.0
  %518 = vmatprep.subr.mxu0 0.0
  %519 = vmatpush1.msra.mxu0 0.0
  %520 = vmatprep.subr.mxu0 0.0
  %521 = vmatpush1.msra.mxu0 0.0
  %522 = vmatprep.subr.mxu0 0.0
  %523 = vmatpush1.msra.mxu0 0.0
  %524 = vmatprep.subr.mxu0 0.0
  %525 = vmatpush1.msra.mxu0 0.0
  %526 = vmatprep.subr.mxu0 0.0
  %527 = vmatpush1.msra.mxu0 0.0
  %528 = vmatprep.subr.mxu0 0.0
  %529 = vmatpush1.msra.mxu0 0.0
  %530 = vmatprep.subr.mxu0 0.0
  %531 = vmatpush1.msra.mxu0 0.0
  %532 = vmatprep.subr.mxu0 0.0
  %533 = vmatpush1.msra.mxu0 0.0
  %534 = vmatprep.mubr.f32.mxu0 0.0
  %535 = vmatmul.mubr.f32.gmra.mrb[0].mxu0 %v391
  %v536 = vpop.f32.mrb[0].mxu0
  %v537 = vadd.f32 0.0, %v536
  %v538 = vpop.f32.mrb[0].mxu0
  %539 = vdwg.mxu0
  %541 = vrot.lane.b32.xlu0 %v537, 32
  %v542 = vpop.permute.xlu0 %541
  %v544 = vadd.f32 %v387, %v542
  %v545 = vxor.u32 %v544, 2147483648
  %v546 = vmul.f32 %v545, 1.442695
  %v547 = vpow.pop %v546
  %v548 = vadd.f32 %v547, 1.0
  %v549 = vrcp.pop %v548
  %v550 = vmul.f32 1.0, %v549
  %551 = vmatprep.subr.mxu0 0.0
  %552 = vmatpush1.msra.mxu0 %v34
  %553 = vmatprep.subr.mxu0 0.0
  %554 = vmatpush1.msra.mxu0 %v35
  %555 = vmatprep.subr.mxu0 0.0
  %556 = vmatpush1.msra.mxu0 %v36
  %557 = vmatprep.subr.mxu0 0.0
  %558 = vmatpush1.msra.mxu0 %v37
  %559 = vmatprep.subr.mxu0 0.0
  %560 = vmatpush1.msra.mxu0 0.0
  %561 = vmatprep.subr.mxu0 0.0
  %562 = vmatpush1.msra.mxu0 0.0
  %563 = vmatprep.subr.mxu0 0.0
  %564 = vmatpush1.msra.mxu0 0.0
  %565 = vmatprep.subr.mxu0 0.0
  %566 = vmatpush1.msra.mxu0 0.0
  %567 = vmatprep.subr.mxu0 0.0
  %568 = vmatpush1.msra.mxu0 0.0
  %569 = vmatprep.subr.mxu0 0.0
  %570 = vmatpush1.msra.mxu0 0.0
  %571 = vmatprep.subr.mxu0 0.0
  %572 = vmatpush1.msra.mxu0 0.0
  %573 = vmatprep.subr.mxu0 0.0
  %574 = vmatpush1.msra.mxu0 0.0
  %575 = vmatprep.subr.mxu0 0.0
  %576 = vmatpush1.msra.mxu0 0.0
  %577 = vmatprep.subr.mxu0 0.0
  %578 = vmatpush1.msra.mxu0 0.0
  %579 = vmatprep.subr.mxu0 0.0
  %580 = vmatpush1.msra.mxu0 0.0
  %581 = vmatprep.subr.mxu0 0.0
  %582 = vmatpush1.msra.mxu0 0.0
  %583 = vmatprep.subr.mxu0 0.0
  %584 = vmatpush1.msra.mxu0 0.0
  %585 = vmatprep.subr.mxu0 0.0
  %586 = vmatpush1.msra.mxu0 0.0
  %587 = vmatprep.subr.mxu0 0.0
  %588 = vmatpush1.msra.mxu0 0.0
  %589 = vmatprep.subr.mxu0 0.0
  %590 = vmatpush1.msra.mxu0 0.0
  %591 = vmatprep.subr.mxu0 0.0
  %592 = vmatpush1.msra.mxu0 0.0
  %593 = vmatprep.subr.mxu0 0.0
  %594 = vmatpush1.msra.mxu0 0.0
  %595 = vmatprep.subr.mxu0 0.0
  %596 = vmatpush1.msra.mxu0 0.0
  %597 = vmatprep.subr.mxu0 0.0
  %598 = vmatpush1.msra.mxu0 0.0
  %599 = vmatprep.subr.mxu0 0.0
  %600 = vmatpush1.msra.mxu0 0.0
  %601 = vmatprep.subr.mxu0 0.0
  %602 = vmatpush1.msra.mxu0 0.0
  %603 = vmatprep.subr.mxu0 0.0
  %604 = vmatpush1.msra.mxu0 0.0
  %605 = vmatprep.subr.mxu0 0.0
  %606 = vmatpush1.msra.mxu0 0.0
  %607 = vmatprep.subr.mxu0 0.0
  %608 = vmatpush1.msra.mxu0 0.0
  %609 = vmatprep.subr.mxu0 0.0
  %610 = vmatpush1.msra.mxu0 0.0
  %611 = vmatprep.subr.mxu0 0.0
  %612 = vmatpush1.msra.mxu0 0.0
  %613 = vmatprep.subr.mxu0 0.0
  %614 = vmatpush1.msra.mxu0 0.0
  %615 = vmatprep.mubr.f32.mxu0 0.0
  %616 = vmatmul.mubr.f32.gmra.mrb[0].mxu0 %v391
  %v617 = vpop.f32.mrb[0].mxu0
  %v618 = vadd.f32 0.0, %v617
  %v619 = vpop.f32.mrb[0].mxu0
  %620 = vdwg.mxu0
  %622 = vrot.lane.b32.xlu0 %v618, 64
  %v623 = vpop.permute.xlu0 %622
  %v625 = vadd.f32 %v387, %v623
  %v626 = vtanh.pop %v625
  %627 = vmatprep.subr.mxu0 0.0
  %628 = vmatpush1.msra.mxu0 %v39
  %629 = vmatprep.subr.mxu0 0.0
  %630 = vmatpush1.msra.mxu0 %v40
  %631 = vmatprep.subr.mxu0 0.0
  %632 = vmatpush1.msra.mxu0 %v41
  %633 = vmatprep.subr.mxu0 0.0
  %634 = vmatpush1.msra.mxu0 %v42
  %635 = vmatprep.subr.mxu0 0.0
  %636 = vmatpush1.msra.mxu0 0.0
  %637 = vmatprep.subr.mxu0 0.0
  %638 = vmatpush1.msra.mxu0 0.0
  %639 = vmatprep.subr.mxu0 0.0
  %640 = vmatpush1.msra.mxu0 0.0
  %641 = vmatprep.subr.mxu0 0.0
  %642 = vmatpush1.msra.mxu0 0.0
  %643 = vmatprep.subr.mxu0 0.0
  %644 = vmatpush1.msra.mxu0 0.0
  %645 = vmatprep.subr.mxu0 0.0
  %646 = vmatpush1.msra.mxu0 0.0
  %647 = vmatprep.subr.mxu0 0.0
  %648 = vmatpush1.msra.mxu0 0.0
  %649 = vmatprep.subr.mxu0 0.0
  %650 = vmatpush1.msra.mxu0 0.0
  %651 = vmatprep.subr.mxu0 0.0
  %652 = vmatpush1.msra.mxu0 0.0
  %653 = vmatprep.subr.mxu0 0.0
  %654 = vmatpush1.msra.mxu0 0.0
  %655 = vmatprep.subr.mxu0 0.0
  %656 = vmatpush1.msra.mxu0 0.0
  %657 = vmatprep.subr.mxu0 0.0
  %658 = vmatpush1.msra.mxu0 0.0
  %659 = vmatprep.subr.mxu0 0.0
  %660 = vmatpush1.msra.mxu0 0.0
  %661 = vmatprep.subr.mxu0 0.0
  %662 = vmatpush1.msra.mxu0 0.0
  %663 = vmatprep.subr.mxu0 0.0
  %664 = vmatpush1.msra.mxu0 0.0
  %665 = vmatprep.subr.mxu0 0.0
  %666 = vmatpush1.msra.mxu0 0.0
  %667 = vmatprep.subr.mxu0 0.0
  %668 = vmatpush1.msra.mxu0 0.0
  %669 = vmatprep.subr.mxu0 0.0
  %670 = vmatpush1.msra.mxu0 0.0
  %671 = vmatprep.subr.mxu0 0.0
  %672 = vmatpush1.msra.mxu0 0.0
  %673 = vmatprep.subr.mxu0 0.0
  %674 = vmatpush1.msra.mxu0 0.0
  %675 = vmatprep.subr.mxu0 0.0
  %676 = vmatpush1.msra.mxu0 0.0
  %677 = vmatprep.subr.mxu0 0.0
  %678 = vmatpush1.msra.mxu0 0.0
  %679 = vmatprep.subr.mxu0 0.0
  %680 = vmatpush1.msra.mxu0 0.0
  %681 = vmatprep.subr.mxu0 0.0
  %682 = vmatpush1.msra.mxu0 0.0
  %683 = vmatprep.subr.mxu0 0.0
  %684 = vmatpush1.msra.mxu0 0.0
  %685 = vmatprep.subr.mxu0 0.0
  %686 = vmatpush1.msra.mxu0 0.0
  %687 = vmatprep.subr.mxu0 0.0
  %688 = vmatpush1.msra.mxu0 0.0
  %689 = vmatprep.subr.mxu0 0.0
  %690 = vmatpush1.msra.mxu0 0.0
  %691 = vmatprep.mubr.f32.mxu0 0.0
  %692 = vmatmul.mubr.f32.gmra.mrb[0].mxu0 %v391
  %v693 = vpop.f32.mrb[0].mxu0
  %v694 = vadd.f32 0.0, %v693
  %v695 = vpop.f32.mrb[0].mxu0
  %696 = vdwg.mxu0
  %698 = vrot.lane.b32.xlu0 %v694, 96
  %v699 = vpop.permute.xlu0 %698
  %v701 = vadd.f32 %v387, %v699
  %v702 = vxor.u32 %v701, 2147483648
  %v703 = vmul.f32 %v702, 1.442695
  %v704 = vpow.pop %v703
  %v705 = vadd.f32 %v704, 1.0
  %v706 = vrcp.pop %v705
  %v707 = vmul.f32 1.0, %v706
  %v708 = vmul.f32 %v550, %v379
  %710 = vrot.lane.b32.xlu0 %v626, 64
  %v711 = vpop.permute.xlu0 %710
  %v713 = vmul.f32 %v469, %v711
  %715 = vrot.lane.b32.xlu0 %v713, 32
  %v716 = vpop.permute.xlu0 %715
  %v718 = vadd.f32 %v708, %v716
  %v719 = vtanh.pop %v718
  %721 = vrot.lane.b32.xlu0 %v719, 64
  %v722 = vpop.permute.xlu0 %721
  %v724 = vmul.f32 %v707, %v722
  %s725 = scalar_lea.vmem %s0, 16
  %v726 = vld [vmem:[%s725] sm:$0xff]
  %728 = vrot.lane.b32.xlu0 %v724, 32
  %v729 = vpop.permute.xlu0 %728
  %v730 = vsel %vm46, %v729, 0
  %732 = vmatprep.subr.mxu0 0.0
  %733 = vmatpush1.msra.mxu0 %v24
  %734 = vmatprep.subr.mxu0 0.0
  %735 = vmatpush1.msra.mxu0 %v25
  %736 = vmatprep.subr.mxu0 0.0
  %737 = vmatpush1.msra.mxu0 %v26
  %738 = vmatprep.subr.mxu0 0.0
  %739 = vmatpush1.msra.mxu0 %v27
  %740 = vmatprep.subr.mxu0 0.0
  %741 = vmatpush1.msra.mxu0 0.0
  %742 = vmatprep.subr.mxu0 0.0
  %743 = vmatpush1.msra.mxu0 0.0
  %744 = vmatprep.subr.mxu0 0.0
  %745 = vmatpush1.msra.mxu0 0.0
  %746 = vmatprep.subr.mxu0 0.0
  %747 = vmatpush1.msra.mxu0 0.0
  %748 = vmatprep.subr.mxu0 0.0
  %749 = vmatpush1.msra.mxu0 0.0
  %750 = vmatprep.subr.mxu0 0.0
  %751 = vmatpush1.msra.mxu0 0.0
  %752 = vmatprep.subr.mxu0 0.0
  %753 = vmatpush1.msra.mxu0 0.0
  %754 = vmatprep.subr.mxu0 0.0
  %755 = vmatpush1.msra.mxu0 0.0
  %756 = vmatprep.subr.mxu0 0.0
  %757 = vmatpush1.msra.mxu0 0.0
  %758 = vmatprep.subr.mxu0 0.0
  %759 = vmatpush1.msra.mxu0 0.0
  %760 = vmatprep.subr.mxu0 0.0
  %761 = vmatpush1.msra.mxu0 0.0
  %762 = vmatprep.subr.mxu0 0.0
  %763 = vmatpush1.msra.mxu0 0.0
  %764 = vmatprep.subr.mxu0 0.0
  %765 = vmatpush1.msra.mxu0 0.0
  %766 = vmatprep.subr.mxu0 0.0
  %767 = vmatpush1.msra.mxu0 0.0
  %768 = vmatprep.subr.mxu0 0.0
  %769 = vmatpush1.msra.mxu0 0.0
  %770 = vmatprep.subr.mxu0 0.0
  %771 = vmatpush1.msra.mxu0 0.0
  %772 = vmatprep.subr.mxu0 0.0
  %773 = vmatpush1.msra.mxu0 0.0
  %774 = vmatprep.subr.mxu0 0.0
  %775 = vmatpush1.msra.mxu0 0.0
  %776 = vmatprep.subr.mxu0 0.0
  %777 = vmatpush1.msra.mxu0 0.0
  %778 = vmatprep.subr.mxu0 0.0
  %779 = vmatpush1.msra.mxu0 0.0
  %780 = vmatprep.subr.mxu0 0.0
  %781 = vmatpush1.msra.mxu0 0.0
  %782 = vmatprep.subr.mxu0 0.0
  %783 = vmatpush1.msra.mxu0 0.0
  %784 = vmatprep.subr.mxu0 0.0
  %785 = vmatpush1.msra.mxu0 0.0
  %786 = vmatprep.subr.mxu0 0.0
  %787 = vmatpush1.msra.mxu0 0.0
  %788 = vmatprep.subr.mxu0 0.0
  %789 = vmatpush1.msra.mxu0 0.0
  %790 = vmatprep.subr.mxu0 0.0
  %791 = vmatpush1.msra.mxu0 0.0
  %792 = vmatprep.subr.mxu0 0.0
  %793 = vmatpush1.msra.mxu0 0.0
  %794 = vmatprep.subr.mxu0 0.0
  %795 = vmatpush1.msra.mxu0 0.0
  %796 = vmatprep.mubr.f32.mxu0 0.0
  %797 = vmatmul.mubr.f32.gmra.mrb[0].mxu0 %v730
  %v798 = vpop.f32.mrb[0].mxu0
  %v799 = vadd.f32 0.0, %v798
  %v800 = vpop.f32.mrb[0].mxu0
  %801 = vdwg.mxu0
  %v802 = vadd.f32 %v726, %v799
  %v803 = vxor.u32 %v802, 2147483648
  %v804 = vmul.f32 %v803, 1.442695
  %v805 = vpow.pop %v804
  %v806 = vadd.f32 %v805, 1.0
  %v807 = vrcp.pop %v806
  %v808 = vmul.f32 1.0, %v807
  %809 = vmatprep.subr.mxu0 0.0
  %810 = vmatpush1.msra.mxu0 %v29
  %811 = vmatprep.subr.mxu0 0.0
  %812 = vmatpush1.msra.mxu0 %v30
  %813 = vmatprep.subr.mxu0 0.0
  %814 = vmatpush1.msra.mxu0 %v31
  %815 = vmatprep.subr.mxu0 0.0
  %816 = vmatpush1.msra.mxu0 %v32
  %817 = vmatprep.subr.mxu0 0.0
  %818 = vmatpush1.msra.mxu0 0.0
  %819 = vmatprep.subr.mxu0 0.0
  %820 = vmatpush1.msra.mxu0 0.0
  %821 = vmatprep.subr.mxu0 0.0
  %822 = vmatpush1.msra.mxu0 0.0
  %823 = vmatprep.subr.mxu0 0.0
  %824 = vmatpush1.msra.mxu0 0.0
  %825 = vmatprep.subr.mxu0 0.0
  %826 = vmatpush1.msra.mxu0 0.0
  %827 = vmatprep.subr.mxu0 0.0
  %828 = vmatpush1.msra.mxu0 0.0
  %829 = vmatprep.subr.mxu0 0.0
  %830 = vmatpush1.msra.mxu0 0.0
  %831 = vmatprep.subr.mxu0 0.0
  %832 = vmatpush1.msra.mxu0 0.0
  %833 = vmatprep.subr.mxu0 0.0
  %834 = vmatpush1.msra.mxu0 0.0
  %835 = vmatprep.subr.mxu0 0.0
  %836 = vmatpush1.msra.mxu0 0.0
  %837 = vmatprep.subr.mxu0 0.0
  %838 = vmatpush1.msra.mxu0 0.0
  %839 = vmatprep.subr.mxu0 0.0
  %840 = vmatpush1.msra.mxu0 0.0
  %841 = vmatprep.subr.mxu0 0.0
  %842 = vmatpush1.msra.mxu0 0.0
  %843 = vmatprep.subr.mxu0 0.0
  %844 = vmatpush1.msra.mxu0 0.0
  %845 = vmatprep.subr.mxu0 0.0
  %846 = vmatpush1.msra.mxu0 0.0
  %847 = vmatprep.subr.mxu0 0.0
  %848 = vmatpush1.msra.mxu0 0.0
  %849 = vmatprep.subr.mxu0 0.0
  %850 = vmatpush1.msra.mxu0 0.0
  %851 = vmatprep.subr.mxu0 0.0
  %852 = vmatpush1.msra.mxu0 0.0
  %853 = vmatprep.subr.mxu0 0.0
  %854 = vmatpush1.msra.mxu0 0.0
  %855 = vmatprep.subr.mxu0 0.0
  %856 = vmatpush1.msra.mxu0 0.0
  %857 = vmatprep.subr.mxu0 0.0
  %858 = vmatpush1.msra.mxu0 0.0
  %859 = vmatprep.subr.mxu0 0.0
  %860 = vmatpush1.msra.mxu0 0.0
  %861 = vmatprep.subr.mxu0 0.0
  %862 = vmatpush1.msra.mxu0 0.0
  %863 = vmatprep.subr.mxu0 0.0
  %864 = vmatpush1.msra.mxu0 0.0
  %865 = vmatprep.subr.mxu0 0.0
  %866 = vmatpush1.msra.mxu0 0.0
  %867 = vmatprep.subr.mxu0 0.0
  %868 = vmatpush1.msra.mxu0 0.0
  %869 = vmatprep.subr.mxu0 0.0
  %870 = vmatpush1.msra.mxu0 0.0
  %871 = vmatprep.subr.mxu0 0.0
  %872 = vmatpush1.msra.mxu0 0.0
  %873 = vmatprep.mubr.f32.mxu0 0.0
  %874 = vmatmul.mubr.f32.gmra.mrb[0].mxu0 %v730
  %v875 = vpop.f32.mrb[0].mxu0
  %v876 = vadd.f32 0.0, %v875
  %v877 = vpop.f32.mrb[0].mxu0
  %878 = vdwg.mxu0
  %880 = vrot.lane.b32.xlu0 %v876, 32
  %v881 = vpop.permute.xlu0 %880
  %v883 = vadd.f32 %v726, %v881
  %v884 = vxor.u32 %v883, 2147483648
  %v885 = vmul.f32 %v884, 1.442695
  %v886 = vpow.pop %v885
  %v887 = vadd.f32 %v886, 1.0
  %v888 = vrcp.pop %v887
  %v889 = vmul.f32 1.0, %v888
  %890 = vmatprep.subr.mxu0 0.0
  %891 = vmatpush1.msra.mxu0 %v34
  %892 = vmatprep.subr.mxu0 0.0
  %893 = vmatpush1.msra.mxu0 %v35
  %894 = vmatprep.subr.mxu0 0.0
  %895 = vmatpush1.msra.mxu0 %v36
  %896 = vmatprep.subr.mxu0 0.0
  %897 = vmatpush1.msra.mxu0 %v37
  %898 = vmatprep.subr.mxu0 0.0
  %899 = vmatpush1.msra.mxu0 0.0
  %900 = vmatprep.subr.mxu0 0.0
  %901 = vmatpush1.msra.mxu0 0.0
  %902 = vmatprep.subr.mxu0 0.0
  %903 = vmatpush1.msra.mxu0 0.0
  %904 = vmatprep.subr.mxu0 0.0
  %905 = vmatpush1.msra.mxu0 0.0
  %906 = vmatprep.subr.mxu0 0.0
  %907 = vmatpush1.msra.mxu0 0.0
  %908 = vmatprep.subr.mxu0 0.0
  %909 = vmatpush1.msra.mxu0 0.0
  %910 = vmatprep.subr.mxu0 0.0
  %911 = vmatpush1.msra.mxu0 0.0
  %912 = vmatprep.subr.mxu0 0.0
  %913 = vmatpush1.msra.mxu0 0.0
  %914 = vmatprep.subr.mxu0 0.0
  %915 = vmatpush1.msra.mxu0 0.0
  %916 = vmatprep.subr.mxu0 0.0
  %917 = vmatpush1.msra.mxu0 0.0
  %918 = vmatprep.subr.mxu0 0.0
  %919 = vmatpush1.msra.mxu0 0.0
  %920 = vmatprep.subr.mxu0 0.0
  %921 = vmatpush1.msra.mxu0 0.0
  %922 = vmatprep.subr.mxu0 0.0
  %923 = vmatpush1.msra.mxu0 0.0
  %924 = vmatprep.subr.mxu0 0.0
  %925 = vmatpush1.msra.mxu0 0.0
  %926 = vmatprep.subr.mxu0 0.0
  %927 = vmatpush1.msra.mxu0 0.0
  %928 = vmatprep.subr.mxu0 0.0
  %929 = vmatpush1.msra.mxu0 0.0
  %930 = vmatprep.subr.mxu0 0.0
  %931 = vmatpush1.msra.mxu0 0.0
  %932 = vmatprep.subr.mxu0 0.0
  %933 = vmatpush1.msra.mxu0 0.0
  %934 = vmatprep.subr.mxu0 0.0
  %935 = vmatpush1.msra.mxu0 0.0
  %936 = vmatprep.subr.mxu0 0.0
  %937 = vmatpush1.msra.mxu0 0.0
  %938 = vmatprep.subr.mxu0 0.0
  %939 = vmatpush1.msra.mxu0 0.0
  %940 = vmatprep.subr.mxu0 0.0
  %941 = vmatpush1.msra.mxu0 0.0
  %942 = vmatprep.subr.mxu0 0.0
  %943 = vmatpush1.msra.mxu0 0.0
  %944 = vmatprep.subr.mxu0 0.0
  %945 = vmatpush1.msra.mxu0 0.0
  %946 = vmatprep.subr.mxu0 0.0
  %947 = vmatpush1.msra.mxu0 0.0
  %948 = vmatprep.subr.mxu0 0.0
  %949 = vmatpush1.msra.mxu0 0.0
  %950 = vmatprep.subr.mxu0 0.0
  %951 = vmatpush1.msra.mxu0 0.0
  %952 = vmatprep.subr.mxu0 0.0
  %953 = vmatpush1.msra.mxu0 0.0
  %954 = vmatprep.mubr.f32.mxu0 0.0
  %955 = vmatmul.mubr.f32.gmra.mrb[0].mxu0 %v730
  %v956 = vpop.f32.mrb[0].mxu0
  %v957 = vadd.f32 0.0, %v956
  %v958 = vpop.f32.mrb[0].mxu0
  %959 = vdwg.mxu0
  %961 = vrot.lane.b32.xlu0 %v957, 64
  %v962 = vpop.permute.xlu0 %961
  %v964 = vadd.f32 %v726, %v962
  %v965 = vtanh.pop %v964
  %966 = vmatprep.subr.mxu0 0.0
  %967 = vmatpush1.msra.mxu0 %v39
  %968 = vmatprep.subr.mxu0 0.0
  %969 = vmatpush1.msra.mxu0 %v40
  %970 = vmatprep.subr.mxu0 0.0
  %971 = vmatpush1.msra.mxu0 %v41
  %972 = vmatprep.subr.mxu0 0.0
  %973 = vmatpush1.msra.mxu0 %v42
  %974 = vmatprep.subr.mxu0 0.0
  %975 = vmatpush1.msra.mxu0 0.0
  %976 = vmatprep.subr.mxu0 0.0
  %977 = vmatpush1.msra.mxu0 0.0
  %978 = vmatprep.subr.mxu0 0.0
  %979 = vmatpush1.msra.mxu0 0.0
  %980 = vmatprep.subr.mxu0 0.0
  %981 = vmatpush1.msra.mxu0 0.0
  %982 = vmatprep.subr.mxu0 0.0
  %983 = vmatpush1.msra.mxu0 0.0
  %984 = vmatprep.subr.mxu0 0.0
  %985 = vmatpush1.msra.mxu0 0.0
  %986 = vmatprep.subr.mxu0 0.0
  %987 = vmatpush1.msra.mxu0 0.0
  %988 = vmatprep.subr.mxu0 0.0
  %989 = vmatpush1.msra.mxu0 0.0
  %990 = vmatprep.subr.mxu0 0.0
  %991 = vmatpush1.msra.mxu0 0.0
  %992 = vmatprep.subr.mxu0 0.0
  %993 = vmatpush1.msra.mxu0 0.0
  %994 = vmatprep.subr.mxu0 0.0
  %995 = vmatpush1.msra.mxu0 0.0
  %996 = vmatprep.subr.mxu0 0.0
  %997 = vmatpush1.msra.mxu0 0.0
  %998 = vmatprep.subr.mxu0 0.0
  %999 = vmatpush1.msra.mxu0 0.0
  %1000 = vmatprep.subr.mxu0 0.0
  %1001 = vmatpush1.msra.mxu0 0.0
  %1002 = vmatprep.subr.mxu0 0.0
  %1003 = vmatpush1.msra.mxu0 0.0
  %1004 = vmatprep.subr.mxu0 0.0
  %1005 = vmatpush1.msra.mxu0 0.0
  %1006 = vmatprep.subr.mxu0 0.0
  %1007 = vmatpush1.msra.mxu0 0.0
  %1008 = vmatprep.subr.mxu0 0.0
  %1009 = vmatpush1.msra.mxu0 0.0
  %1010 = vmatprep.subr.mxu0 0.0
  %1011 = vmatpush1.msra.mxu0 0.0
  %1012 = vmatprep.subr.mxu0 0.0
  %1013 = vmatpush1.msra.mxu0 0.0
  %1014 = vmatprep.subr.mxu0 0.0
  %1015 = vmatpush1.msra.mxu0 0.0
  %1016 = vmatprep.subr.mxu0 0.0
  %1017 = vmatpush1.msra.mxu0 0.0
  %1018 = vmatprep.subr.mxu0 0.0
  %1019 = vmatpush1.msra.mxu0 0.0
  %1020 = vmatprep.subr.mxu0 0.0
  %1021 = vmatpush1.msra.mxu0 0.0
  %1022 = vmatprep.subr.mxu0 0.0
  %1023 = vmatpush1.msra.mxu0 0.0
  %1024 = vmatprep.subr.mxu0 0.0
  %1025 = vmatpush1.msra.mxu0 0.0
  %1026 = vmatprep.subr.mxu0 0.0
  %1027 = vmatpush1.msra.mxu0 0.0
  %1028 = vmatprep.subr.mxu0 0.0
  %1029 = vmatpush1.msra.mxu0 0.0
  %1030 = vmatprep.mubr.f32.mxu0 0.0
  %1031 = vmatmul.mubr.f32.gmra.mrb[0].mxu0 %v730
  %v1032 = vpop.f32.mrb[0].mxu0
  %v1033 = vadd.f32 0.0, %v1032
  %v1034 = vpop.f32.mrb[0].mxu0
  %1035 = vdwg.mxu0
  %1037 = vrot.lane.b32.xlu0 %v1033, 96
  %v1038 = vpop.permute.xlu0 %1037
  %v1040 = vadd.f32 %v726, %v1038
  %v1041 = vxor.u32 %v1040, 2147483648
  %v1042 = vmul.f32 %v1041, 1.442695
  %v1043 = vpow.pop %v1042
  %v1044 = vadd.f32 %v1043, 1.0
  %v1045 = vrcp.pop %v1044
  %v1046 = vmul.f32 1.0, %v1045
  %v1047 = vmul.f32 %v889, %v718
  %1049 = vrot.lane.b32.xlu0 %v965, 64
  %v1050 = vpop.permute.xlu0 %1049
  %v1052 = vmul.f32 %v808, %v1050
  %1054 = vrot.lane.b32.xlu0 %v1052, 32
  %v1055 = vpop.permute.xlu0 %1054
  %v1057 = vadd.f32 %v1047, %v1055
  %v1058 = vtanh.pop %v1057
  %1060 = vrot.lane.b32.xlu0 %v1058, 64
  %v1061 = vpop.permute.xlu0 %1060
  %v1063 = vmul.f32 %v1046, %v1061
  %s1064 = scalar_lea.vmem %s0, 24
  %v1065 = vld [vmem:[%s1064] sm:$0xff]
  %1067 = vrot.lane.b32.xlu0 %v1063, 32
  %v1068 = vpop.permute.xlu0 %1067
  %v1069 = vsel %vm46, %v1068, 0
  %1071 = vmatprep.subr.mxu0 0.0
  %1072 = vmatpush1.msra.mxu0 %v24
  %1073 = vmatprep.subr.mxu0 0.0
  %1074 = vmatpush1.msra.mxu0 %v25
  %1075 = vmatprep.subr.mxu0 0.0
  %1076 = vmatpush1.msra.mxu0 %v26
  %1077 = vmatprep.subr.mxu0 0.0
  %1078 = vmatpush1.msra.mxu0 %v27
  %1079 = vmatprep.subr.mxu0 0.0
  %1080 = vmatpush1.msra.mxu0 0.0
  %1081 = vmatprep.subr.mxu0 0.0
  %1082 = vmatpush1.msra.mxu0 0.0
  %1083 = vmatprep.subr.mxu0 0.0
  %1084 = vmatpush1.msra.mxu0 0.0
  %1085 = vmatprep.subr.mxu0 0.0
  %1086 = vmatpush1.msra.mxu0 0.0
  %1087 = vmatprep.subr.mxu0 0.0
  %1088 = vmatpush1.msra.mxu0 0.0
  %1089 = vmatprep.subr.mxu0 0.0
  %1090 = vmatpush1.msra.mxu0 0.0
  %1091 = vmatprep.subr.mxu0 0.0
  %1092 = vmatpush1.msra.mxu0 0.0
  %1093 = vmatprep.subr.mxu0 0.0
  %1094 = vmatpush1.msra.mxu0 0.0
  %1095 = vmatprep.subr.mxu0 0.0
  %1096 = vmatpush1.msra.mxu0 0.0
  %1097 = vmatprep.subr.mxu0 0.0
  %1098 = vmatpush1.msra.mxu0 0.0
  %1099 = vmatprep.subr.mxu0 0.0
  %1100 = vmatpush1.msra.mxu0 0.0
  %1101 = vmatprep.subr.mxu0 0.0
  %1102 = vmatpush1.msra.mxu0 0.0
  %1103 = vmatprep.subr.mxu0 0.0
  %1104 = vmatpush1.msra.mxu0 0.0
  %1105 = vmatprep.subr.mxu0 0.0
  %1106 = vmatpush1.msra.mxu0 0.0
  %1107 = vmatprep.subr.mxu0 0.0
  %1108 = vmatpush1.msra.mxu0 0.0
  %1109 = vmatprep.subr.mxu0 0.0
  %1110 = vmatpush1.msra.mxu0 0.0
  %1111 = vmatprep.subr.mxu0 0.0
  %1112 = vmatpush1.msra.mxu0 0.0
  %1113 = vmatprep.subr.mxu0 0.0
  %1114 = vmatpush1.msra.mxu0 0.0
  %1115 = vmatprep.subr.mxu0 0.0
  %1116 = vmatpush1.msra.mxu0 0.0
  %1117 = vmatprep.subr.mxu0 0.0
  %1118 = vmatpush1.msra.mxu0 0.0
  %1119 = vmatprep.subr.mxu0 0.0
  %1120 = vmatpush1.msra.mxu0 0.0
  %1121 = vmatprep.subr.mxu0 0.0
  %1122 = vmatpush1.msra.mxu0 0.0
  %1123 = vmatprep.subr.mxu0 0.0
  %1124 = vmatpush1.msra.mxu0 0.0
  %1125 = vmatprep.subr.mxu0 0.0
  %1126 = vmatpush1.msra.mxu0 0.0
  %1127 = vmatprep.subr.mxu0 0.0
  %1128 = vmatpush1.msra.mxu0 0.0
  %1129 = vmatprep.subr.mxu0 0.0
  %1130 = vmatpush1.msra.mxu0 0.0
  %1131 = vmatprep.subr.mxu0 0.0
  %1132 = vmatpush1.msra.mxu0 0.0
  %1133 = vmatprep.subr.mxu0 0.0
  %1134 = vmatpush1.msra.mxu0 0.0
  %1135 = vmatprep.mubr.f32.mxu0 0.0
  %1136 = vmatmul.mubr.f32.gmra.mrb[0].mxu0 %v1069
  %v1137 = vpop.f32.mrb[0].mxu0
  %v1138 = vadd.f32 0.0, %v1137
  %v1139 = vpop.f32.mrb[0].mxu0
  %1140 = vdwg.mxu0
  %v1141 = vadd.f32 %v1065, %v1138
  %v1142 = vxor.u32 %v1141, 2147483648
  %v1143 = vmul.f32 %v1142, 1.442695
  %v1144 = vpow.pop %v1143
  %v1145 = vadd.f32 %v1144, 1.0
  %v1146 = vrcp.pop %v1145
  %v1147 = vmul.f32 1.0, %v1146
  %1148 = vmatprep.subr.mxu0 0.0
  %1149 = vmatpush1.msra.mxu0 %v29
  %1150 = vmatprep.subr.mxu0 0.0
  %1151 = vmatpush1.msra.mxu0 %v30
  %1152 = vmatprep.subr.mxu0 0.0
  %1153 = vmatpush1.msra.mxu0 %v31
  %1154 = vmatprep.subr.mxu0 0.0
  %1155 = vmatpush1.msra.mxu0 %v32
  %1156 = vmatprep.subr.mxu0 0.0
  %1157 = vmatpush1.msra.mxu0 0.0
  %1158 = vmatprep.subr.mxu0 0.0
  %1159 = vmatpush1.msra.mxu0 0.0
  %1160 = vmatprep.subr.mxu0 0.0
  %1161 = vmatpush1.msra.mxu0 0.0
  %1162 = vmatprep.subr.mxu0 0.0
  %1163 = vmatpush1.msra.mxu0 0.0
  %1164 = vmatprep.subr.mxu0 0.0
  %1165 = vmatpush1.msra.mxu0 0.0
  %1166 = vmatprep.subr.mxu0 0.0
  %1167 = vmatpush1.msra.mxu0 0.0
  %1168 = vmatprep.subr.mxu0 0.0
  %1169 = vmatpush1.msra.mxu0 0.0
  %1170 = vmatprep.subr.mxu0 0.0
  %1171 = vmatpush1.msra.mxu0 0.0
  %1172 = vmatprep.subr.mxu0 0.0
  %1173 = vmatpush1.msra.mxu0 0.0
  %1174 = vmatprep.subr.mxu0 0.0
  %1175 = vmatpush1.msra.mxu0 0.0
  %1176 = vmatprep.subr.mxu0 0.0
  %1177 = vmatpush1.msra.mxu0 0.0
  %1178 = vmatprep.subr.mxu0 0.0
  %1179 = vmatpush1.msra.mxu0 0.0
  %1180 = vmatprep.subr.mxu0 0.0
  %1181 = vmatpush1.msra.mxu0 0.0
  %1182 = vmatprep.subr.mxu0 0.0
  %1183 = vmatpush1.msra.mxu0 0.0
  %1184 = vmatprep.subr.mxu0 0.0
  %1185 = vmatpush1.msra.mxu0 0.0
  %1186 = vmatprep.subr.mxu0 0.0
  %1187 = vmatpush1.msra.mxu0 0.0
  %1188 = vmatprep.subr.mxu0 0.0
  %1189 = vmatpush1.msra.mxu0 0.0
  %1190 = vmatprep.subr.mxu0 0.0
  %1191 = vmatpush1.msra.mxu0 0.0
  %1192 = vmatprep.subr.mxu0 0.0
  %1193 = vmatpush1.msra.mxu0 0.0
  %1194 = vmatprep.subr.mxu0 0.0
  %1195 = vmatpush1.msra.mxu0 0.0
  %1196 = vmatprep.subr.mxu0 0.0
  %1197 = vmatpush1.msra.mxu0 0.0
  %1198 = vmatprep.subr.mxu0 0.0
  %1199 = vmatpush1.msra.mxu0 0.0
  %1200 = vmatprep.subr.mxu0 0.0
  %1201 = vmatpush1.msra.mxu0 0.0
  %1202 = vmatprep.subr.mxu0 0.0
  %1203 = vmatpush1.msra.mxu0 0.0
  %1204 = vmatprep.subr.mxu0 0.0
  %1205 = vmatpush1.msra.mxu0 0.0
  %1206 = vmatprep.subr.mxu0 0.0
  %1207 = vmatpush1.msra.mxu0 0.0
  %1208 = vmatprep.subr.mxu0 0.0
  %1209 = vmatpush1.msra.mxu0 0.0
  %1210 = vmatprep.subr.mxu0 0.0
  %1211 = vmatpush1.msra.mxu0 0.0
  %1212 = vmatprep.mubr.f32.mxu0 0.0
  %1213 = vmatmul.mubr.f32.gmra.mrb[0].mxu0 %v1069
  %v1214 = vpop.f32.mrb[0].mxu0
  %v1215 = vadd.f32 0.0, %v1214
  %v1216 = vpop.f32.mrb[0].mxu0
  %1217 = vdwg.mxu0
  %1219 = vrot.lane.b32.xlu0 %v1215, 32
  %v1220 = vpop.permute.xlu0 %1219
  %v1222 = vadd.f32 %v1065, %v1220
  %v1223 = vxor.u32 %v1222, 2147483648
  %v1224 = vmul.f32 %v1223, 1.442695
  %v1225 = vpow.pop %v1224
  %v1226 = vadd.f32 %v1225, 1.0
  %v1227 = vrcp.pop %v1226
  %v1228 = vmul.f32 1.0, %v1227
  %1229 = vmatprep.subr.mxu0 0.0
  %1230 = vmatpush1.msra.mxu0 %v34
  %1231 = vmatprep.subr.mxu0 0.0
  %1232 = vmatpush1.msra.mxu0 %v35
  %1233 = vmatprep.subr.mxu0 0.0
  %1234 = vmatpush1.msra.mxu0 %v36
  %1235 = vmatprep.subr.mxu0 0.0
  %1236 = vmatpush1.msra.mxu0 %v37
  %1237 = vmatprep.subr.mxu0 0.0
  %1238 = vmatpush1.msra.mxu0 0.0
  %1239 = vmatprep.subr.mxu0 0.0
  %1240 = vmatpush1.msra.mxu0 0.0
  %1241 = vmatprep.subr.mxu0 0.0
  %1242 = vmatpush1.msra.mxu0 0.0
  %1243 = vmatprep.subr.mxu0 0.0
  %1244 = vmatpush1.msra.mxu0 0.0
  %1245 = vmatprep.subr.mxu0 0.0
  %1246 = vmatpush1.msra.mxu0 0.0
  %1247 = vmatprep.subr.mxu0 0.0
  %1248 = vmatpush1.msra.mxu0 0.0
  %1249 = vmatprep.subr.mxu0 0.0
  %1250 = vmatpush1.msra.mxu0 0.0
  %1251 = vmatprep.subr.mxu0 0.0
  %1252 = vmatpush1.msra.mxu0 0.0
  %1253 = vmatprep.subr.mxu0 0.0
  %1254 = vmatpush1.msra.mxu0 0.0
  %1255 = vmatprep.subr.mxu0 0.0
  %1256 = vmatpush1.msra.mxu0 0.0
  %1257 = vmatprep.subr.mxu0 0.0
  %1258 = vmatpush1.msra.mxu0 0.0
  %1259 = vmatprep.subr.mxu0 0.0
  %1260 = vmatpush1.msra.mxu0 0.0
  %1261 = vmatprep.subr.mxu0 0.0
  %1262 = vmatpush1.msra.mxu0 0.0
  %1263 = vmatprep.subr.mxu0 0.0
  %1264 = vmatpush1.msra.mxu0 0.0
  %1265 = vmatprep.subr.mxu0 0.0
  %1266 = vmatpush1.msra.mxu0 0.0
  %1267 = vmatprep.subr.mxu0 0.0
  %1268 = vmatpush1.msra.mxu0 0.0
  %1269 = vmatprep.subr.mxu0 0.0
  %1270 = vmatpush1.msra.mxu0 0.0
  %1271 = vmatprep.subr.mxu0 0.0
  %1272 = vmatpush1.msra.mxu0 0.0
  %1273 = vmatprep.subr.mxu0 0.0
  %1274 = vmatpush1.msra.mxu0 0.0
  %1275 = vmatprep.subr.mxu0 0.0
  %1276 = vmatpush1.msra.mxu0 0.0
  %1277 = vmatprep.subr.mxu0 0.0
  %1278 = vmatpush1.msra.mxu0 0.0
  %1279 = vmatprep.subr.mxu0 0.0
  %1280 = vmatpush1.msra.mxu0 0.0
  %1281 = vmatprep.subr.mxu0 0.0
  %1282 = vmatpush1.msra.mxu0 0.0
  %1283 = vmatprep.subr.mxu0 0.0
  %1284 = vmatpush1.msra.mxu0 0.0
  %1285 = vmatprep.subr.mxu0 0.0
  %1286 = vmatpush1.msra.mxu0 0.0
  %1287 = vmatprep.subr.mxu0 0.0
  %1288 = vmatpush1.msra.mxu0 0.0
  %1289 = vmatprep.subr.mxu0 0.0
  %1290 = vmatpush1.msra.mxu0 0.0
  %1291 = vmatprep.subr.mxu0 0.0
  %1292 = vmatpush1.msra.mxu0 0.0
  %1293 = vmatprep.mubr.f32.mxu0 0.0
  %1294 = vmatmul.mubr.f32.gmra.mrb[0].mxu0 %v1069
  %v1295 = vpop.f32.mrb[0].mxu0
  %v1296 = vadd.f32 0.0, %v1295
  %v1297 = vpop.f32.mrb[0].mxu0
  %1298 = vdwg.mxu0
  %1300 = vrot.lane.b32.xlu0 %v1296, 64
  %v1301 = vpop.permute.xlu0 %1300
  %v1303 = vadd.f32 %v1065, %v1301
  %v1304 = vtanh.pop %v1303
  %1305 = vmatprep.subr.mxu0 0.0
  %1306 = vmatpush1.msra.mxu0 %v39
  %1307 = vmatprep.subr.mxu0 0.0
  %1308 = vmatpush1.msra.mxu0 %v40
  %1309 = vmatprep.subr.mxu0 0.0
  %1310 = vmatpush1.msra.mxu0 %v41
  %1311 = vmatprep.subr.mxu0 0.0
  %1312 = vmatpush1.msra.mxu0 %v42
  %1313 = vmatprep.subr.mxu0 0.0
  %1314 = vmatpush1.msra.mxu0 0.0
  %1315 = vmatprep.subr.mxu0 0.0
  %1316 = vmatpush1.msra.mxu0 0.0
  %1317 = vmatprep.subr.mxu0 0.0
  %1318 = vmatpush1.msra.mxu0 0.0
  %1319 = vmatprep.subr.mxu0 0.0
  %1320 = vmatpush1.msra.mxu0 0.0
  %1321 = vmatprep.subr.mxu0 0.0
  %1322 = vmatpush1.msra.mxu0 0.0
  %1323 = vmatprep.subr.mxu0 0.0
  %1324 = vmatpush1.msra.mxu0 0.0
  %1325 = vmatprep.subr.mxu0 0.0
  %1326 = vmatpush1.msra.mxu0 0.0
  %1327 = vmatprep.subr.mxu0 0.0
  %1328 = vmatpush1.msra.mxu0 0.0
  %1329 = vmatprep.subr.mxu0 0.0
  %1330 = vmatpush1.msra.mxu0 0.0
  %1331 = vmatprep.subr.mxu0 0.0
  %1332 = vmatpush1.msra.mxu0 0.0
  %1333 = vmatprep.subr.mxu0 0.0
  %1334 = vmatpush1.msra.mxu0 0.0
  %1335 = vmatprep.subr.mxu0 0.0
  %1336 = vmatpush1.msra.mxu0 0.0
  %1337 = vmatprep.subr.mxu0 0.0
  %1338 = vmatpush1.msra.mxu0 0.0
  %1339 = vmatprep.subr.mxu0 0.0
  %1340 = vmatpush1.msra.mxu0 0.0
  %1341 = vmatprep.subr.mxu0 0.0
  %1342 = vmatpush1.msra.mxu0 0.0
  %1343 = vmatprep.subr.mxu0 0.0
  %1344 = vmatpush1.msra.mxu0 0.0
  %1345 = vmatprep.subr.mxu0 0.0
  %1346 = vmatpush1.msra.mxu0 0.0
  %1347 = vmatprep.subr.mxu0 0.0
  %1348 = vmatpush1.msra.mxu0 0.0
  %1349 = vmatprep.subr.mxu0 0.0
  %1350 = vmatpush1.msra.mxu0 0.0
  %1351 = vmatprep.subr.mxu0 0.0
  %1352 = vmatpush1.msra.mxu0 0.0
  %1353 = vmatprep.subr.mxu0 0.0
  %1354 = vmatpush1.msra.mxu0 0.0
  %1355 = vmatprep.subr.mxu0 0.0
  %1356 = vmatpush1.msra.mxu0 0.0
  %1357 = vmatprep.subr.mxu0 0.0
  %1358 = vmatpush1.msra.mxu0 0.0
  %1359 = vmatprep.subr.mxu0 0.0
  %1360 = vmatpush1.msra.mxu0 0.0
  %1361 = vmatprep.subr.mxu0 0.0
  %1362 = vmatpush1.msra.mxu0 0.0
  %1363 = vmatprep.subr.mxu0 0.0
  %1364 = vmatpush1.msra.mxu0 0.0
  %1365 = vmatprep.subr.mxu0 0.0
  %1366 = vmatpush1.msra.mxu0 0.0
  %1367 = vmatprep.subr.mxu0 0.0
  %1368 = vmatpush1.msra.mxu0 0.0
  %1369 = vmatprep.mubr.f32.mxu0 0.0
  %1370 = vmatmul.mubr.f32.gmra.mrb[0].mxu0 %v1069
  %v1371 = vpop.f32.mrb[0].mxu0
  %v1372 = vadd.f32 0.0, %v1371
  %v1373 = vpop.f32.mrb[0].mxu0
  %1374 = vdwg.mxu0
  %1376 = vrot.lane.b32.xlu0 %v1372, 96
  %v1377 = vpop.permute.xlu0 %1376
  %v1379 = vadd.f32 %v1065, %v1377
  %v1380 = vxor.u32 %v1379, 2147483648
  %v1381 = vmul.f32 %v1380, 1.442695
  %v1382 = vpow.pop %v1381
  %v1383 = vadd.f32 %v1382, 1.0
  %v1384 = vrcp.pop %v1383
  %v1385 = vmul.f32 1.0, %v1384
  %v1386 = vmul.f32 %v1228, %v1057
  %1388 = vrot.lane.b32.xlu0 %v1304, 64
  %v1389 = vpop.permute.xlu0 %1388
  %v1391 = vmul.f32 %v1147, %v1389
  %1393 = vrot.lane.b32.xlu0 %v1391, 32
  %v1394 = vpop.permute.xlu0 %1393
  %v1396 = vadd.f32 %v1386, %v1394
  %v1397 = vtanh.pop %v1396
  %1399 = vrot.lane.b32.xlu0 %v1397, 64
  %v1400 = vpop.permute.xlu0 %1399
  %v1402 = vmul.f32 %v1385, %v1400
  %s1403 = scalar_lea.vmem %s0, 32
  %v1404 = vld [vmem:[%s1403] sm:$0xff]
  %1406 = vrot.lane.b32.xlu0 %v1402, 32
  %v1407 = vpop.permute.xlu0 %1406
  %v1408 = vsel %vm46, %v1407, 0
  %1410 = vmatprep.subr.mxu0 0.0
  %1411 = vmatpush1.msra.mxu0 %v24
  %1412 = vmatprep.subr.mxu0 0.0
  %1413 = vmatpush1.msra.mxu0 %v25
  %1414 = vmatprep.subr.mxu0 0.0
  %1415 = vmatpush1.msra.mxu0 %v26
  %1416 = vmatprep.subr.mxu0 0.0
  %1417 = vmatpush1.msra.mxu0 %v27
  %1418 = vmatprep.subr.mxu0 0.0
  %1419 = vmatpush1.msra.mxu0 0.0
  %1420 = vmatprep.subr.mxu0 0.0
  %1421 = vmatpush1.msra.mxu0 0.0
  %1422 = vmatprep.subr.mxu0 0.0
  %1423 = vmatpush1.msra.mxu0 0.0
  %1424 = vmatprep.subr.mxu0 0.0
  %1425 = vmatpush1.msra.mxu0 0.0
  %1426 = vmatprep.subr.mxu0 0.0
  %1427 = vmatpush1.msra.mxu0 0.0
  %1428 = vmatprep.subr.mxu0 0.0
  %1429 = vmatpush1.msra.mxu0 0.0
  %1430 = vmatprep.subr.mxu0 0.0
  %1431 = vmatpush1.msra.mxu0 0.0
  %1432 = vmatprep.subr.mxu0 0.0
  %1433 = vmatpush1.msra.mxu0 0.0
  %1434 = vmatprep.subr.mxu0 0.0
  %1435 = vmatpush1.msra.mxu0 0.0
  %1436 = vmatprep.subr.mxu0 0.0
  %1437 = vmatpush1.msra.mxu0 0.0
  %1438 = vmatprep.subr.mxu0 0.0
  %1439 = vmatpush1.msra.mxu0 0.0
  %1440 = vmatprep.subr.mxu0 0.0
  %1441 = vmatpush1.msra.mxu0 0.0
  %1442 = vmatprep.subr.mxu0 0.0
  %1443 = vmatpush1.msra.mxu0 0.0
  %1444 = vmatprep.subr.mxu0 0.0
  %1445 = vmatpush1.msra.mxu0 0.0
  %1446 = vmatprep.subr.mxu0 0.0
  %1447 = vmatpush1.msra.mxu0 0.0
  %1448 = vmatprep.subr.mxu0 0.0
  %1449 = vmatpush1.msra.mxu0 0.0
  %1450 = vmatprep.subr.mxu0 0.0
  %1451 = vmatpush1.msra.mxu0 0.0
  %1452 = vmatprep.subr.mxu0 0.0
  %1453 = vmatpush1.msra.mxu0 0.0
  %1454 = vmatprep.subr.mxu0 0.0
  %1455 = vmatpush1.msra.mxu0 0.0
  %1456 = vmatprep.subr.mxu0 0.0
  %1457 = vmatpush1.msra.mxu0 0.0
  %1458 = vmatprep.subr.mxu0 0.0
  %1459 = vmatpush1.msra.mxu0 0.0
  %1460 = vmatprep.subr.mxu0 0.0
  %1461 = vmatpush1.msra.mxu0 0.0
  %1462 = vmatprep.subr.mxu0 0.0
  %1463 = vmatpush1.msra.mxu0 0.0
  %1464 = vmatprep.subr.mxu0 0.0
  %1465 = vmatpush1.msra.mxu0 0.0
  %1466 = vmatprep.subr.mxu0 0.0
  %1467 = vmatpush1.msra.mxu0 0.0
  %1468 = vmatprep.subr.mxu0 0.0
  %1469 = vmatpush1.msra.mxu0 0.0
  %1470 = vmatprep.subr.mxu0 0.0
  %1471 = vmatpush1.msra.mxu0 0.0
  %1472 = vmatprep.subr.mxu0 0.0
  %1473 = vmatpush1.msra.mxu0 0.0
  %1474 = vmatprep.mubr.f32.mxu0 0.0
  %1475 = vmatmul.mubr.f32.gmra.mrb[0].mxu0 %v1408
  %v1476 = vpop.f32.mrb[0].mxu0
  %v1477 = vadd.f32 0.0, %v1476
  %v1478 = vpop.f32.mrb[0].mxu0
  %1479 = vdwg.mxu0
  %v1480 = vadd.f32 %v1404, %v1477
  %v1481 = vxor.u32 %v1480, 2147483648
  %v1482 = vmul.f32 %v1481, 1.442695
  %v1483 = vpow.pop %v1482
  %v1484 = vadd.f32 %v1483, 1.0
  %v1485 = vrcp.pop %v1484
  %v1486 = vmul.f32 1.0, %v1485
  %1487 = vmatprep.subr.mxu0 0.0
  %1488 = vmatpush1.msra.mxu0 %v29
  %1489 = vmatprep.subr.mxu0 0.0
  %1490 = vmatpush1.msra.mxu0 %v30
  %1491 = vmatprep.subr.mxu0 0.0
  %1492 = vmatpush1.msra.mxu0 %v31
  %1493 = vmatprep.subr.mxu0 0.0
  %1494 = vmatpush1.msra.mxu0 %v32
  %1495 = vmatprep.subr.mxu0 0.0
  %1496 = vmatpush1.msra.mxu0 0.0
  %1497 = vmatprep.subr.mxu0 0.0
  %1498 = vmatpush1.msra.mxu0 0.0
  %1499 = vmatprep.subr.mxu0 0.0
  %1500 = vmatpush1.msra.mxu0 0.0
  %1501 = vmatprep.subr.mxu0 0.0
  %1502 = vmatpush1.msra.mxu0 0.0
  %1503 = vmatprep.subr.mxu0 0.0
  %1504 = vmatpush1.msra.mxu0 0.0
  %1505 = vmatprep.subr.mxu0 0.0
  %1506 = vmatpush1.msra.mxu0 0.0
  %1507 = vmatprep.subr.mxu0 0.0
  %1508 = vmatpush1.msra.mxu0 0.0
  %1509 = vmatprep.subr.mxu0 0.0
  %1510 = vmatpush1.msra.mxu0 0.0
  %1511 = vmatprep.subr.mxu0 0.0
  %1512 = vmatpush1.msra.mxu0 0.0
  %1513 = vmatprep.subr.mxu0 0.0
  %1514 = vmatpush1.msra.mxu0 0.0
  %1515 = vmatprep.subr.mxu0 0.0
  %1516 = vmatpush1.msra.mxu0 0.0
  %1517 = vmatprep.subr.mxu0 0.0
  %1518 = vmatpush1.msra.mxu0 0.0
  %1519 = vmatprep.subr.mxu0 0.0
  %1520 = vmatpush1.msra.mxu0 0.0
  %1521 = vmatprep.subr.mxu0 0.0
  %1522 = vmatpush1.msra.mxu0 0.0
  %1523 = vmatprep.subr.mxu0 0.0
  %1524 = vmatpush1.msra.mxu0 0.0
  %1525 = vmatprep.subr.mxu0 0.0
  %1526 = vmatpush1.msra.mxu0 0.0
  %1527 = vmatprep.subr.mxu0 0.0
  %1528 = vmatpush1.msra.mxu0 0.0
  %1529 = vmatprep.subr.mxu0 0.0
  %1530 = vmatpush1.msra.mxu0 0.0
  %1531 = vmatprep.subr.mxu0 0.0
  %1532 = vmatpush1.msra.mxu0 0.0
  %1533 = vmatprep.subr.mxu0 0.0
  %1534 = vmatpush1.msra.mxu0 0.0
  %1535 = vmatprep.subr.mxu0 0.0
  %1536 = vmatpush1.msra.mxu0 0.0
  %1537 = vmatprep.subr.mxu0 0.0
  %1538 = vmatpush1.msra.mxu0 0.0
  %1539 = vmatprep.subr.mxu0 0.0
  %1540 = vmatpush1.msra.mxu0 0.0
  %1541 = vmatprep.subr.mxu0 0.0
  %1542 = vmatpush1.msra.mxu0 0.0
  %1543 = vmatprep.subr.mxu0 0.0
  %1544 = vmatpush1.msra.mxu0 0.0
  %1545 = vmatprep.subr.mxu0 0.0
  %1546 = vmatpush1.msra.mxu0 0.0
  %1547 = vmatprep.subr.mxu0 0.0
  %1548 = vmatpush1.msra.mxu0 0.0
  %1549 = vmatprep.subr.mxu0 0.0
  %1550 = vmatpush1.msra.mxu0 0.0
  %1551 = vmatprep.mubr.f32.mxu0 0.0
  %1552 = vmatmul.mubr.f32.gmra.mrb[0].mxu0 %v1408
  %v1553 = vpop.f32.mrb[0].mxu0
  %v1554 = vadd.f32 0.0, %v1553
  %v1555 = vpop.f32.mrb[0].mxu0
  %1556 = vdwg.mxu0
  %1558 = vrot.lane.b32.xlu0 %v1554, 32
  %v1559 = vpop.permute.xlu0 %1558
  %v1561 = vadd.f32 %v1404, %v1559
  %v1562 = vxor.u32 %v1561, 2147483648
  %v1563 = vmul.f32 %v1562, 1.442695
  %v1564 = vpow.pop %v1563
  %v1565 = vadd.f32 %v1564, 1.0
  %v1566 = vrcp.pop %v1565
  %v1567 = vmul.f32 1.0, %v1566
  %1568 = vmatprep.subr.mxu0 0.0
  %1569 = vmatpush1.msra.mxu0 %v34
  %1570 = vmatprep.subr.mxu0 0.0
  %1571 = vmatpush1.msra.mxu0 %v35
  %1572 = vmatprep.subr.mxu0 0.0
  %1573 = vmatpush1.msra.mxu0 %v36
  %1574 = vmatprep.subr.mxu0 0.0
  %1575 = vmatpush1.msra.mxu0 %v37
  %1576 = vmatprep.subr.mxu0 0.0
  %1577 = vmatpush1.msra.mxu0 0.0
  %1578 = vmatprep.subr.mxu0 0.0
  %1579 = vmatpush1.msra.mxu0 0.0
  %1580 = vmatprep.subr.mxu0 0.0
  %1581 = vmatpush1.msra.mxu0 0.0
  %1582 = vmatprep.subr.mxu0 0.0
  %1583 = vmatpush1.msra.mxu0 0.0
  %1584 = vmatprep.subr.mxu0 0.0
  %1585 = vmatpush1.msra.mxu0 0.0
  %1586 = vmatprep.subr.mxu0 0.0
  %1587 = vmatpush1.msra.mxu0 0.0
  %1588 = vmatprep.subr.mxu0 0.0
  %1589 = vmatpush1.msra.mxu0 0.0
  %1590 = vmatprep.subr.mxu0 0.0
  %1591 = vmatpush1.msra.mxu0 0.0
  %1592 = vmatprep.subr.mxu0 0.0
  %1593 = vmatpush1.msra.mxu0 0.0
  %1594 = vmatprep.subr.mxu0 0.0
  %1595 = vmatpush1.msra.mxu0 0.0
  %1596 = vmatprep.subr.mxu0 0.0
  %1597 = vmatpush1.msra.mxu0 0.0
  %1598 = vmatprep.subr.mxu0 0.0
  %1599 = vmatpush1.msra.mxu0 0.0
  %1600 = vmatprep.subr.mxu0 0.0
  %1601 = vmatpush1.msra.mxu0 0.0
  %1602 = vmatprep.subr.mxu0 0.0
  %1603 = vmatpush1.msra.mxu0 0.0
  %1604 = vmatprep.subr.mxu0 0.0
  %1605 = vmatpush1.msra.mxu0 0.0
  %1606 = vmatprep.subr.mxu0 0.0
  %1607 = vmatpush1.msra.mxu0 0.0
  %1608 = vmatprep.subr.mxu0 0.0
  %1609 = vmatpush1.msra.mxu0 0.0
  %1610 = vmatprep.subr.mxu0 0.0
  %1611 = vmatpush1.msra.mxu0 0.0
  %1612 = vmatprep.subr.mxu0 0.0
  %1613 = vmatpush1.msra.mxu0 0.0
  %1614 = vmatprep.subr.mxu0 0.0
  %1615 = vmatpush1.msra.mxu0 0.0
  %1616 = vmatprep.subr.mxu0 0.0
  %1617 = vmatpush1.msra.mxu0 0.0
  %1618 = vmatprep.subr.mxu0 0.0
  %1619 = vmatpush1.msra.mxu0 0.0
  %1620 = vmatprep.subr.mxu0 0.0
  %1621 = vmatpush1.msra.mxu0 0.0
  %1622 = vmatprep.subr.mxu0 0.0
  %1623 = vmatpush1.msra.mxu0 0.0
  %1624 = vmatprep.subr.mxu0 0.0
  %1625 = vmatpush1.msra.mxu0 0.0
  %1626 = vmatprep.subr.mxu0 0.0
  %1627 = vmatpush1.msra.mxu0 0.0
  %1628 = vmatprep.subr.mxu0 0.0
  %1629 = vmatpush1.msra.mxu0 0.0
  %1630 = vmatprep.subr.mxu0 0.0
  %1631 = vmatpush1.msra.mxu0 0.0
  %1632 = vmatprep.mubr.f32.mxu0 0.0
  %1633 = vmatmul.mubr.f32.gmra.mrb[0].mxu0 %v1408
  %v1634 = vpop.f32.mrb[0].mxu0
  %v1635 = vadd.f32 0.0, %v1634
  %v1636 = vpop.f32.mrb[0].mxu0
  %1637 = vdwg.mxu0
  %1639 = vrot.lane.b32.xlu0 %v1635, 64
  %v1640 = vpop.permute.xlu0 %1639
  %v1642 = vadd.f32 %v1404, %v1640
  %v1643 = vtanh.pop %v1642
  %1644 = vmatprep.subr.mxu0 0.0
  %1645 = vmatpush1.msra.mxu0 %v39
  %1646 = vmatprep.subr.mxu0 0.0
  %1647 = vmatpush1.msra.mxu0 %v40
  %1648 = vmatprep.subr.mxu0 0.0
  %1649 = vmatpush1.msra.mxu0 %v41
  %1650 = vmatprep.subr.mxu0 0.0
  %1651 = vmatpush1.msra.mxu0 %v42
  %1652 = vmatprep.subr.mxu0 0.0
  %1653 = vmatpush1.msra.mxu0 0.0
  %1654 = vmatprep.subr.mxu0 0.0
  %1655 = vmatpush1.msra.mxu0 0.0
  %1656 = vmatprep.subr.mxu0 0.0
  %1657 = vmatpush1.msra.mxu0 0.0
  %1658 = vmatprep.subr.mxu0 0.0
  %1659 = vmatpush1.msra.mxu0 0.0
  %1660 = vmatprep.subr.mxu0 0.0
  %1661 = vmatpush1.msra.mxu0 0.0
  %1662 = vmatprep.subr.mxu0 0.0
  %1663 = vmatpush1.msra.mxu0 0.0
  %1664 = vmatprep.subr.mxu0 0.0
  %1665 = vmatpush1.msra.mxu0 0.0
  %1666 = vmatprep.subr.mxu0 0.0
  %1667 = vmatpush1.msra.mxu0 0.0
  %1668 = vmatprep.subr.mxu0 0.0
  %1669 = vmatpush1.msra.mxu0 0.0
  %1670 = vmatprep.subr.mxu0 0.0
  %1671 = vmatpush1.msra.mxu0 0.0
  %1672 = vmatprep.subr.mxu0 0.0
  %1673 = vmatpush1.msra.mxu0 0.0
  %1674 = vmatprep.subr.mxu0 0.0
  %1675 = vmatpush1.msra.mxu0 0.0
  %1676 = vmatprep.subr.mxu0 0.0
  %1677 = vmatpush1.msra.mxu0 0.0
  %1678 = vmatprep.subr.mxu0 0.0
  %1679 = vmatpush1.msra.mxu0 0.0
  %1680 = vmatprep.subr.mxu0 0.0
  %1681 = vmatpush1.msra.mxu0 0.0
  %1682 = vmatprep.subr.mxu0 0.0
  %1683 = vmatpush1.msra.mxu0 0.0
  %1684 = vmatprep.subr.mxu0 0.0
  %1685 = vmatpush1.msra.mxu0 0.0
  %1686 = vmatprep.subr.mxu0 0.0
  %1687 = vmatpush1.msra.mxu0 0.0
  %1688 = vmatprep.subr.mxu0 0.0
  %1689 = vmatpush1.msra.mxu0 0.0
  %1690 = vmatprep.subr.mxu0 0.0
  %1691 = vmatpush1.msra.mxu0 0.0
  %1692 = vmatprep.subr.mxu0 0.0
  %1693 = vmatpush1.msra.mxu0 0.0
  %1694 = vmatprep.subr.mxu0 0.0
  %1695 = vmatpush1.msra.mxu0 0.0
  %1696 = vmatprep.subr.mxu0 0.0
  %1697 = vmatpush1.msra.mxu0 0.0
  %1698 = vmatprep.subr.mxu0 0.0
  %1699 = vmatpush1.msra.mxu0 0.0
  %1700 = vmatprep.subr.mxu0 0.0
  %1701 = vmatpush1.msra.mxu0 0.0
  %1702 = vmatprep.subr.mxu0 0.0
  %1703 = vmatpush1.msra.mxu0 0.0
  %1704 = vmatprep.subr.mxu0 0.0
  %1705 = vmatpush1.msra.mxu0 0.0
  %1706 = vmatprep.subr.mxu0 0.0
  %1707 = vmatpush1.msra.mxu0 0.0
  %1708 = vmatprep.mubr.f32.mxu0 0.0
  %1709 = vmatmul.mubr.f32.gmra.mrb[0].mxu0 %v1408
  %v1710 = vpop.f32.mrb[0].mxu0
  %v1711 = vadd.f32 0.0, %v1710
  %v1712 = vpop.f32.mrb[0].mxu0
  %1713 = vdwg.mxu0
  %1715 = vrot.lane.b32.xlu0 %v1711, 96
  %v1716 = vpop.permute.xlu0 %1715
  %v1718 = vadd.f32 %v1404, %v1716
  %v1719 = vxor.u32 %v1718, 2147483648
  %v1720 = vmul.f32 %v1719, 1.442695
  %v1721 = vpow.pop %v1720
  %v1722 = vadd.f32 %v1721, 1.0
  %v1723 = vrcp.pop %v1722
  %v1724 = vmul.f32 1.0, %v1723
  %v1725 = vmul.f32 %v1567, %v1396
  %1727 = vrot.lane.b32.xlu0 %v1643, 64
  %v1728 = vpop.permute.xlu0 %1727
  %v1730 = vmul.f32 %v1486, %v1728
  %1732 = vrot.lane.b32.xlu0 %v1730, 32
  %v1733 = vpop.permute.xlu0 %1732
  %v1735 = vadd.f32 %v1725, %v1733
  %v1736 = vtanh.pop %v1735
  %1738 = vrot.lane.b32.xlu0 %v1736, 64
  %v1739 = vpop.permute.xlu0 %1738
  %v1741 = vmul.f32 %v1724, %v1739
  %s1742 = scalar_lea.vmem %s0, 40
  %v1743 = vld [vmem:[%s1742] sm:$0xff]
  %1745 = vrot.lane.b32.xlu0 %v1741, 32
  %v1746 = vpop.permute.xlu0 %1745
  %v1747 = vsel %vm46, %v1746, 0
  %1749 = vmatprep.subr.mxu0 0.0
  %1750 = vmatpush1.msra.mxu0 %v24
  %1751 = vmatprep.subr.mxu0 0.0
  %1752 = vmatpush1.msra.mxu0 %v25
  %1753 = vmatprep.subr.mxu0 0.0
  %1754 = vmatpush1.msra.mxu0 %v26
  %1755 = vmatprep.subr.mxu0 0.0
  %1756 = vmatpush1.msra.mxu0 %v27
  %1757 = vmatprep.subr.mxu0 0.0
  %1758 = vmatpush1.msra.mxu0 0.0
  %1759 = vmatprep.subr.mxu0 0.0
  %1760 = vmatpush1.msra.mxu0 0.0
  %1761 = vmatprep.subr.mxu0 0.0
  %1762 = vmatpush1.msra.mxu0 0.0
  %1763 = vmatprep.subr.mxu0 0.0
  %1764 = vmatpush1.msra.mxu0 0.0
  %1765 = vmatprep.subr.mxu0 0.0
  %1766 = vmatpush1.msra.mxu0 0.0
  %1767 = vmatprep.subr.mxu0 0.0
  %1768 = vmatpush1.msra.mxu0 0.0
  %1769 = vmatprep.subr.mxu0 0.0
  %1770 = vmatpush1.msra.mxu0 0.0
  %1771 = vmatprep.subr.mxu0 0.0
  %1772 = vmatpush1.msra.mxu0 0.0
  %1773 = vmatprep.subr.mxu0 0.0
  %1774 = vmatpush1.msra.mxu0 0.0
  %1775 = vmatprep.subr.mxu0 0.0
  %1776 = vmatpush1.msra.mxu0 0.0
  %1777 = vmatprep.subr.mxu0 0.0
  %1778 = vmatpush1.msra.mxu0 0.0
  %1779 = vmatprep.subr.mxu0 0.0
  %1780 = vmatpush1.msra.mxu0 0.0
  %1781 = vmatprep.subr.mxu0 0.0
  %1782 = vmatpush1.msra.mxu0 0.0
  %1783 = vmatprep.subr.mxu0 0.0
  %1784 = vmatpush1.msra.mxu0 0.0
  %1785 = vmatprep.subr.mxu0 0.0
  %1786 = vmatpush1.msra.mxu0 0.0
  %1787 = vmatprep.subr.mxu0 0.0
  %1788 = vmatpush1.msra.mxu0 0.0
  %1789 = vmatprep.subr.mxu0 0.0
  %1790 = vmatpush1.msra.mxu0 0.0
  %1791 = vmatprep.subr.mxu0 0.0
  %1792 = vmatpush1.msra.mxu0 0.0
  %1793 = vmatprep.subr.mxu0 0.0
  %1794 = vmatpush1.msra.mxu0 0.0
  %1795 = vmatprep.subr.mxu0 0.0
  %1796 = vmatpush1.msra.mxu0 0.0
  %1797 = vmatprep.subr.mxu0 0.0
  %1798 = vmatpush1.msra.mxu0 0.0
  %1799 = vmatprep.subr.mxu0 0.0
  %1800 = vmatpush1.msra.mxu0 0.0
  %1801 = vmatprep.subr.mxu0 0.0
  %1802 = vmatpush1.msra.mxu0 0.0
  %1803 = vmatprep.subr.mxu0 0.0
  %1804 = vmatpush1.msra.mxu0 0.0
  %1805 = vmatprep.subr.mxu0 0.0
  %1806 = vmatpush1.msra.mxu0 0.0
  %1807 = vmatprep.subr.mxu0 0.0
  %1808 = vmatpush1.msra.mxu0 0.0
  %1809 = vmatprep.subr.mxu0 0.0
  %1810 = vmatpush1.msra.mxu0 0.0
  %1811 = vmatprep.subr.mxu0 0.0
  %1812 = vmatpush1.msra.mxu0 0.0
  %1813 = vmatprep.mubr.f32.mxu0 0.0
  %1814 = vmatmul.mubr.f32.gmra.mrb[0].mxu0 %v1747
  %v1815 = vpop.f32.mrb[0].mxu0
  %v1816 = vadd.f32 0.0, %v1815
  %v1817 = vpop.f32.mrb[0].mxu0
  %1818 = vdwg.mxu0
  %v1819 = vadd.f32 %v1743, %v1816
  %v1820 = vxor.u32 %v1819, 2147483648
  %v1821 = vmul.f32 %v1820, 1.442695
  %v1822 = vpow.pop %v1821
  %v1823 = vadd.f32 %v1822, 1.0
  %v1824 = vrcp.pop %v1823
  %v1825 = vmul.f32 1.0, %v1824
  %1826 = vmatprep.subr.mxu0 0.0
  %1827 = vmatpush1.msra.mxu0 %v29
  %1828 = vmatprep.subr.mxu0 0.0
  %1829 = vmatpush1.msra.mxu0 %v30
  %1830 = vmatprep.subr.mxu0 0.0
  %1831 = vmatpush1.msra.mxu0 %v31
  %1832 = vmatprep.subr.mxu0 0.0
  %1833 = vmatpush1.msra.mxu0 %v32
  %1834 = vmatprep.subr.mxu0 0.0
  %1835 = vmatpush1.msra.mxu0 0.0
  %1836 = vmatprep.subr.mxu0 0.0
  %1837 = vmatpush1.msra.mxu0 0.0
  %1838 = vmatprep.subr.mxu0 0.0
  %1839 = vmatpush1.msra.mxu0 0.0
  %1840 = vmatprep.subr.mxu0 0.0
  %1841 = vmatpush1.msra.mxu0 0.0
  %1842 = vmatprep.subr.mxu0 0.0
  %1843 = vmatpush1.msra.mxu0 0.0
  %1844 = vmatprep.subr.mxu0 0.0
  %1845 = vmatpush1.msra.mxu0 0.0
  %1846 = vmatprep.subr.mxu0 0.0
  %1847 = vmatpush1.msra.mxu0 0.0
  %1848 = vmatprep.subr.mxu0 0.0
  %1849 = vmatpush1.msra.mxu0 0.0
  %1850 = vmatprep.subr.mxu0 0.0
  %1851 = vmatpush1.msra.mxu0 0.0
  %1852 = vmatprep.subr.mxu0 0.0
  %1853 = vmatpush1.msra.mxu0 0.0
  %1854 = vmatprep.subr.mxu0 0.0
  %1855 = vmatpush1.msra.mxu0 0.0
  %1856 = vmatprep.subr.mxu0 0.0
  %1857 = vmatpush1.msra.mxu0 0.0
  %1858 = vmatprep.subr.mxu0 0.0
  %1859 = vmatpush1.msra.mxu0 0.0
  %1860 = vmatprep.subr.mxu0 0.0
  %1861 = vmatpush1.msra.mxu0 0.0
  %1862 = vmatprep.subr.mxu0 0.0
  %1863 = vmatpush1.msra.mxu0 0.0
  %1864 = vmatprep.subr.mxu0 0.0
  %1865 = vmatpush1.msra.mxu0 0.0
  %1866 = vmatprep.subr.mxu0 0.0
  %1867 = vmatpush1.msra.mxu0 0.0
  %1868 = vmatprep.subr.mxu0 0.0
  %1869 = vmatpush1.msra.mxu0 0.0
  %1870 = vmatprep.subr.mxu0 0.0
  %1871 = vmatpush1.msra.mxu0 0.0
  %1872 = vmatprep.subr.mxu0 0.0
  %1873 = vmatpush1.msra.mxu0 0.0
  %1874 = vmatprep.subr.mxu0 0.0
  %1875 = vmatpush1.msra.mxu0 0.0
  %1876 = vmatprep.subr.mxu0 0.0
  %1877 = vmatpush1.msra.mxu0 0.0
  %1878 = vmatprep.subr.mxu0 0.0
  %1879 = vmatpush1.msra.mxu0 0.0
  %1880 = vmatprep.subr.mxu0 0.0
  %1881 = vmatpush1.msra.mxu0 0.0
  %1882 = vmatprep.subr.mxu0 0.0
  %1883 = vmatpush1.msra.mxu0 0.0
  %1884 = vmatprep.subr.mxu0 0.0
  %1885 = vmatpush1.msra.mxu0 0.0
  %1886 = vmatprep.subr.mxu0 0.0
  %1887 = vmatpush1.msra.mxu0 0.0
  %1888 = vmatprep.subr.mxu0 0.0
  %1889 = vmatpush1.msra.mxu0 0.0
  %1890 = vmatprep.mubr.f32.mxu0 0.0
  %1891 = vmatmul.mubr.f32.gmra.mrb[0].mxu0 %v1747
  %v1892 = vpop.f32.mrb[0].mxu0
  %v1893 = vadd.f32 0.0, %v1892
  %v1894 = vpop.f32.mrb[0].mxu0
  %1895 = vdwg.mxu0
  %1897 = vrot.lane.b32.xlu0 %v1893, 32
  %v1898 = vpop.permute.xlu0 %1897
  %v1900 = vadd.f32 %v1743, %v1898
  %v1901 = vxor.u32 %v1900, 2147483648
  %v1902 = vmul.f32 %v1901, 1.442695
  %v1903 = vpow.pop %v1902
  %v1904 = vadd.f32 %v1903, 1.0
  %v1905 = vrcp.pop %v1904
  %v1906 = vmul.f32 1.0, %v1905
  %1907 = vmatprep.subr.mxu0 0.0
  %1908 = vmatpush1.msra.mxu0 %v34
  %1909 = vmatprep.subr.mxu0 0.0
  %1910 = vmatpush1.msra.mxu0 %v35
  %1911 = vmatprep.subr.mxu0 0.0
  %1912 = vmatpush1.msra.mxu0 %v36
  %1913 = vmatprep.subr.mxu0 0.0
  %1914 = vmatpush1.msra.mxu0 %v37
  %1915 = vmatprep.subr.mxu0 0.0
  %1916 = vmatpush1.msra.mxu0 0.0
  %1917 = vmatprep.subr.mxu0 0.0
  %1918 = vmatpush1.msra.mxu0 0.0
  %1919 = vmatprep.subr.mxu0 0.0
  %1920 = vmatpush1.msra.mxu0 0.0
  %1921 = vmatprep.subr.mxu0 0.0
  %1922 = vmatpush1.msra.mxu0 0.0
  %1923 = vmatprep.subr.mxu0 0.0
  %1924 = vmatpush1.msra.mxu0 0.0
  %1925 = vmatprep.subr.mxu0 0.0
  %1926 = vmatpush1.msra.mxu0 0.0
  %1927 = vmatprep.subr.mxu0 0.0
  %1928 = vmatpush1.msra.mxu0 0.0
  %1929 = vmatprep.subr.mxu0 0.0
  %1930 = vmatpush1.msra.mxu0 0.0
  %1931 = vmatprep.subr.mxu0 0.0
  %1932 = vmatpush1.msra.mxu0 0.0
  %1933 = vmatprep.subr.mxu0 0.0
  %1934 = vmatpush1.msra.mxu0 0.0
  %1935 = vmatprep.subr.mxu0 0.0
  %1936 = vmatpush1.msra.mxu0 0.0
  %1937 = vmatprep.subr.mxu0 0.0
  %1938 = vmatpush1.msra.mxu0 0.0
  %1939 = vmatprep.subr.mxu0 0.0
  %1940 = vmatpush1.msra.mxu0 0.0
  %1941 = vmatprep.subr.mxu0 0.0
  %1942 = vmatpush1.msra.mxu0 0.0
  %1943 = vmatprep.subr.mxu0 0.0
  %1944 = vmatpush1.msra.mxu0 0.0
  %1945 = vmatprep.subr.mxu0 0.0
  %1946 = vmatpush1.msra.mxu0 0.0
  %1947 = vmatprep.subr.mxu0 0.0
  %1948 = vmatpush1.msra.mxu0 0.0
  %1949 = vmatprep.subr.mxu0 0.0
  %1950 = vmatpush1.msra.mxu0 0.0
  %1951 = vmatprep.subr.mxu0 0.0
  %1952 = vmatpush1.msra.mxu0 0.0
  %1953 = vmatprep.subr.mxu0 0.0
  %1954 = vmatpush1.msra.mxu0 0.0
  %1955 = vmatprep.subr.mxu0 0.0
  %1956 = vmatpush1.msra.mxu0 0.0
  %1957 = vmatprep.subr.mxu0 0.0
  %1958 = vmatpush1.msra.mxu0 0.0
  %1959 = vmatprep.subr.mxu0 0.0
  %1960 = vmatpush1.msra.mxu0 0.0
  %1961 = vmatprep.subr.mxu0 0.0
  %1962 = vmatpush1.msra.mxu0 0.0
  %1963 = vmatprep.subr.mxu0 0.0
  %1964 = vmatpush1.msra.mxu0 0.0
  %1965 = vmatprep.subr.mxu0 0.0
  %1966 = vmatpush1.msra.mxu0 0.0
  %1967 = vmatprep.subr.mxu0 0.0
  %1968 = vmatpush1.msra.mxu0 0.0
  %1969 = vmatprep.subr.mxu0 0.0
  %1970 = vmatpush1.msra.mxu0 0.0
  %1971 = vmatprep.mubr.f32.mxu0 0.0
  %1972 = vmatmul.mubr.f32.gmra.mrb[0].mxu0 %v1747
  %v1973 = vpop.f32.mrb[0].mxu0
  %v1974 = vadd.f32 0.0, %v1973
  %v1975 = vpop.f32.mrb[0].mxu0
  %1976 = vdwg.mxu0
  %1978 = vrot.lane.b32.xlu0 %v1974, 64
  %v1979 = vpop.permute.xlu0 %1978
  %v1981 = vadd.f32 %v1743, %v1979
  %v1982 = vtanh.pop %v1981
  %1983 = vmatprep.subr.mxu0 0.0
  %1984 = vmatpush1.msra.mxu0 %v39
  %1985 = vmatprep.subr.mxu0 0.0
  %1986 = vmatpush1.msra.mxu0 %v40
  %1987 = vmatprep.subr.mxu0 0.0
  %1988 = vmatpush1.msra.mxu0 %v41
  %1989 = vmatprep.subr.mxu0 0.0
  %1990 = vmatpush1.msra.mxu0 %v42
  %1991 = vmatprep.subr.mxu0 0.0
  %1992 = vmatpush1.msra.mxu0 0.0
  %1993 = vmatprep.subr.mxu0 0.0
  %1994 = vmatpush1.msra.mxu0 0.0
  %1995 = vmatprep.subr.mxu0 0.0
  %1996 = vmatpush1.msra.mxu0 0.0
  %1997 = vmatprep.subr.mxu0 0.0
  %1998 = vmatpush1.msra.mxu0 0.0
  %1999 = vmatprep.subr.mxu0 0.0
  %2000 = vmatpush1.msra.mxu0 0.0
  %2001 = vmatprep.subr.mxu0 0.0
  %2002 = vmatpush1.msra.mxu0 0.0
  %2003 = vmatprep.subr.mxu0 0.0
  %2004 = vmatpush1.msra.mxu0 0.0
  %2005 = vmatprep.subr.mxu0 0.0
  %2006 = vmatpush1.msra.mxu0 0.0
  %2007 = vmatprep.subr.mxu0 0.0
  %2008 = vmatpush1.msra.mxu0 0.0
  %2009 = vmatprep.subr.mxu0 0.0
  %2010 = vmatpush1.msra.mxu0 0.0
  %2011 = vmatprep.subr.mxu0 0.0
  %2012 = vmatpush1.msra.mxu0 0.0
  %2013 = vmatprep.subr.mxu0 0.0
  %2014 = vmatpush1.msra.mxu0 0.0
  %2015 = vmatprep.subr.mxu0 0.0
  %2016 = vmatpush1.msra.mxu0 0.0
  %2017 = vmatprep.subr.mxu0 0.0
  %2018 = vmatpush1.msra.mxu0 0.0
  %2019 = vmatprep.subr.mxu0 0.0
  %2020 = vmatpush1.msra.mxu0 0.0
  %2021 = vmatprep.subr.mxu0 0.0
  %2022 = vmatpush1.msra.mxu0 0.0
  %2023 = vmatprep.subr.mxu0 0.0
  %2024 = vmatpush1.msra.mxu0 0.0
  %2025 = vmatprep.subr.mxu0 0.0
  %2026 = vmatpush1.msra.mxu0 0.0
  %2027 = vmatprep.subr.mxu0 0.0
  %2028 = vmatpush1.msra.mxu0 0.0
  %2029 = vmatprep.subr.mxu0 0.0
  %2030 = vmatpush1.msra.mxu0 0.0
  %2031 = vmatprep.subr.mxu0 0.0
  %2032 = vmatpush1.msra.mxu0 0.0
  %2033 = vmatprep.subr.mxu0 0.0
  %2034 = vmatpush1.msra.mxu0 0.0
  %2035 = vmatprep.subr.mxu0 0.0
  %2036 = vmatpush1.msra.mxu0 0.0
  %2037 = vmatprep.subr.mxu0 0.0
  %2038 = vmatpush1.msra.mxu0 0.0
  %2039 = vmatprep.subr.mxu0 0.0
  %2040 = vmatpush1.msra.mxu0 0.0
  %2041 = vmatprep.subr.mxu0 0.0
  %2042 = vmatpush1.msra.mxu0 0.0
  %2043 = vmatprep.subr.mxu0 0.0
  %2044 = vmatpush1.msra.mxu0 0.0
  %2045 = vmatprep.subr.mxu0 0.0
  %2046 = vmatpush1.msra.mxu0 0.0
  %2047 = vmatprep.mubr.f32.mxu0 0.0
  %2048 = vmatmul.mubr.f32.gmra.mrb[0].mxu0 %v1747
  %v2049 = vpop.f32.mrb[0].mxu0
  %v2050 = vadd.f32 0.0, %v2049
  %v2051 = vpop.f32.mrb[0].mxu0
  %2052 = vdwg.mxu0
  %2054 = vrot.lane.b32.xlu0 %v2050, 96
  %v2055 = vpop.permute.xlu0 %2054
  %v2057 = vadd.f32 %v1743, %v2055
  %v2058 = vxor.u32 %v2057, 2147483648
  %v2059 = vmul.f32 %v2058, 1.442695
  %v2060 = vpow.pop %v2059
  %v2061 = vadd.f32 %v2060, 1.0
  %v2062 = vrcp.pop %v2061
  %v2063 = vmul.f32 1.0, %v2062
  %v2064 = vmul.f32 %v1906, %v1735
  %2066 = vrot.lane.b32.xlu0 %v1982, 64
  %v2067 = vpop.permute.xlu0 %2066
  %v2069 = vmul.f32 %v1825, %v2067
  %2071 = vrot.lane.b32.xlu0 %v2069, 32
  %v2072 = vpop.permute.xlu0 %2071
  %v2074 = vadd.f32 %v2064, %v2072
  %v2075 = vtanh.pop %v2074
  %2077 = vrot.lane.b32.xlu0 %v2075, 64
  %v2078 = vpop.permute.xlu0 %2077
  %v2080 = vmul.f32 %v2063, %v2078
  %s2081 = scalar_lea.vmem %s0, 48
  %v2082 = vld [vmem:[%s2081] sm:$0xff]
  %2084 = vrot.lane.b32.xlu0 %v2080, 32
  %v2085 = vpop.permute.xlu0 %2084
  %v2086 = vsel %vm46, %v2085, 0
  %2088 = vmatprep.subr.mxu0 0.0
  %2089 = vmatpush1.msra.mxu0 %v24
  %2090 = vmatprep.subr.mxu0 0.0
  %2091 = vmatpush1.msra.mxu0 %v25
  %2092 = vmatprep.subr.mxu0 0.0
  %2093 = vmatpush1.msra.mxu0 %v26
  %2094 = vmatprep.subr.mxu0 0.0
  %2095 = vmatpush1.msra.mxu0 %v27
  %2096 = vmatprep.subr.mxu0 0.0
  %2097 = vmatpush1.msra.mxu0 0.0
  %2098 = vmatprep.subr.mxu0 0.0
  %2099 = vmatpush1.msra.mxu0 0.0
  %2100 = vmatprep.subr.mxu0 0.0
  %2101 = vmatpush1.msra.mxu0 0.0
  %2102 = vmatprep.subr.mxu0 0.0
  %2103 = vmatpush1.msra.mxu0 0.0
  %2104 = vmatprep.subr.mxu0 0.0
  %2105 = vmatpush1.msra.mxu0 0.0
  %2106 = vmatprep.subr.mxu0 0.0
  %2107 = vmatpush1.msra.mxu0 0.0
  %2108 = vmatprep.subr.mxu0 0.0
  %2109 = vmatpush1.msra.mxu0 0.0
  %2110 = vmatprep.subr.mxu0 0.0
  %2111 = vmatpush1.msra.mxu0 0.0
  %2112 = vmatprep.subr.mxu0 0.0
  %2113 = vmatpush1.msra.mxu0 0.0
  %2114 = vmatprep.subr.mxu0 0.0
  %2115 = vmatpush1.msra.mxu0 0.0
  %2116 = vmatprep.subr.mxu0 0.0
  %2117 = vmatpush1.msra.mxu0 0.0
  %2118 = vmatprep.subr.mxu0 0.0
  %2119 = vmatpush1.msra.mxu0 0.0
  %2120 = vmatprep.subr.mxu0 0.0
  %2121 = vmatpush1.msra.mxu0 0.0
  %2122 = vmatprep.subr.mxu0 0.0
  %2123 = vmatpush1.msra.mxu0 0.0
  %2124 = vmatprep.subr.mxu0 0.0
  %2125 = vmatpush1.msra.mxu0 0.0
  %2126 = vmatprep.subr.mxu0 0.0
  %2127 = vmatpush1.msra.mxu0 0.0
  %2128 = vmatprep.subr.mxu0 0.0
  %2129 = vmatpush1.msra.mxu0 0.0
  %2130 = vmatprep.subr.mxu0 0.0
  %2131 = vmatpush1.msra.mxu0 0.0
  %2132 = vmatprep.subr.mxu0 0.0
  %2133 = vmatpush1.msra.mxu0 0.0
  %2134 = vmatprep.subr.mxu0 0.0
  %2135 = vmatpush1.msra.mxu0 0.0
  %2136 = vmatprep.subr.mxu0 0.0
  %2137 = vmatpush1.msra.mxu0 0.0
  %2138 = vmatprep.subr.mxu0 0.0
  %2139 = vmatpush1.msra.mxu0 0.0
  %2140 = vmatprep.subr.mxu0 0.0
  %2141 = vmatpush1.msra.mxu0 0.0
  %2142 = vmatprep.subr.mxu0 0.0
  %2143 = vmatpush1.msra.mxu0 0.0
  %2144 = vmatprep.subr.mxu0 0.0
  %2145 = vmatpush1.msra.mxu0 0.0
  %2146 = vmatprep.subr.mxu0 0.0
  %2147 = vmatpush1.msra.mxu0 0.0
  %2148 = vmatprep.subr.mxu0 0.0
  %2149 = vmatpush1.msra.mxu0 0.0
  %2150 = vmatprep.subr.mxu0 0.0
  %2151 = vmatpush1.msra.mxu0 0.0
  %2152 = vmatprep.mubr.f32.mxu0 0.0
  %2153 = vmatmul.mubr.f32.gmra.mrb[0].mxu0 %v2086
  %v2154 = vpop.f32.mrb[0].mxu0
  %v2155 = vadd.f32 0.0, %v2154
  %v2156 = vpop.f32.mrb[0].mxu0
  %2157 = vdwg.mxu0
  %v2158 = vadd.f32 %v2082, %v2155
  %v2159 = vxor.u32 %v2158, 2147483648
  %v2160 = vmul.f32 %v2159, 1.442695
  %v2161 = vpow.pop %v2160
  %v2162 = vadd.f32 %v2161, 1.0
  %v2163 = vrcp.pop %v2162
  %v2164 = vmul.f32 1.0, %v2163
  %2165 = vmatprep.subr.mxu0 0.0
  %2166 = vmatpush1.msra.mxu0 %v29
  %2167 = vmatprep.subr.mxu0 0.0
  %2168 = vmatpush1.msra.mxu0 %v30
  %2169 = vmatprep.subr.mxu0 0.0
  %2170 = vmatpush1.msra.mxu0 %v31
  %2171 = vmatprep.subr.mxu0 0.0
  %2172 = vmatpush1.msra.mxu0 %v32
  %2173 = vmatprep.subr.mxu0 0.0
  %2174 = vmatpush1.msra.mxu0 0.0
  %2175 = vmatprep.subr.mxu0 0.0
  %2176 = vmatpush1.msra.mxu0 0.0
  %2177 = vmatprep.subr.mxu0 0.0
  %2178 = vmatpush1.msra.mxu0 0.0
  %2179 = vmatprep.subr.mxu0 0.0
  %2180 = vmatpush1.msra.mxu0 0.0
  %2181 = vmatprep.subr.mxu0 0.0
  %2182 = vmatpush1.msra.mxu0 0.0
  %2183 = vmatprep.subr.mxu0 0.0
  %2184 = vmatpush1.msra.mxu0 0.0
  %2185 = vmatprep.subr.mxu0 0.0
  %2186 = vmatpush1.msra.mxu0 0.0
  %2187 = vmatprep.subr.mxu0 0.0
  %2188 = vmatpush1.msra.mxu0 0.0
  %2189 = vmatprep.subr.mxu0 0.0
  %2190 = vmatpush1.msra.mxu0 0.0
  %2191 = vmatprep.subr.mxu0 0.0
  %2192 = vmatpush1.msra.mxu0 0.0
  %2193 = vmatprep.subr.mxu0 0.0
  %2194 = vmatpush1.msra.mxu0 0.0
  %2195 = vmatprep.subr.mxu0 0.0
  %2196 = vmatpush1.msra.mxu0 0.0
  %2197 = vmatprep.subr.mxu0 0.0
  %2198 = vmatpush1.msra.mxu0 0.0
  %2199 = vmatprep.subr.mxu0 0.0
  %2200 = vmatpush1.msra.mxu0 0.0
  %2201 = vmatprep.subr.mxu0 0.0
  %2202 = vmatpush1.msra.mxu0 0.0
  %2203 = vmatprep.subr.mxu0 0.0
  %2204 = vmatpush1.msra.mxu0 0.0
  %2205 = vmatprep.subr.mxu0 0.0
  %2206 = vmatpush1.msra.mxu0 0.0
  %2207 = vmatprep.subr.mxu0 0.0
  %2208 = vmatpush1.msra.mxu0 0.0
  %2209 = vmatprep.subr.mxu0 0.0
  %2210 = vmatpush1.msra.mxu0 0.0
  %2211 = vmatprep.subr.mxu0 0.0
  %2212 = vmatpush1.msra.mxu0 0.0
  %2213 = vmatprep.subr.mxu0 0.0
  %2214 = vmatpush1.msra.mxu0 0.0
  %2215 = vmatprep.subr.mxu0 0.0
  %2216 = vmatpush1.msra.mxu0 0.0
  %2217 = vmatprep.subr.mxu0 0.0
  %2218 = vmatpush1.msra.mxu0 0.0
  %2219 = vmatprep.subr.mxu0 0.0
  %2220 = vmatpush1.msra.mxu0 0.0
  %2221 = vmatprep.subr.mxu0 0.0
  %2222 = vmatpush1.msra.mxu0 0.0
  %2223 = vmatprep.subr.mxu0 0.0
  %2224 = vmatpush1.msra.mxu0 0.0
  %2225 = vmatprep.subr.mxu0 0.0
  %2226 = vmatpush1.msra.mxu0 0.0
  %2227 = vmatprep.subr.mxu0 0.0
  %2228 = vmatpush1.msra.mxu0 0.0
  %2229 = vmatprep.mubr.f32.mxu0 0.0
  %2230 = vmatmul.mubr.f32.gmra.mrb[0].mxu0 %v2086
  %v2231 = vpop.f32.mrb[0].mxu0
  %v2232 = vadd.f32 0.0, %v2231
  %v2233 = vpop.f32.mrb[0].mxu0
  %2234 = vdwg.mxu0
  %2236 = vrot.lane.b32.xlu0 %v2232, 32
  %v2237 = vpop.permute.xlu0 %2236
  %v2239 = vadd.f32 %v2082, %v2237
  %v2240 = vxor.u32 %v2239, 2147483648
  %v2241 = vmul.f32 %v2240, 1.442695
  %v2242 = vpow.pop %v2241
  %v2243 = vadd.f32 %v2242, 1.0
  %v2244 = vrcp.pop %v2243
  %v2245 = vmul.f32 1.0, %v2244
  %2246 = vmatprep.subr.mxu0 0.0
  %2247 = vmatpush1.msra.mxu0 %v34
  %2248 = vmatprep.subr.mxu0 0.0
  %2249 = vmatpush1.msra.mxu0 %v35
  %2250 = vmatprep.subr.mxu0 0.0
  %2251 = vmatpush1.msra.mxu0 %v36
  %2252 = vmatprep.subr.mxu0 0.0
  %2253 = vmatpush1.msra.mxu0 %v37
  %2254 = vmatprep.subr.mxu0 0.0
  %2255 = vmatpush1.msra.mxu0 0.0
  %2256 = vmatprep.subr.mxu0 0.0
  %2257 = vmatpush1.msra.mxu0 0.0
  %2258 = vmatprep.subr.mxu0 0.0
  %2259 = vmatpush1.msra.mxu0 0.0
  %2260 = vmatprep.subr.mxu0 0.0
  %2261 = vmatpush1.msra.mxu0 0.0
  %2262 = vmatprep.subr.mxu0 0.0
  %2263 = vmatpush1.msra.mxu0 0.0
  %2264 = vmatprep.subr.mxu0 0.0
  %2265 = vmatpush1.msra.mxu0 0.0
  %2266 = vmatprep.subr.mxu0 0.0
  %2267 = vmatpush1.msra.mxu0 0.0
  %2268 = vmatprep.subr.mxu0 0.0
  %2269 = vmatpush1.msra.mxu0 0.0
  %2270 = vmatprep.subr.mxu0 0.0
  %2271 = vmatpush1.msra.mxu0 0.0
  %2272 = vmatprep.subr.mxu0 0.0
  %2273 = vmatpush1.msra.mxu0 0.0
  %2274 = vmatprep.subr.mxu0 0.0
  %2275 = vmatpush1.msra.mxu0 0.0
  %2276 = vmatprep.subr.mxu0 0.0
  %2277 = vmatpush1.msra.mxu0 0.0
  %2278 = vmatprep.subr.mxu0 0.0
  %2279 = vmatpush1.msra.mxu0 0.0
  %2280 = vmatprep.subr.mxu0 0.0
  %2281 = vmatpush1.msra.mxu0 0.0
  %2282 = vmatprep.subr.mxu0 0.0
  %2283 = vmatpush1.msra.mxu0 0.0
  %2284 = vmatprep.subr.mxu0 0.0
  %2285 = vmatpush1.msra.mxu0 0.0
  %2286 = vmatprep.subr.mxu0 0.0
  %2287 = vmatpush1.msra.mxu0 0.0
  %2288 = vmatprep.subr.mxu0 0.0
  %2289 = vmatpush1.msra.mxu0 0.0
  %2290 = vmatprep.subr.mxu0 0.0
  %2291 = vmatpush1.msra.mxu0 0.0
  %2292 = vmatprep.subr.mxu0 0.0
  %2293 = vmatpush1.msra.mxu0 0.0
  %2294 = vmatprep.subr.mxu0 0.0
  %2295 = vmatpush1.msra.mxu0 0.0
  %2296 = vmatprep.subr.mxu0 0.0
  %2297 = vmatpush1.msra.mxu0 0.0
  %2298 = vmatprep.subr.mxu0 0.0
  %2299 = vmatpush1.msra.mxu0 0.0
  %2300 = vmatprep.subr.mxu0 0.0
  %2301 = vmatpush1.msra.mxu0 0.0
  %2302 = vmatprep.subr.mxu0 0.0
  %2303 = vmatpush1.msra.mxu0 0.0
  %2304 = vmatprep.subr.mxu0 0.0
  %2305 = vmatpush1.msra.mxu0 0.0
  %2306 = vmatprep.subr.mxu0 0.0
  %2307 = vmatpush1.msra.mxu0 0.0
  %2308 = vmatprep.subr.mxu0 0.0
  %2309 = vmatpush1.msra.mxu0 0.0
  %2310 = vmatprep.mubr.f32.mxu0 0.0
  %2311 = vmatmul.mubr.f32.gmra.mrb[0].mxu0 %v2086
  %v2312 = vpop.f32.mrb[0].mxu0
  %v2313 = vadd.f32 0.0, %v2312
  %v2314 = vpop.f32.mrb[0].mxu0
  %2315 = vdwg.mxu0
  %2317 = vrot.lane.b32.xlu0 %v2313, 64
  %v2318 = vpop.permute.xlu0 %2317
  %v2320 = vadd.f32 %v2082, %v2318
  %v2321 = vtanh.pop %v2320
  %2322 = vmatprep.subr.mxu0 0.0
  %2323 = vmatpush1.msra.mxu0 %v39
  %2324 = vmatprep.subr.mxu0 0.0
  %2325 = vmatpush1.msra.mxu0 %v40
  %2326 = vmatprep.subr.mxu0 0.0
  %2327 = vmatpush1.msra.mxu0 %v41
  %2328 = vmatprep.subr.mxu0 0.0
  %2329 = vmatpush1.msra.mxu0 %v42
  %2330 = vmatprep.subr.mxu0 0.0
  %2331 = vmatpush1.msra.mxu0 0.0
  %2332 = vmatprep.subr.mxu0 0.0
  %2333 = vmatpush1.msra.mxu0 0.0
  %2334 = vmatprep.subr.mxu0 0.0
  %2335 = vmatpush1.msra.mxu0 0.0
  %2336 = vmatprep.subr.mxu0 0.0
  %2337 = vmatpush1.msra.mxu0 0.0
  %2338 = vmatprep.subr.mxu0 0.0
  %2339 = vmatpush1.msra.mxu0 0.0
  %2340 = vmatprep.subr.mxu0 0.0
  %2341 = vmatpush1.msra.mxu0 0.0
  %2342 = vmatprep.subr.mxu0 0.0
  %2343 = vmatpush1.msra.mxu0 0.0
  %2344 = vmatprep.subr.mxu0 0.0
  %2345 = vmatpush1.msra.mxu0 0.0
  %2346 = vmatprep.subr.mxu0 0.0
  %2347 = vmatpush1.msra.mxu0 0.0
  %2348 = vmatprep.subr.mxu0 0.0
  %2349 = vmatpush1.msra.mxu0 0.0
  %2350 = vmatprep.subr.mxu0 0.0
  %2351 = vmatpush1.msra.mxu0 0.0
  %2352 = vmatprep.subr.mxu0 0.0
  %2353 = vmatpush1.msra.mxu0 0.0
  %2354 = vmatprep.subr.mxu0 0.0
  %2355 = vmatpush1.msra.mxu0 0.0
  %2356 = vmatprep.subr.mxu0 0.0
  %2357 = vmatpush1.msra.mxu0 0.0
  %2358 = vmatprep.subr.mxu0 0.0
  %2359 = vmatpush1.msra.mxu0 0.0
  %2360 = vmatprep.subr.mxu0 0.0
  %2361 = vmatpush1.msra.mxu0 0.0
  %2362 = vmatprep.subr.mxu0 0.0
  %2363 = vmatpush1.msra.mxu0 0.0
  %2364 = vmatprep.subr.mxu0 0.0
  %2365 = vmatpush1.msra.mxu0 0.0
  %2366 = vmatprep.subr.mxu0 0.0
  %2367 = vmatpush1.msra.mxu0 0.0
  %2368 = vmatprep.subr.mxu0 0.0
  %2369 = vmatpush1.msra.mxu0 0.0
  %2370 = vmatprep.subr.mxu0 0.0
  %2371 = vmatpush1.msra.mxu0 0.0
  %2372 = vmatprep.subr.mxu0 0.0
  %2373 = vmatpush1.msra.mxu0 0.0
  %2374 = vmatprep.subr.mxu0 0.0
  %2375 = vmatpush1.msra.mxu0 0.0
  %2376 = vmatprep.subr.mxu0 0.0
  %2377 = vmatpush1.msra.mxu0 0.0
  %2378 = vmatprep.subr.mxu0 0.0
  %2379 = vmatpush1.msra.mxu0 0.0
  %2380 = vmatprep.subr.mxu0 0.0
  %2381 = vmatpush1.msra.mxu0 0.0
  %2382 = vmatprep.subr.mxu0 0.0
  %2383 = vmatpush1.msra.mxu0 0.0
  %2384 = vmatprep.subr.mxu0 0.0
  %2385 = vmatpush1.msra.mxu0 0.0
  %2386 = vmatprep.mubr.f32.mxu0 0.0
  %2387 = vmatmul.mubr.f32.gmra.mrb[0].mxu0 %v2086
  %v2388 = vpop.f32.mrb[0].mxu0
  %v2389 = vadd.f32 0.0, %v2388
  %v2390 = vpop.f32.mrb[0].mxu0
  %2391 = vdwg.mxu0
  %2393 = vrot.lane.b32.xlu0 %v2389, 96
  %v2394 = vpop.permute.xlu0 %2393
  %v2396 = vadd.f32 %v2082, %v2394
  %v2397 = vxor.u32 %v2396, 2147483648
  %v2398 = vmul.f32 %v2397, 1.442695
  %v2399 = vpow.pop %v2398
  %v2400 = vadd.f32 %v2399, 1.0
  %v2401 = vrcp.pop %v2400
  %v2402 = vmul.f32 1.0, %v2401
  %v2403 = vmul.f32 %v2245, %v2074
  %2405 = vrot.lane.b32.xlu0 %v2321, 64
  %v2406 = vpop.permute.xlu0 %2405
  %v2408 = vmul.f32 %v2164, %v2406
  %2410 = vrot.lane.b32.xlu0 %v2408, 32
  %v2411 = vpop.permute.xlu0 %2410
  %v2413 = vadd.f32 %v2403, %v2411
  %v2414 = vtanh.pop %v2413
  %2416 = vrot.lane.b32.xlu0 %v2414, 64
  %v2417 = vpop.permute.xlu0 %2416
  %v2419 = vmul.f32 %v2402, %v2417
  %s2420 = scalar_lea.vmem %s0, 56
  %v2421 = vld [vmem:[%s2420] sm:$0xff]
  %2423 = vrot.lane.b32.xlu0 %v2419, 32
  %v2424 = vpop.permute.xlu0 %2423
  %v2425 = vsel %vm46, %v2424, 0
  %2427 = vmatprep.subr.mxu0 0.0
  %2428 = vmatpush1.msra.mxu0 %v24
  %2429 = vmatprep.subr.mxu0 0.0
  %2430 = vmatpush1.msra.mxu0 %v25
  %2431 = vmatprep.subr.mxu0 0.0
  %2432 = vmatpush1.msra.mxu0 %v26
  %2433 = vmatprep.subr.mxu0 0.0
  %2434 = vmatpush1.msra.mxu0 %v27
  %2435 = vmatprep.subr.mxu0 0.0
  %2436 = vmatpush1.msra.mxu0 0.0
  %2437 = vmatprep.subr.mxu0 0.0
  %2438 = vmatpush1.msra.mxu0 0.0
  %2439 = vmatprep.subr.mxu0 0.0
  %2440 = vmatpush1.msra.mxu0 0.0
  %2441 = vmatprep.subr.mxu0 0.0
  %2442 = vmatpush1.msra.mxu0 0.0
  %2443 = vmatprep.subr.mxu0 0.0
  %2444 = vmatpush1.msra.mxu0 0.0
  %2445 = vmatprep.subr.mxu0 0.0
  %2446 = vmatpush1.msra.mxu0 0.0
  %2447 = vmatprep.subr.mxu0 0.0
  %2448 = vmatpush1.msra.mxu0 0.0
  %2449 = vmatprep.subr.mxu0 0.0
  %2450 = vmatpush1.msra.mxu0 0.0
  %2451 = vmatprep.subr.mxu0 0.0
  %2452 = vmatpush1.msra.mxu0 0.0
  %2453 = vmatprep.subr.mxu0 0.0
  %2454 = vmatpush1.msra.mxu0 0.0
  %2455 = vmatprep.subr.mxu0 0.0
  %2456 = vmatpush1.msra.mxu0 0.0
  %2457 = vmatprep.subr.mxu0 0.0
  %2458 = vmatpush1.msra.mxu0 0.0
  %2459 = vmatprep.subr.mxu0 0.0
  %2460 = vmatpush1.msra.mxu0 0.0
  %2461 = vmatprep.subr.mxu0 0.0
  %2462 = vmatpush1.msra.mxu0 0.0
  %2463 = vmatprep.subr.mxu0 0.0
  %2464 = vmatpush1.msra.mxu0 0.0
  %2465 = vmatprep.subr.mxu0 0.0
  %2466 = vmatpush1.msra.mxu0 0.0
  %2467 = vmatprep.subr.mxu0 0.0
  %2468 = vmatpush1.msra.mxu0 0.0
  %2469 = vmatprep.subr.mxu0 0.0
  %2470 = vmatpush1.msra.mxu0 0.0
  %2471 = vmatprep.subr.mxu0 0.0
  %2472 = vmatpush1.msra.mxu0 0.0
  %2473 = vmatprep.subr.mxu0 0.0
  %2474 = vmatpush1.msra.mxu0 0.0
  %2475 = vmatprep.subr.mxu0 0.0
  %2476 = vmatpush1.msra.mxu0 0.0
  %2477 = vmatprep.subr.mxu0 0.0
  %2478 = vmatpush1.msra.mxu0 0.0
  %2479 = vmatprep.subr.mxu0 0.0
  %2480 = vmatpush1.msra.mxu0 0.0
  %2481 = vmatprep.subr.mxu0 0.0
  %2482 = vmatpush1.msra.mxu0 0.0
  %2483 = vmatprep.subr.mxu0 0.0
  %2484 = vmatpush1.msra.mxu0 0.0
  %2485 = vmatprep.subr.mxu0 0.0
  %2486 = vmatpush1.msra.mxu0 0.0
  %2487 = vmatprep.subr.mxu0 0.0
  %2488 = vmatpush1.msra.mxu0 0.0
  %2489 = vmatprep.subr.mxu0 0.0
  %2490 = vmatpush1.msra.mxu0 0.0
  %2491 = vmatprep.mubr.f32.mxu0 0.0
  %2492 = vmatmul.mubr.f32.gmra.mrb[0].mxu0 %v2425
  %v2493 = vpop.f32.mrb[0].mxu0
  %v2494 = vadd.f32 0.0, %v2493
  %v2495 = vpop.f32.mrb[0].mxu0
  %2496 = vdwg.mxu0
  %v2497 = vadd.f32 %v2421, %v2494
  %v2498 = vxor.u32 %v2497, 2147483648
  %v2499 = vmul.f32 %v2498, 1.442695
  %v2500 = vpow.pop %v2499
  %v2501 = vadd.f32 %v2500, 1.0
  %v2502 = vrcp.pop %v2501
  %v2503 = vmul.f32 1.0, %v2502
  %2504 = vmatprep.subr.mxu0 0.0
  %2505 = vmatpush1.msra.mxu0 %v29
  %2506 = vmatprep.subr.mxu0 0.0
  %2507 = vmatpush1.msra.mxu0 %v30
  %2508 = vmatprep.subr.mxu0 0.0
  %2509 = vmatpush1.msra.mxu0 %v31
  %2510 = vmatprep.subr.mxu0 0.0
  %2511 = vmatpush1.msra.mxu0 %v32
  %2512 = vmatprep.subr.mxu0 0.0
  %2513 = vmatpush1.msra.mxu0 0.0
  %2514 = vmatprep.subr.mxu0 0.0
  %2515 = vmatpush1.msra.mxu0 0.0
  %2516 = vmatprep.subr.mxu0 0.0
  %2517 = vmatpush1.msra.mxu0 0.0
  %2518 = vmatprep.subr.mxu0 0.0
  %2519 = vmatpush1.msra.mxu0 0.0
  %2520 = vmatprep.subr.mxu0 0.0
  %2521 = vmatpush1.msra.mxu0 0.0
  %2522 = vmatprep.subr.mxu0 0.0
  %2523 = vmatpush1.msra.mxu0 0.0
  %2524 = vmatprep.subr.mxu0 0.0
  %2525 = vmatpush1.msra.mxu0 0.0
  %2526 = vmatprep.subr.mxu0 0.0
  %2527 = vmatpush1.msra.mxu0 0.0
  %2528 = vmatprep.subr.mxu0 0.0
  %2529 = vmatpush1.msra.mxu0 0.0
  %2530 = vmatprep.subr.mxu0 0.0
  %2531 = vmatpush1.msra.mxu0 0.0
  %2532 = vmatprep.subr.mxu0 0.0
  %2533 = vmatpush1.msra.mxu0 0.0
  %2534 = vmatprep.subr.mxu0 0.0
  %2535 = vmatpush1.msra.mxu0 0.0
  %2536 = vmatprep.subr.mxu0 0.0
  %2537 = vmatpush1.msra.mxu0 0.0
  %2538 = vmatprep.subr.mxu0 0.0
  %2539 = vmatpush1.msra.mxu0 0.0
  %2540 = vmatprep.subr.mxu0 0.0
  %2541 = vmatpush1.msra.mxu0 0.0
  %2542 = vmatprep.subr.mxu0 0.0
  %2543 = vmatpush1.msra.mxu0 0.0
  %2544 = vmatprep.subr.mxu0 0.0
  %2545 = vmatpush1.msra.mxu0 0.0
  %2546 = vmatprep.subr.mxu0 0.0
  %2547 = vmatpush1.msra.mxu0 0.0
  %2548 = vmatprep.subr.mxu0 0.0
  %2549 = vmatpush1.msra.mxu0 0.0
  %2550 = vmatprep.subr.mxu0 0.0
  %2551 = vmatpush1.msra.mxu0 0.0
  %2552 = vmatprep.subr.mxu0 0.0
  %2553 = vmatpush1.msra.mxu0 0.0
  %2554 = vmatprep.subr.mxu0 0.0
  %2555 = vmatpush1.msra.mxu0 0.0
  %2556 = vmatprep.subr.mxu0 0.0
  %2557 = vmatpush1.msra.mxu0 0.0
  %2558 = vmatprep.subr.mxu0 0.0
  %2559 = vmatpush1.msra.mxu0 0.0
  %2560 = vmatprep.subr.mxu0 0.0
  %2561 = vmatpush1.msra.mxu0 0.0
  %2562 = vmatprep.subr.mxu0 0.0
  %2563 = vmatpush1.msra.mxu0 0.0
  %2564 = vmatprep.subr.mxu0 0.0
  %2565 = vmatpush1.msra.mxu0 0.0
  %2566 = vmatprep.subr.mxu0 0.0
  %2567 = vmatpush1.msra.mxu0 0.0
  %2568 = vmatprep.mubr.f32.mxu0 0.0
  %2569 = vmatmul.mubr.f32.gmra.mrb[0].mxu0 %v2425
  %v2570 = vpop.f32.mrb[0].mxu0
  %v2571 = vadd.f32 0.0, %v2570
  %v2572 = vpop.f32.mrb[0].mxu0
  %2573 = vdwg.mxu0
  %2575 = vrot.lane.b32.xlu0 %v2571, 32
  %v2576 = vpop.permute.xlu0 %2575
  %v2578 = vadd.f32 %v2421, %v2576
  %v2579 = vxor.u32 %v2578, 2147483648
  %v2580 = vmul.f32 %v2579, 1.442695
  %v2581 = vpow.pop %v2580
  %v2582 = vadd.f32 %v2581, 1.0
  %v2583 = vrcp.pop %v2582
  %v2584 = vmul.f32 1.0, %v2583
  %2585 = vmatprep.subr.mxu0 0.0
  %2586 = vmatpush1.msra.mxu0 %v34
  %2587 = vmatprep.subr.mxu0 0.0
  %2588 = vmatpush1.msra.mxu0 %v35
  %2589 = vmatprep.subr.mxu0 0.0
  %2590 = vmatpush1.msra.mxu0 %v36
  %2591 = vmatprep.subr.mxu0 0.0
  %2592 = vmatpush1.msra.mxu0 %v37
  %2593 = vmatprep.subr.mxu0 0.0
  %2594 = vmatpush1.msra.mxu0 0.0
  %2595 = vmatprep.subr.mxu0 0.0
  %2596 = vmatpush1.msra.mxu0 0.0
  %2597 = vmatprep.subr.mxu0 0.0
  %2598 = vmatpush1.msra.mxu0 0.0
  %2599 = vmatprep.subr.mxu0 0.0
  %2600 = vmatpush1.msra.mxu0 0.0
  %2601 = vmatprep.subr.mxu0 0.0
  %2602 = vmatpush1.msra.mxu0 0.0
  %2603 = vmatprep.subr.mxu0 0.0
  %2604 = vmatpush1.msra.mxu0 0.0
  %2605 = vmatprep.subr.mxu0 0.0
  %2606 = vmatpush1.msra.mxu0 0.0
  %2607 = vmatprep.subr.mxu0 0.0
  %2608 = vmatpush1.msra.mxu0 0.0
  %2609 = vmatprep.subr.mxu0 0.0
  %2610 = vmatpush1.msra.mxu0 0.0
  %2611 = vmatprep.subr.mxu0 0.0
  %2612 = vmatpush1.msra.mxu0 0.0
  %2613 = vmatprep.subr.mxu0 0.0
  %2614 = vmatpush1.msra.mxu0 0.0
  %2615 = vmatprep.subr.mxu0 0.0
  %2616 = vmatpush1.msra.mxu0 0.0
  %2617 = vmatprep.subr.mxu0 0.0
  %2618 = vmatpush1.msra.mxu0 0.0
  %2619 = vmatprep.subr.mxu0 0.0
  %2620 = vmatpush1.msra.mxu0 0.0
  %2621 = vmatprep.subr.mxu0 0.0
  %2622 = vmatpush1.msra.mxu0 0.0
  %2623 = vmatprep.subr.mxu0 0.0
  %2624 = vmatpush1.msra.mxu0 0.0
  %2625 = vmatprep.subr.mxu0 0.0
  %2626 = vmatpush1.msra.mxu0 0.0
  %2627 = vmatprep.subr.mxu0 0.0
  %2628 = vmatpush1.msra.mxu0 0.0
  %2629 = vmatprep.subr.mxu0 0.0
  %2630 = vmatpush1.msra.mxu0 0.0
  %2631 = vmatprep.subr.mxu0 0.0
  %2632 = vmatpush1.msra.mxu0 0.0
  %2633 = vmatprep.subr.mxu0 0.0
  %2634 = vmatpush1.msra.mxu0 0.0
  %2635 = vmatprep.subr.mxu0 0.0
  %2636 = vmatpush1.msra.mxu0 0.0
  %2637 = vmatprep.subr.mxu0 0.0
  %2638 = vmatpush1.msra.mxu0 0.0
  %2639 = vmatprep.subr.mxu0 0.0
  %2640 = vmatpush1.msra.mxu0 0.0
  %2641 = vmatprep.subr.mxu0 0.0
  %2642 = vmatpush1.msra.mxu0 0.0
  %2643 = vmatprep.subr.mxu0 0.0
  %2644 = vmatpush1.msra.mxu0 0.0
  %2645 = vmatprep.subr.mxu0 0.0
  %2646 = vmatpush1.msra.mxu0 0.0
  %2647 = vmatprep.subr.mxu0 0.0
  %2648 = vmatpush1.msra.mxu0 0.0
  %2649 = vmatprep.mubr.f32.mxu0 0.0
  %2650 = vmatmul.mubr.f32.gmra.mrb[0].mxu0 %v2425
  %v2651 = vpop.f32.mrb[0].mxu0
  %v2652 = vadd.f32 0.0, %v2651
  %v2653 = vpop.f32.mrb[0].mxu0
  %2654 = vdwg.mxu0
  %2656 = vrot.lane.b32.xlu0 %v2652, 64
  %v2657 = vpop.permute.xlu0 %2656
  %v2659 = vadd.f32 %v2421, %v2657
  %v2660 = vtanh.pop %v2659
  %2661 = vmatprep.subr.mxu0 0.0
  %2662 = vmatpush1.msra.mxu0 %v39
  %2663 = vmatprep.subr.mxu0 0.0
  %2664 = vmatpush1.msra.mxu0 %v40
  %2665 = vmatprep.subr.mxu0 0.0
  %2666 = vmatpush1.msra.mxu0 %v41
  %2667 = vmatprep.subr.mxu0 0.0
  %2668 = vmatpush1.msra.mxu0 %v42
  %2669 = vmatprep.subr.mxu0 0.0
  %2670 = vmatpush1.msra.mxu0 0.0
  %2671 = vmatprep.subr.mxu0 0.0
  %2672 = vmatpush1.msra.mxu0 0.0
  %2673 = vmatprep.subr.mxu0 0.0
  %2674 = vmatpush1.msra.mxu0 0.0
  %2675 = vmatprep.subr.mxu0 0.0
  %2676 = vmatpush1.msra.mxu0 0.0
  %2677 = vmatprep.subr.mxu0 0.0
  %2678 = vmatpush1.msra.mxu0 0.0
  %2679 = vmatprep.subr.mxu0 0.0
  %2680 = vmatpush1.msra.mxu0 0.0
  %2681 = vmatprep.subr.mxu0 0.0
  %2682 = vmatpush1.msra.mxu0 0.0
  %2683 = vmatprep.subr.mxu0 0.0
  %2684 = vmatpush1.msra.mxu0 0.0
  %2685 = vmatprep.subr.mxu0 0.0
  %2686 = vmatpush1.msra.mxu0 0.0
  %2687 = vmatprep.subr.mxu0 0.0
  %2688 = vmatpush1.msra.mxu0 0.0
  %2689 = vmatprep.subr.mxu0 0.0
  %2690 = vmatpush1.msra.mxu0 0.0
  %2691 = vmatprep.subr.mxu0 0.0
  %2692 = vmatpush1.msra.mxu0 0.0
  %2693 = vmatprep.subr.mxu0 0.0
  %2694 = vmatpush1.msra.mxu0 0.0
  %2695 = vmatprep.subr.mxu0 0.0
  %2696 = vmatpush1.msra.mxu0 0.0
  %2697 = vmatprep.subr.mxu0 0.0
  %2698 = vmatpush1.msra.mxu0 0.0
  %2699 = vmatprep.subr.mxu0 0.0
  %2700 = vmatpush1.msra.mxu0 0.0
  %2701 = vmatprep.subr.mxu0 0.0
  %2702 = vmatpush1.msra.mxu0 0.0
  %2703 = vmatprep.subr.mxu0 0.0
  %2704 = vmatpush1.msra.mxu0 0.0
  %2705 = vmatprep.subr.mxu0 0.0
  %2706 = vmatpush1.msra.mxu0 0.0
  %2707 = vmatprep.subr.mxu0 0.0
  %2708 = vmatpush1.msra.mxu0 0.0
  %2709 = vmatprep.subr.mxu0 0.0
  %2710 = vmatpush1.msra.mxu0 0.0
  %2711 = vmatprep.subr.mxu0 0.0
  %2712 = vmatpush1.msra.mxu0 0.0
  %2713 = vmatprep.subr.mxu0 0.0
  %2714 = vmatpush1.msra.mxu0 0.0
  %2715 = vmatprep.subr.mxu0 0.0
  %2716 = vmatpush1.msra.mxu0 0.0
  %2717 = vmatprep.subr.mxu0 0.0
  %2718 = vmatpush1.msra.mxu0 0.0
  %2719 = vmatprep.subr.mxu0 0.0
  %2720 = vmatpush1.msra.mxu0 0.0
  %2721 = vmatprep.subr.mxu0 0.0
  %2722 = vmatpush1.msra.mxu0 0.0
  %2723 = vmatprep.subr.mxu0 0.0
  %2724 = vmatpush1.msra.mxu0 0.0
  %2725 = vmatprep.mubr.f32.mxu0 0.0
  %2726 = vmatmul.mubr.f32.gmra.mrb[0].mxu0 %v2425
  %v2727 = vpop.f32.mrb[0].mxu0
  %v2728 = vadd.f32 0.0, %v2727
  %v2729 = vpop.f32.mrb[0].mxu0
  %2730 = vdwg.mxu0
  %2732 = vrot.lane.b32.xlu0 %v2728, 96
  %v2733 = vpop.permute.xlu0 %2732
  %v2735 = vadd.f32 %v2421, %v2733
  %v2736 = vxor.u32 %v2735, 2147483648
  %v2737 = vmul.f32 %v2736, 1.442695
  %v2738 = vpow.pop %v2737
  %v2739 = vadd.f32 %v2738, 1.0
  %v2740 = vrcp.pop %v2739
  %v2741 = vmul.f32 1.0, %v2740
  %v2742 = vmul.f32 %v2584, %v2413
  %2744 = vrot.lane.b32.xlu0 %v2660, 64
  %v2745 = vpop.permute.xlu0 %2744
  %v2747 = vmul.f32 %v2503, %v2745
  %2749 = vrot.lane.b32.xlu0 %v2747, 32
  %v2750 = vpop.permute.xlu0 %2749
  %v2752 = vadd.f32 %v2742, %v2750
  %v2753 = vtanh.pop %v2752
  %2755 = vrot.lane.b32.xlu0 %v2753, 64
  %v2756 = vpop.permute.xlu0 %2755
  %v2758 = vmul.f32 %v2741, %v2756
  %2760 = vrot.lane.b32.xlu0 %v2758, 32
  %v2761 = vpop.permute.xlu0 %2760
  %2763 = vst.msk [vmem:[#allocation2] sm:$0xff] %vm46, %v2761
  %2765 = vrot.lane.b32.xlu0 %v2752, 96
  %v2766 = vpop.permute.xlu0 %2765
  %2768 = vst.msk [vmem:[#allocation3] sm:$0xff] %vm46, %v2766
  // Predicated region
  $region22: #{candle_lstm_forward.1} parent=0 // pred_check
    %p2769 = pneg %p17
  $region23: #{candle_lstm_forward.1} parent=0 // pred_check_branch
    %2771 = sbr.rel (%p2769) target = $region25
  $region24: #{candle_lstm_forward.1} parent=0 // pred_region
    %v2772 = vld [vmem:[%s2] sm:$0xff]
    %v2773 = vld [vmem:[%s2 + $0x8] sm:$0xff]
    %v2774 = vld [vmem:[%s2 + $0x10] sm:$0xff]
    %v2775 = vld [vmem:[%s2 + $0x18] sm:$0xff]
    %v2776 = vld [vmem:[%s3] sm:$0x1]
    %v2778 = vlaneseq
    %v2779 = vshrl.u32 %v2778, 7
    %v2780 = vsub.s32 0, %v2779
    %v2781 = vrot.slane %v2776, %v2780
    %v2783 = vsel %vm46, %v2761, 0
    %2785 = vmatprep.subr.mxu0 0.0
    %2786 = vmatpush1.msra.mxu0 %v2772
    %2787 = vmatprep.subr.mxu0 0.0
    %2788 = vmatpush1.msra.mxu0 %v2773
    %2789 = vmatprep.subr.mxu0 0.0
    %2790 = vmatpush1.msra.mxu0 %v2774
    %2791 = vmatprep.subr.mxu0 0.0
    %2792 = vmatpush1.msra.mxu0 %v2775
    %2793 = vmatprep.subr.mxu0 0.0
    %2794 = vmatpush1.msra.mxu0 0.0
    %2795 = vmatprep.subr.mxu0 0.0
    %2796 = vmatpush1.msra.mxu0 0.0
    %2797 = vmatprep.subr.mxu0 0.0
    %2798 = vmatpush1.msra.mxu0 0.0
    %2799 = vmatprep.subr.mxu0 0.0
    %2800 = vmatpush1.msra.mxu0 0.0
    %2801 = vmatprep.subr.mxu0 0.0
    %2802 = vmatpush1.msra.mxu0 0.0
    %2803 = vmatprep.subr.mxu0 0.0
    %2804 = vmatpush1.msra.mxu0 0.0
    %2805 = vmatprep.subr.mxu0 0.0
    %2806 = vmatpush1.msra.mxu0 0.0
    %2807 = vmatprep.subr.mxu0 0.0
    %2808 = vmatpush1.msra.mxu0 0.0
    %2809 = vmatprep.subr.mxu0 0.0
    %2810 = vmatpush1.msra.mxu0 0.0
    %2811 = vmatprep.subr.mxu0 0.0
    %2812 = vmatpush1.msra.mxu0 0.0
    %2813 = vmatprep.subr.mxu0 0.0
    %2814 = vmatpush1.msra.mxu0 0.0
    %2815 = vmatprep.subr.mxu0 0.0
    %2816 = vmatpush1.msra.mxu0 0.0
    %2817 = vmatprep.subr.mxu0 0.0
    %2818 = vmatpush1.msra.mxu0 0.0
    %2819 = vmatprep.subr.mxu0 0.0
    %2820 = vmatpush1.msra.mxu0 0.0
    %2821 = vmatprep.subr.mxu0 0.0
    %2822 = vmatpush1.msra.mxu0 0.0
    %2823 = vmatprep.subr.mxu0 0.0
    %2824 = vmatpush1.msra.mxu0 0.0
    %2825 = vmatprep.subr.mxu0 0.0
    %2826 = vmatpush1.msra.mxu0 0.0
    %2827 = vmatprep.subr.mxu0 0.0
    %2828 = vmatpush1.msra.mxu0 0.0
    %2829 = vmatprep.subr.mxu0 0.0
    %2830 = vmatpush1.msra.mxu0 0.0
    %2831 = vmatprep.subr.mxu0 0.0
    %2832 = vmatpush1.msra.mxu0 0.0
    %2833 = vmatprep.subr.mxu0 0.0
    %2834 = vmatpush1.msra.mxu0 0.0
    %2835 = vmatprep.subr.mxu0 0.0
    %2836 = vmatpush1.msra.mxu0 0.0
    %2837 = vmatprep.subr.mxu0 0.0
    %2838 = vmatpush1.msra.mxu0 0.0
    %2839 = vmatprep.subr.mxu0 0.0
    %2840 = vmatpush1.msra.mxu0 0.0
    %2841 = vmatprep.subr.mxu0 0.0
    %2842 = vmatpush1.msra.mxu0 0.0
    %2843 = vmatprep.subr.mxu0 0.0
    %2844 = vmatpush1.msra.mxu0 0.0
    %2845 = vmatprep.subr.mxu0 0.0
    %2846 = vmatpush1.msra.mxu0 0.0
    %2847 = vmatprep.subr.mxu0 0.0
    %2848 = vmatpush1.msra.mxu0 0.0
    %2849 = vmatprep.mubr.f32.mxu0 0.0
    %2850 = vmatmul.mubr.f32.gmra.mrb[0].mxu0 %v2783
    %v2851 = vpop.f32.mrb[0].mxu0
    %v2852 = vadd.f32 %v2781, %v2851
    %v2853 = vpop.f32.mrb[0].mxu0
    %2854 = vdwg.mxu0
    %v2855 = vxor.u32 %v2852, 2147483648
    %v2856 = vmul.f32 %v2855, 1.442695
    %v2857 = vpow.pop %v2856
    %v2858 = vadd.f32 %v2857, 1.0
    %v2859 = vrcp.pop %v2858
    %v2860 = vmul.f32 1.0, %v2859
    %2861 = vst [vmem:[%s4] sm:$0xff] %v2860
  $region25: #{candle_lstm_forward.1} parent=0 // pred_fallthru
    _
  // Predicated region
  $region26: #{candle_lstm_forward.1} parent=0 // pred_check
    _
  $region27: #{candle_lstm_forward.1} parent=0 // pred_check_branch
    %2863 = sbr.rel (0) target = $region29
  $region28: #{candle_lstm_forward.1} parent=0 // pred_region
    _
  $region29: #{candle_lstm_forward.1} parent=0 // pred_fallthru
    _
  // Predicated region
  $region30: #{candle_lstm_forward.1} parent=0 // pred_check
    _
  $region31: #{candle_lstm_forward.1} parent=0 // pred_check_branch
    %2865 = sbr.rel (0) target = $region33
  $region32: #{candle_lstm_forward.1} parent=0 // pred_region
    _
  $region33: #{candle_lstm_forward.1} parent=0 // pred_fallthru
    _

</llo_original>
